<compile_context>
chip_gen: v6e
topology: v6e:2x2x1
jax: 0.10.0
libtpu: 0.0.40
codegen_flags: <defaults>
</compile_context>

<pallas_src>
import functools

import jax
import jax.numpy as jnp
from jax.experimental import pallas as pl
from jax.experimental.pallas import tpu as pltpu


# ----------------------------------------------------------------------------
# Fused forward kernel (batch_block items per grid step)
# ----------------------------------------------------------------------------
def _euler_kernel(v_ref, k_ref, we_ref,
                  img_w_ref, img_b_ref,
                  kemb_w_ref, kemb_b_ref,
                  qproj_w_ref, qproj_b_ref,
                  mm_red_ref, q_red_ref, *maybe_att,
                  num_r, lk, layers, num_cell, n_k_att):
    att_ref = maybe_att[0] if maybe_att else None
    f32, bf16 = jnp.float32, jnp.bfloat16
    B = v_ref.shape[0] // num_r          # batch items folded into this block

    # ---- fused linears: bf16 operands on the MXU, f32 accumulation ----------
    # Inputs and weights arrive f32 straight from HBM; bf16 casts are in-kernel
    # VPU filler (no host-side cast kernels).
    v_emb = (jnp.dot(v_ref[...].astype(bf16), img_w_ref[...].astype(bf16),
                     preferred_element_type=f32) + img_b_ref[...])    # (B*num_r, D)
    k_emb = (jnp.dot(k_ref[...].astype(bf16), kemb_w_ref[...].astype(bf16),
                     preferred_element_type=f32) + kemb_b_ref[...])   # (B*lk, D)
    # TODO(synk): q_emb is an external recurrent encoder (forward_all);
    # approximated by a tanh projection (tanh fused -> EUP slot, ~free).
    q_emb = jnp.tanh(jnp.dot(we_ref[...].astype(bf16),
                             qproj_w_ref[...].astype(bf16),
                             preferred_element_type=f32) + qproj_b_ref[...])

    d = v_emb.shape[-1]
    scale = f32(1.0 / (d ** 0.5))

    # Block-diagonal masks keep attention strictly per batch item while all B
    # items share a single folded-M score matmul.  Built from comparisons only
    # (tiny static unroll over B) — no vector integer division.
    def block_diag_mask(q_rows, k_rows):
        if B == 1:
            return None
        m, n = B * q_rows, B * k_rows
        r = jax.lax.broadcasted_iota(jnp.int32, (m, n), 0)
        c = jax.lax.broadcasted_iota(jnp.int32, (m, n), 1)
        mask = None
        for b in range(B):
            blk = ((r >= b * q_rows) & (r < (b + 1) * q_rows) &
                   (c >= b * k_rows) & (c < (b + 1) * k_rows))
            mask = blk if mask is None else (mask | blk)
        return mask

    mask_kk = block_diag_mask(lk, lk)        # k_att self-attention
    mask_rk = block_diag_mask(num_r, lk)     # reasoning cross-attention

    def attention(q_f32, kv_bf16, kv_f32, mask):
        # Scores on the MXU: scale folded into q; dot_general contracts the
        # last dims so no explicit K transpose is materialized (XLU stays free).
        s = jax.lax.dot_general((q_f32 * scale).astype(bf16), kv_bf16,
                                (((1,), (1,)), ((), ())),
                                preferred_element_type=f32)           # (Lq, B*lk)
        if mask is not None:
            s = jnp.where(mask, s, f32(-1e30))
        s = s - jnp.max(s, axis=-1, keepdims=True)
        p = jnp.exp(s)                                                # f32 softmax
        p = p / jnp.sum(p, axis=-1, keepdims=True)                    # exact divide
        # ctx = p @ K with contraction of only B*lk rows: the MXU would run at
        # ~2-5% utilization and pay push/pop latency per call, so use VPU
        # broadcast-FMAs in f32 (also skips the p/K bf16 converts).
        n_kv = kv_f32.shape[0]
        ctx = p[:, 0:1] * kv_f32[0:1, :]
        for j in range(1, n_kv):
            ctx = ctx + p[:, j:j + 1] * kv_f32[j:j + 1, :]
        return ctx, p

    # ---- k_att knowledge encoders (k_emb stays VMEM/vreg resident) ----------
    # TODO(synk): k_att encoder modules are external; approximated with
    # residual self-attention over the knowledge sequence.
    for _ in range(n_k_att):
        ctx, _ = attention(k_emb, k_emb.astype(bf16), k_emb, mask_kk)
        k_emb = k_emb + ctx

    # Hoisted: one bf16 cast of the final knowledge keys, reused by every
    # reasoning layer's score matmul (Mosaic does not reliably CSE this).
    kb = k_emb.astype(bf16)

    # ---- reasoning layers (CRLayer / moe_block approximation) ---------------
    # TODO(synk): CRLayer definition not provided; approximated by a
    # cross-attention cell update that consumes k_emb and rotates the cell list.
    # Static unroll is fine at layers=3 / num_cell=5; switch to lax.fori_loop
    # with a (num_cell, B*num_r, D) VMEM scratch if these grow (vreg guard).
    mm = jnp.zeros_like(v_emb)
    last_in = [v_emb] * num_cell
    for i in range(layers):
        cell = last_in[i % num_cell]
        ctx, p = attention(cell + mm, kb, k_emb, mask_rk)
        mm = mm + ctx
        last_in = last_in[1:] + [ctx]
        if att_ref is not None:              # eval mode only (gated, tiny store)
            att_ref[i] = p

    # Downstream only consumes global means -> emit per-block row-sums
    # (lane-dense (1, num_hid) stores) instead of the full activation tensors.
    mm_red_ref[0] = jnp.sum(mm, axis=0, keepdims=True)
    q_red_ref[0] = jnp.sum(q_emb, axis=0, keepdims=True)


def _pick_batch_block(bs, row_counts, target_m=256):
    """Batch items folded per grid step: aim B*num_r near the MXU width.

    VMEM is never the constraint here (<2 MiB working set vs 64-128 MiB), so
    B is chosen for MXU row occupancy.  When the grid ends up > 1, the folded
    row blocks must stay sublane-aligned (the (8,128) tiling constraint);
    B == bs (single grid step) is always legal because blocks then equal the
    full arrays.
    """
    rmax = max(row_counts)
    best = None
    for b in range(1, bs + 1):
        if bs % b:
            continue
        if b * rmax > max(target_m, rmax):
            continue
        if b < bs and any((b * r) % 8 for r in row_counts):
            continue
        best = b
    return bs if best is None else best


def euler_fused(v, k, w_emb, params, *, layers, num_cell, n_k_att, training,
                batch_block=None):
    """Single fused pallas_call over the whole EuLER hot path."""
    bs, num_r, v_in = v.shape
    _, lk, k_in = k.shape
    q_len, word_dim = w_emb.shape[1], w_emb.shape[2]
    num_hid = params["img_w"].shape[1]
    f32 = jnp.float32

    if batch_block is None:
        # Fold batch into the matmul M dim.  On v7x pass batch_block = bs // 2
        # so the 2-wide "parallel" grid axis puts half the batch on each TC.
        batch_block = _pick_batch_block(bs, (num_r, lk, q_len))
    assert bs % batch_block == 0, "batch_block must divide the batch size"
    B = batch_block
    num_blocks = bs // B
    if num_blocks > 1:
        for rows in (num_r, lk, q_len):
            assert (B * rows) % 8 == 0, (
                "folded row blocks must be sublane-aligned when grid > 1")

    # Free metadata-only reshapes: flatten batch into the row dim so the kernel
    # sees lane-aligned 2-D tiles and needs no in-kernel relayout.
    vf = v.reshape(bs * num_r, v_in)
    kf = k.reshape(bs * lk, k_in)
    wf = w_emb.reshape(bs * q_len, word_dim)

    # Weights stay f32 at the call site (no per-call astype kernels); the bf16
    # casts happen inside the kernel.  Bias reshapes are free bitcasts.
    weights = (params["img_w"], params["img_b"].reshape(1, num_hid),
               params["kemb_w"], params["kemb_b"].reshape(1, num_hid),
               params["qproj_w"], params["qproj_b"].reshape(1, num_hid))

    out_shapes = [jax.ShapeDtypeStruct((num_blocks, 1, num_hid), f32),
                  jax.ShapeDtypeStruct((num_blocks, 1, num_hid), f32)]
    out_specs = [pl.BlockSpec((1, 1, num_hid), lambda g: (g, 0, 0)),
                 pl.BlockSpec((1, 1, num_hid), lambda g: (g, 0, 0))]
    if not training:
        # Eval-only attention maps (tiny: layers x bs*num_r x B*lk).  Left at
        # B*lk lanes: the masked stores cost ~nothing at this size; pad to 128
        # lanes if lk ever grows (v5e masked-store note in the review).
        out_shapes.append(
            jax.ShapeDtypeStruct((layers, bs * num_r, B * lk), f32))
        out_specs.append(pl.BlockSpec((layers, B * num_r, B * lk),
                                      lambda g: (0, g, 0)))

    kernel = functools.partial(_euler_kernel, num_r=num_r, lk=lk,
                               layers=layers, num_cell=num_cell,
                               n_k_att=n_k_att)

    return pl.pallas_call(
        kernel,
        out_shape=tuple(out_shapes),
        grid_spec=pltpu.PrefetchScalarGridSpec(
            num_scalar_prefetch=0,
            grid=(num_blocks,),
            in_specs=[
                pl.BlockSpec((B * num_r, v_in), lambda g: (g, 0)),
                pl.BlockSpec((B * lk, k_in), lambda g: (g, 0)),
                pl.BlockSpec((B * q_len, word_dim), lambda g: (g, 0)),
                # Weights/biases: constant block index -> DMA'd once, resident.
                # (Default double-buffering kept: ~1.7 MiB total, far below
                #  even v7x's 64 MiB VMEM, so Buffered(1) would buy nothing.)
                pl.BlockSpec((v_in, num_hid), lambda g: (0, 0)),
                pl.BlockSpec((1, num_hid), lambda g: (0, 0)),
                pl.BlockSpec((k_in, num_hid), lambda g: (0, 0)),
                pl.BlockSpec((1, num_hid), lambda g: (0, 0)),
                pl.BlockSpec((word_dim, num_hid), lambda g: (0, 0)),
                pl.BlockSpec((1, num_hid), lambda g: (0, 0)),
            ],
            out_specs=tuple(out_specs),
        ),
        compiler_params=pltpu.CompilerParams(
            dimension_semantics=("parallel",)),     # v7x: shards blocks over TCs
    )(vf, kf, wf, *weights)


# ----------------------------------------------------------------------------
# EuLER forward pass
# ----------------------------------------------------------------------------
def init_params(key, *, num_hid, mid_size, num_ans, vocab, word_dim, k_dim):
    ks = jax.random.split(key, 10)
    s = 0.02
    return {
        # nn.Linear(4 * num_hid, num_hid)
        "img_w": s * jax.random.normal(ks[0], (4 * num_hid, num_hid), jnp.float32),
        "img_b": s * jax.random.normal(ks[1], (num_hid,), jnp.float32),
        # w_emb: word embedding table
        "word_table": s * jax.random.normal(ks[2], (vocab, word_dim), jnp.float32),
        # k_emb: knowledge embedding projection (1024 -> num_hid)
        "kemb_w": s * jax.random.normal(ks[3], (k_dim, num_hid), jnp.float32),
        "kemb_b": s * jax.random.normal(ks[4], (num_hid,), jnp.float32),
        # q_emb.forward_all approximation (word_dim -> num_hid)
        "qproj_w": s * jax.random.normal(ks[5], (word_dim, num_hid), jnp.float32),
        "qproj_b": s * jax.random.normal(ks[6], (num_hid,), jnp.float32),
        # nn.Linear(2 * mid_size, num_ans_candidates)
        "clf_w": s * jax.random.normal(ks[7], (2 * mid_size, num_ans), jnp.float32),
        "clf_b": s * jax.random.normal(ks[8], (num_ans,), jnp.float32),
    }


def euler_forward(params, v, b_boxes, k, q, labels, *,
                  layers, num_cell, n_k_att, training=False, batch_block=None):
    """
    v: (bs, num_r, 4*num_hid) image region features
    b_boxes: (bs, num_r, 4)   (unused by the reference forward)
    k: (bs, k_len, 1024)      knowledge features
    q: (bs, q_len)            question token ids
    labels: unused by the reference forward
    """
    del b_boxes, labels
    bs, num_r, _ = v.shape
    lk = k.shape[1]
    q_len = q.shape[1]
    num_hid = params["img_w"].shape[1]

    # w_emb = self.w_emb(q): embedding lookup is gather glue -> plain JAX.
    w_emb = params["word_table"][q]                     # (bs, q_len, word_dim)

    results = euler_fused(v, k, w_emb, params, layers=layers,
                          num_cell=num_cell, n_k_att=n_k_att,
                          training=training, batch_block=batch_block)
    if training:
        mm_red, q_red = results
        att_raw = None
    else:
        mm_red, q_red, att_raw = results

    # q_feat / v_feat are FULL-tensor means (scalars shared by the whole
    # batch), exactly as the reference's torch.mean(...) with no dim argument.
    v_feat = jnp.sum(mm_red) / (bs * num_r * num_hid)
    q_feat = jnp.sum(q_red) / (bs * q_len * num_hid)

    # NOTE: the reference feeds a scalar into nn.Linear(2*mid_size, ...); with a
    # broadcast-scalar input the linear collapses to a column sum, so the M=1
    # matmul kernel is replaced by this algebraically identical expression.
    s = q_feat + v_feat
    logits = s * jnp.sum(params["clf_w"], axis=0) + params["clf_b"]

    if training:
        return logits

    # Un-fold the block-diagonal attention maps (eval-only glue on a tiny
    # tensor): global item gb owns rows [gb*num_r, (gb+1)*num_r) and the
    # (gb % batch_block)-th lk-wide column block.
    B = att_raw.shape[-1] // lk
    maps = []
    for gb in range(bs):
        col0 = (gb % B) * lk
        maps.append(att_raw[:, gb * num_r:(gb + 1) * num_r, col0:col0 + lk])
    att = jnp.stack(maps, axis=1)                       # (layers, bs, num_r, lk)
    return logits, att.reshape(layers * bs, num_r, lk)  # layer-major, as reference


# ----------------------------------------------------------------------------
# Demo
# ----------------------------------------------------------------------------
if __name__ == "__main__":
    # Small shapes consistent with the module: num_hid=mid_size=128 so that v
    # has last dim 4*num_hid = 512 (matching the docstring), num_r=36 (as
    # hard-coded in CRLayer(num_hid, 36, layers)), k last dim = 1024.
    bs, num_r = 2, 36
    num_hid = 128
    mid_size = 128
    num_ans = 128
    vocab, word_dim, q_len = 100, 128, 8
    k_len, k_dim = 6, 1024
    layers, num_cell, n_k_att = 3, 5, 2

    key = jax.random.PRNGKey(0)
    kp, kv, kb, kk, kq, kl = jax.random.split(key, 6)

    params = init_params(kp, num_hid=num_hid, mid_size=mid_size,
                         num_ans=num_ans, vocab=vocab, word_dim=word_dim,
                         k_dim=k_dim)

    v = jax.random.normal(kv, (bs, num_r, 4 * num_hid), jnp.float32)
    b_boxes = jax.random.normal(kb, (bs, num_r, 4), jnp.float32)
    k = jax.random.normal(kk, (bs, k_len, k_dim), jnp.float32)
    q = jax.random.randint(kq, (bs, q_len), 0, vocab, jnp.int32)
    labels = jax.random.normal(kl, (bs, num_ans), jnp.float32)

    fwd = functools.partial(euler_forward, layers=layers, num_cell=num_cell,
                            n_k_att=n_k_att, training=False)
    logits, att_maps = jax.jit(fwd)(params, v, b_boxes, k, q, labels)
    jax.block_until_ready(logits)
    jax.block_until_ready(att_maps)

    assert logits.shape == (num_ans,)
    assert att_maps.shape == (layers * bs, num_r, k_len)
    assert bool(jnp.all(jnp.isfinite(logits)))
    assert bool(jnp.all(jnp.isfinite(att_maps)))
    # Attention rows are exact softmaxes -> each row sums to 1.
    assert bool(jnp.allclose(jnp.sum(att_maps, axis=-1), 1.0, atol=1e-3))
    print("KERNEL_OK")
</pallas_src>

<mosaic_0001>
module attributes {stable_mosaic.version = 11 : i64} {
  func.func @_euler_kernel(%arg0: i32, %arg1: memref<72x512xf32, #tpu.memory_space<vmem>>, %arg2: memref<12x1024xf32, #tpu.memory_space<vmem>>, %arg3: memref<16x128xf32, #tpu.memory_space<vmem>>, %arg4: memref<512x128xf32, #tpu.memory_space<vmem>>, %arg5: memref<1x128xf32, #tpu.memory_space<vmem>>, %arg6: memref<1024x128xf32, #tpu.memory_space<vmem>>, %arg7: memref<1x128xf32, #tpu.memory_space<vmem>>, %arg8: memref<128x128xf32, #tpu.memory_space<vmem>>, %arg9: memref<1x128xf32, #tpu.memory_space<vmem>>, %arg10: memref<1x1x128xf32, #tpu.memory_space<vmem>>, %arg11: memref<1x1x128xf32, #tpu.memory_space<vmem>>, %arg12: memref<3x72x12xf32, #tpu.memory_space<vmem>>) attributes {dimension_semantics = [#tpu.dimension_semantics<parallel>], iteration_bounds = array<i64: 1>, scalar_prefetch = 0 : i64, scratch_operands = 0 : i64, tpu.core_type = #tpu.core_type<tc>, window_params = [{transform_indices = @transform_0, window_bounds = array<i64: 72, 512>}, {transform_indices = @transform_1, window_bounds = array<i64: 12, 1024>}, {transform_indices = @transform_2, window_bounds = array<i64: 16, 128>}, {pipeline_mode = #tpu.pipeline_mode<synchronous>, transform_indices = @transform_3, window_bounds = array<i64: 512, 128>}, {pipeline_mode = #tpu.pipeline_mode<synchronous>, transform_indices = @transform_4, window_bounds = array<i64: 1, 128>}, {pipeline_mode = #tpu.pipeline_mode<synchronous>, transform_indices = @transform_5, window_bounds = array<i64: 1024, 128>}, {pipeline_mode = #tpu.pipeline_mode<synchronous>, transform_indices = @transform_6, window_bounds = array<i64: 1, 128>}, {pipeline_mode = #tpu.pipeline_mode<synchronous>, transform_indices = @transform_7, window_bounds = array<i64: 128, 128>}, {pipeline_mode = #tpu.pipeline_mode<synchronous>, transform_indices = @transform_8, window_bounds = array<i64: 1, 128>}, {transform_indices = @transform_9, window_bounds = array<i64: 1, 1, 128>}, {transform_indices = @transform_10, window_bounds = array<i64: 1, 1, 128>}, {transform_indices = @transform_11, window_bounds = array<i64: 3, 72, 12>}]} {
    %c0 = arith.constant 0 : index
    %c0_0 = arith.constant 0 : index
    %0 = vector.load %arg1[%c0, %c0_0] : memref<72x512xf32, #tpu.memory_space<vmem>>, vector<72x512xf32>
    %1 = arith.truncf %0 : vector<72x512xf32> to vector<72x512xbf16>
    %c0_1 = arith.constant 0 : index
    %c0_2 = arith.constant 0 : index
    %2 = vector.load %arg4[%c0_1, %c0_2] : memref<512x128xf32, #tpu.memory_space<vmem>>, vector<512x128xf32>
    %3 = arith.truncf %2 : vector<512x128xf32> to vector<512x128xbf16>
    %cst = arith.constant dense<0.000000e+00> : vector<72x128xf32>
    %4 = tpu.matmul %1, %3, %cst {dimension_numbers = #tpu.dot_dimension_numbers<[1], [0], [0], [1], [0, 0, 1, 1], [], []>} : vector<72x512xbf16>, vector<512x128xbf16>, vector<72x128xf32> -> vector<72x128xf32>
    %c0_3 = arith.constant 0 : index
    %c0_4 = arith.constant 0 : index
    %5 = vector.load %arg5[%c0_3, %c0_4] : memref<1x128xf32, #tpu.memory_space<vmem>>, vector<1x128xf32>
    %6 = vector.broadcast %5 : vector<1x128xf32> to vector<72x128xf32>
    %7 = arith.addf %4, %6 : vector<72x128xf32>
    %c0_5 = arith.constant 0 : index
    %c0_6 = arith.constant 0 : index
    %8 = vector.load %arg2[%c0_5, %c0_6] : memref<12x1024xf32, #tpu.memory_space<vmem>>, vector<12x1024xf32>
    %9 = arith.truncf %8 : vector<12x1024xf32> to vector<12x1024xbf16>
    %c0_7 = arith.constant 0 : index
    %c0_8 = arith.constant 0 : index
    %10 = vector.load %arg6[%c0_7, %c0_8] : memref<1024x128xf32, #tpu.memory_space<vmem>>, vector<1024x128xf32>
    %11 = arith.truncf %10 : vector<1024x128xf32> to vector<1024x128xbf16>
    %cst_9 = arith.constant dense<0.000000e+00> : vector<12x128xf32>
    %12 = tpu.matmul %9, %11, %cst_9 {dimension_numbers = #tpu.dot_dimension_numbers<[1], [0], [0], [1], [0, 0, 1, 1], [], []>} : vector<12x1024xbf16>, vector<1024x128xbf16>, vector<12x128xf32> -> vector<12x128xf32>
    %c0_10 = arith.constant 0 : index
    %c0_11 = arith.constant 0 : index
    %13 = vector.load %arg7[%c0_10, %c0_11] : memref<1x128xf32, #tpu.memory_space<vmem>>, vector<1x128xf32>
    %14 = vector.broadcast %13 : vector<1x128xf32> to vector<12x128xf32>
    %15 = arith.addf %12, %14 : vector<12x128xf32>
    %c0_12 = arith.constant 0 : index
    %c0_13 = arith.constant 0 : index
    %16 = vector.load %arg3[%c0_12, %c0_13] : memref<16x128xf32, #tpu.memory_space<vmem>>, vector<16x128xf32>
    %17 = arith.truncf %16 : vector<16x128xf32> to vector<16x128xbf16>
    %c0_14 = arith.constant 0 : index
    %c0_15 = arith.constant 0 : index
    %18 = vector.load %arg8[%c0_14, %c0_15] : memref<128x128xf32, #tpu.memory_space<vmem>>, vector<128x128xf32>
    %19 = arith.truncf %18 : vector<128x128xf32> to vector<128x128xbf16>
    %cst_16 = arith.constant dense<0.000000e+00> : vector<16x128xf32>
    %20 = tpu.matmul %17, %19, %cst_16 {dimension_numbers = #tpu.dot_dimension_numbers<[1], [0], [0], [1], [0, 0, 1, 1], [], []>} : vector<16x128xbf16>, vector<128x128xbf16>, vector<16x128xf32> -> vector<16x128xf32>
    %c0_17 = arith.constant 0 : index
    %c0_18 = arith.constant 0 : index
    %21 = vector.load %arg9[%c0_17, %c0_18] : memref<1x128xf32, #tpu.memory_space<vmem>>, vector<1x128xf32>
    %22 = vector.broadcast %21 : vector<1x128xf32> to vector<16x128xf32>
    %23 = arith.addf %20, %22 : vector<16x128xf32>
    %24 = math.tanh %23 : vector<16x128xf32>
    %25 = tpu.iota {dimensions = array<i32: 0>} : vector<12x12xi32>
    %26 = tpu.iota {dimensions = array<i32: 1>} : vector<12x12xi32>
    %c0_i32 = arith.constant 0 : i32
    %27 = vector.broadcast %c0_i32 : i32 to vector<12x12xi32>
    %28 = arith.cmpi sge, %25, %27 : vector<12x12xi32>
    %c6_i32 = arith.constant 6 : i32
    %29 = vector.broadcast %c6_i32 : i32 to vector<12x12xi32>
    %30 = arith.cmpi slt, %25, %29 : vector<12x12xi32>
    %31 = arith.andi %28, %30 : vector<12x12xi1>
    %c0_i32_19 = arith.constant 0 : i32
    %32 = vector.broadcast %c0_i32_19 : i32 to vector<12x12xi32>
    %33 = arith.cmpi sge, %26, %32 : vector<12x12xi32>
    %34 = arith.andi %31, %33 : vector<12x12xi1>
    %c6_i32_20 = arith.constant 6 : i32
    %35 = vector.broadcast %c6_i32_20 : i32 to vector<12x12xi32>
    %36 = arith.cmpi slt, %26, %35 : vector<12x12xi32>
    %37 = arith.andi %34, %36 : vector<12x12xi1>
    %c6_i32_21 = arith.constant 6 : i32
    %38 = vector.broadcast %c6_i32_21 : i32 to vector<12x12xi32>
    %39 = arith.cmpi sge, %25, %38 : vector<12x12xi32>
    %c12_i32 = arith.constant 12 : i32
    %40 = vector.broadcast %c12_i32 : i32 to vector<12x12xi32>
    %41 = arith.cmpi slt, %25, %40 : vector<12x12xi32>
    %42 = arith.andi %39, %41 : vector<12x12xi1>
    %c6_i32_22 = arith.constant 6 : i32
    %43 = vector.broadcast %c6_i32_22 : i32 to vector<12x12xi32>
    %44 = arith.cmpi sge, %26, %43 : vector<12x12xi32>
    %45 = arith.andi %42, %44 : vector<12x12xi1>
    %c12_i32_23 = arith.constant 12 : i32
    %46 = vector.broadcast %c12_i32_23 : i32 to vector<12x12xi32>
    %47 = arith.cmpi slt, %26, %46 : vector<12x12xi32>
    %48 = arith.andi %45, %47 : vector<12x12xi1>
    %49 = arith.ori %37, %48 : vector<12x12xi1>
    %50 = tpu.iota {dimensions = array<i32: 0>} : vector<72x12xi32>
    %51 = tpu.iota {dimensions = array<i32: 1>} : vector<72x12xi32>
    %c0_i32_24 = arith.constant 0 : i32
    %52 = vector.broadcast %c0_i32_24 : i32 to vector<72x12xi32>
    %53 = arith.cmpi sge, %50, %52 : vector<72x12xi32>
    %c36_i32 = arith.constant 36 : i32
    %54 = vector.broadcast %c36_i32 : i32 to vector<72x12xi32>
    %55 = arith.cmpi slt, %50, %54 : vector<72x12xi32>
    %56 = arith.andi %53, %55 : vector<72x12xi1>
    %c0_i32_25 = arith.constant 0 : i32
    %57 = vector.broadcast %c0_i32_25 : i32 to vector<72x12xi32>
    %58 = arith.cmpi sge, %51, %57 : vector<72x12xi32>
    %59 = arith.andi %56, %58 : vector<72x12xi1>
    %c6_i32_26 = arith.constant 6 : i32
    %60 = vector.broadcast %c6_i32_26 : i32 to vector<72x12xi32>
    %61 = arith.cmpi slt, %51, %60 : vector<72x12xi32>
    %62 = arith.andi %59, %61 : vector<72x12xi1>
    %c36_i32_27 = arith.constant 36 : i32
    %63 = vector.broadcast %c36_i32_27 : i32 to vector<72x12xi32>
    %64 = arith.cmpi sge, %50, %63 : vector<72x12xi32>
    %c72_i32 = arith.constant 72 : i32
    %65 = vector.broadcast %c72_i32 : i32 to vector<72x12xi32>
    %66 = arith.cmpi slt, %50, %65 : vector<72x12xi32>
    %67 = arith.andi %64, %66 : vector<72x12xi1>
    %c6_i32_28 = arith.constant 6 : i32
    %68 = vector.broadcast %c6_i32_28 : i32 to vector<72x12xi32>
    %69 = arith.cmpi sge, %51, %68 : vector<72x12xi32>
    %70 = arith.andi %67, %69 : vector<72x12xi1>
    %c12_i32_29 = arith.constant 12 : i32
    %71 = vector.broadcast %c12_i32_29 : i32 to vector<72x12xi32>
    %72 = arith.cmpi slt, %51, %71 : vector<72x12xi32>
    %73 = arith.andi %70, %72 : vector<72x12xi1>
    %74 = arith.ori %62, %73 : vector<72x12xi1>
    %75 = arith.truncf %15 : vector<12x128xf32> to vector<12x128xbf16>
    %cst_30 = arith.constant 0.0883883461 : f32
    %76 = vector.broadcast %cst_30 : f32 to vector<12x128xf32>
    %77 = arith.mulf %15, %76 : vector<12x128xf32>
    %78 = arith.truncf %77 : vector<12x128xf32> to vector<12x128xbf16>
    %cst_31 = arith.constant dense<0.000000e+00> : vector<12x12xf32>
    %79 = tpu.matmul %78, %75, %cst_31 {dimension_numbers = #tpu.dot_dimension_numbers<[1], [1], [0], [0], [0, 0, 1, 0], [], []>} : vector<12x128xbf16>, vector<12x128xbf16>, vector<12x12xf32> -> vector<12x12xf32>
    %cst_32 = arith.constant -1.000000e+30 : f32
    %80 = vector.broadcast %cst_32 : f32 to vector<12x12xf32>
    %81 = arith.select %49, %79, %80 : vector<12x12xi1>, vector<12x12xf32>
    %cst_33 = arith.constant dense<0xFF800000> : vector<12xf32>
    %82 = vector.multi_reduction <maximumf>, %81, %cst_33 [1] : vector<12x12xf32> to vector<12xf32>
    %83 = vector.shape_cast %82 : vector<12xf32> to vector<12x1xf32>
    %84 = vector.broadcast %83 : vector<12x1xf32> to vector<12x12xf32>
    %85 = arith.subf %81, %84 : vector<12x12xf32>
    %86 = math.exp %85 : vector<12x12xf32>
    %cst_34 = arith.constant dense<0.000000e+00> : vector<12xf32>
    %87 = vector.multi_reduction <add>, %86, %cst_34 [1] : vector<12x12xf32> to vector<12xf32>
    %88 = vector.shape_cast %87 : vector<12xf32> to vector<12x1xf32>
    %89 = vector.broadcast %88 : vector<12x1xf32> to vector<12x12xf32>
    %90 = arith.divf %86, %89 : vector<12x12xf32>
    %91 = vector.extract_strided_slice %90 {offsets = [0, 0], sizes = [12, 1], strides = [1, 1]} : vector<12x12xf32> to vector<12x1xf32>
    %92 = vector.extract_strided_slice %15 {offsets = [0, 0], sizes = [1, 128], strides = [1, 1]} : vector<12x128xf32> to vector<1x128xf32>
    %93 = vector.broadcast %91 : vector<12x1xf32> to vector<12x128xf32>
    %94 = vector.broadcast %92 : vector<1x128xf32> to vector<12x128xf32>
    %95 = arith.mulf %93, %94 : vector<12x128xf32>
    %96 = vector.extract_strided_slice %90 {offsets = [0, 1], sizes = [12, 1], strides = [1, 1]} : vector<12x12xf32> to vector<12x1xf32>
    %97 = vector.extract_strided_slice %15 {offsets = [1, 0], sizes = [1, 128], strides = [1, 1]} : vector<12x128xf32> to vector<1x128xf32>
    %98 = vector.broadcast %96 : vector<12x1xf32> to vector<12x128xf32>
    %99 = vector.broadcast %97 : vector<1x128xf32> to vector<12x128xf32>
    %100 = arith.mulf %98, %99 : vector<12x128xf32>
    %101 = arith.addf %95, %100 : vector<12x128xf32>
    %102 = vector.extract_strided_slice %90 {offsets = [0, 2], sizes = [12, 1], strides = [1, 1]} : vector<12x12xf32> to vector<12x1xf32>
    %103 = vector.extract_strided_slice %15 {offsets = [2, 0], sizes = [1, 128], strides = [1, 1]} : vector<12x128xf32> to vector<1x128xf32>
    %104 = vector.broadcast %102 : vector<12x1xf32> to vector<12x128xf32>
    %105 = vector.broadcast %103 : vector<1x128xf32> to vector<12x128xf32>
    %106 = arith.mulf %104, %105 : vector<12x128xf32>
    %107 = arith.addf %101, %106 : vector<12x128xf32>
    %108 = vector.extract_strided_slice %90 {offsets = [0, 3], sizes = [12, 1], strides = [1, 1]} : vector<12x12xf32> to vector<12x1xf32>
    %109 = vector.extract_strided_slice %15 {offsets = [3, 0], sizes = [1, 128], strides = [1, 1]} : vector<12x128xf32> to vector<1x128xf32>
    %110 = vector.broadcast %108 : vector<12x1xf32> to vector<12x128xf32>
    %111 = vector.broadcast %109 : vector<1x128xf32> to vector<12x128xf32>
    %112 = arith.mulf %110, %111 : vector<12x128xf32>
    %113 = arith.addf %107, %112 : vector<12x128xf32>
    %114 = vector.extract_strided_slice %90 {offsets = [0, 4], sizes = [12, 1], strides = [1, 1]} : vector<12x12xf32> to vector<12x1xf32>
    %115 = vector.extract_strided_slice %15 {offsets = [4, 0], sizes = [1, 128], strides = [1, 1]} : vector<12x128xf32> to vector<1x128xf32>
    %116 = vector.broadcast %114 : vector<12x1xf32> to vector<12x128xf32>
    %117 = vector.broadcast %115 : vector<1x128xf32> to vector<12x128xf32>
    %118 = arith.mulf %116, %117 : vector<12x128xf32>
    %119 = arith.addf %113, %118 : vector<12x128xf32>
    %120 = vector.extract_strided_slice %90 {offsets = [0, 5], sizes = [12, 1], strides = [1, 1]} : vector<12x12xf32> to vector<12x1xf32>
    %121 = vector.extract_strided_slice %15 {offsets = [5, 0], sizes = [1, 128], strides = [1, 1]} : vector<12x128xf32> to vector<1x128xf32>
    %122 = vector.broadcast %120 : vector<12x1xf32> to vector<12x128xf32>
    %123 = vector.broadcast %121 : vector<1x128xf32> to vector<12x128xf32>
    %124 = arith.mulf %122, %123 : vector<12x128xf32>
    %125 = arith.addf %119, %124 : vector<12x128xf32>
    %126 = vector.extract_strided_slice %90 {offsets = [0, 6], sizes = [12, 1], strides = [1, 1]} : vector<12x12xf32> to vector<12x1xf32>
    %127 = vector.extract_strided_slice %15 {offsets = [6, 0], sizes = [1, 128], strides = [1, 1]} : vector<12x128xf32> to vector<1x128xf32>
    %128 = vector.broadcast %126 : vector<12x1xf32> to vector<12x128xf32>
    %129 = vector.broadcast %127 : vector<1x128xf32> to vector<12x128xf32>
    %130 = arith.mulf %128, %129 : vector<12x128xf32>
    %131 = arith.addf %125, %130 : vector<12x128xf32>
    %132 = vector.extract_strided_slice %90 {offsets = [0, 7], sizes = [12, 1], strides = [1, 1]} : vector<12x12xf32> to vector<12x1xf32>
    %133 = vector.extract_strided_slice %15 {offsets = [7, 0], sizes = [1, 128], strides = [1, 1]} : vector<12x128xf32> to vector<1x128xf32>
    %134 = vector.broadcast %132 : vector<12x1xf32> to vector<12x128xf32>
    %135 = vector.broadcast %133 : vector<1x128xf32> to vector<12x128xf32>
    %136 = arith.mulf %134, %135 : vector<12x128xf32>
    %137 = arith.addf %131, %136 : vector<12x128xf32>
    %138 = vector.extract_strided_slice %90 {offsets = [0, 8], sizes = [12, 1], strides = [1, 1]} : vector<12x12xf32> to vector<12x1xf32>
    %139 = vector.extract_strided_slice %15 {offsets = [8, 0], sizes = [1, 128], strides = [1, 1]} : vector<12x128xf32> to vector<1x128xf32>
    %140 = vector.broadcast %138 : vector<12x1xf32> to vector<12x128xf32>
    %141 = vector.broadcast %139 : vector<1x128xf32> to vector<12x128xf32>
    %142 = arith.mulf %140, %141 : vector<12x128xf32>
    %143 = arith.addf %137, %142 : vector<12x128xf32>
    %144 = vector.extract_strided_slice %90 {offsets = [0, 9], sizes = [12, 1], strides = [1, 1]} : vector<12x12xf32> to vector<12x1xf32>
    %145 = vector.extract_strided_slice %15 {offsets = [9, 0], sizes = [1, 128], strides = [1, 1]} : vector<12x128xf32> to vector<1x128xf32>
    %146 = vector.broadcast %144 : vector<12x1xf32> to vector<12x128xf32>
    %147 = vector.broadcast %145 : vector<1x128xf32> to vector<12x128xf32>
    %148 = arith.mulf %146, %147 : vector<12x128xf32>
    %149 = arith.addf %143, %148 : vector<12x128xf32>
    %150 = vector.extract_strided_slice %90 {offsets = [0, 10], sizes = [12, 1], strides = [1, 1]} : vector<12x12xf32> to vector<12x1xf32>
    %151 = vector.extract_strided_slice %15 {offsets = [10, 0], sizes = [1, 128], strides = [1, 1]} : vector<12x128xf32> to vector<1x128xf32>
    %152 = vector.broadcast %150 : vector<12x1xf32> to vector<12x128xf32>
    %153 = vector.broadcast %151 : vector<1x128xf32> to vector<12x128xf32>
    %154 = arith.mulf %152, %153 : vector<12x128xf32>
    %155 = arith.addf %149, %154 : vector<12x128xf32>
    %156 = vector.extract_strided_slice %90 {offsets = [0, 11], sizes = [12, 1], strides = [1, 1]} : vector<12x12xf32> to vector<12x1xf32>
    %157 = vector.extract_strided_slice %15 {offsets = [11, 0], sizes = [1, 128], strides = [1, 1]} : vector<12x128xf32> to vector<1x128xf32>
    %158 = vector.broadcast %156 : vector<12x1xf32> to vector<12x128xf32>
    %159 = vector.broadcast %157 : vector<1x128xf32> to vector<12x128xf32>
    %160 = arith.mulf %158, %159 : vector<12x128xf32>
    %161 = arith.addf %155, %160 : vector<12x128xf32>
    %162 = arith.addf %15, %161 : vector<12x128xf32>
    %163 = arith.truncf %162 : vector<12x128xf32> to vector<12x128xbf16>
    %cst_35 = arith.constant 0.0883883461 : f32
    %164 = vector.broadcast %cst_35 : f32 to vector<12x128xf32>
    %165 = arith.mulf %162, %164 : vector<12x128xf32>
    %166 = arith.truncf %165 : vector<12x128xf32> to vector<12x128xbf16>
    %cst_36 = arith.constant dense<0.000000e+00> : vector<12x12xf32>
    %167 = tpu.matmul %166, %163, %cst_36 {dimension_numbers = #tpu.dot_dimension_numbers<[1], [1], [0], [0], [0, 0, 1, 0], [], []>} : vector<12x128xbf16>, vector<12x128xbf16>, vector<12x12xf32> -> vector<12x12xf32>
    %cst_37 = arith.constant -1.000000e+30 : f32
    %168 = vector.broadcast %cst_37 : f32 to vector<12x12xf32>
    %169 = arith.select %49, %167, %168 : vector<12x12xi1>, vector<12x12xf32>
    %cst_38 = arith.constant dense<0xFF800000> : vector<12xf32>
    %170 = vector.multi_reduction <maximumf>, %169, %cst_38 [1] : vector<12x12xf32> to vector<12xf32>
    %171 = vector.shape_cast %170 : vector<12xf32> to vector<12x1xf32>
    %172 = vector.broadcast %171 : vector<12x1xf32> to vector<12x12xf32>
    %173 = arith.subf %169, %172 : vector<12x12xf32>
    %174 = math.exp %173 : vector<12x12xf32>
    %cst_39 = arith.constant dense<0.000000e+00> : vector<12xf32>
    %175 = vector.multi_reduction <add>, %174, %cst_39 [1] : vector<12x12xf32> to vector<12xf32>
    %176 = vector.shape_cast %175 : vector<12xf32> to vector<12x1xf32>
    %177 = vector.broadcast %176 : vector<12x1xf32> to vector<12x12xf32>
    %178 = arith.divf %174, %177 : vector<12x12xf32>
    %179 = vector.extract_strided_slice %178 {offsets = [0, 0], sizes = [12, 1], strides = [1, 1]} : vector<12x12xf32> to vector<12x1xf32>
    %180 = vector.extract_strided_slice %162 {offsets = [0, 0], sizes = [1, 128], strides = [1, 1]} : vector<12x128xf32> to vector<1x128xf32>
    %181 = vector.broadcast %179 : vector<12x1xf32> to vector<12x128xf32>
    %182 = vector.broadcast %180 : vector<1x128xf32> to vector<12x128xf32>
    %183 = arith.mulf %181, %182 : vector<12x128xf32>
    %184 = vector.extract_strided_slice %178 {offsets = [0, 1], sizes = [12, 1], strides = [1, 1]} : vector<12x12xf32> to vector<12x1xf32>
    %185 = vector.extract_strided_slice %162 {offsets = [1, 0], sizes = [1, 128], strides = [1, 1]} : vector<12x128xf32> to vector<1x128xf32>
    %186 = vector.broadcast %184 : vector<12x1xf32> to vector<12x128xf32>
    %187 = vector.broadcast %185 : vector<1x128xf32> to vector<12x128xf32>
    %188 = arith.mulf %186, %187 : vector<12x128xf32>
    %189 = arith.addf %183, %188 : vector<12x128xf32>
    %190 = vector.extract_strided_slice %178 {offsets = [0, 2], sizes = [12, 1], strides = [1, 1]} : vector<12x12xf32> to vector<12x1xf32>
    %191 = vector.extract_strided_slice %162 {offsets = [2, 0], sizes = [1, 128], strides = [1, 1]} : vector<12x128xf32> to vector<1x128xf32>
    %192 = vector.broadcast %190 : vector<12x1xf32> to vector<12x128xf32>
    %193 = vector.broadcast %191 : vector<1x128xf32> to vector<12x128xf32>
    %194 = arith.mulf %192, %193 : vector<12x128xf32>
    %195 = arith.addf %189, %194 : vector<12x128xf32>
    %196 = vector.extract_strided_slice %178 {offsets = [0, 3], sizes = [12, 1], strides = [1, 1]} : vector<12x12xf32> to vector<12x1xf32>
    %197 = vector.extract_strided_slice %162 {offsets = [3, 0], sizes = [1, 128], strides = [1, 1]} : vector<12x128xf32> to vector<1x128xf32>
    %198 = vector.broadcast %196 : vector<12x1xf32> to vector<12x128xf32>
    %199 = vector.broadcast %197 : vector<1x128xf32> to vector<12x128xf32>
    %200 = arith.mulf %198, %199 : vector<12x128xf32>
    %201 = arith.addf %195, %200 : vector<12x128xf32>
    %202 = vector.extract_strided_slice %178 {offsets = [0, 4], sizes = [12, 1], strides = [1, 1]} : vector<12x12xf32> to vector<12x1xf32>
    %203 = vector.extract_strided_slice %162 {offsets = [4, 0], sizes = [1, 128], strides = [1, 1]} : vector<12x128xf32> to vector<1x128xf32>
    %204 = vector.broadcast %202 : vector<12x1xf32> to vector<12x128xf32>
    %205 = vector.broadcast %203 : vector<1x128xf32> to vector<12x128xf32>
    %206 = arith.mulf %204, %205 : vector<12x128xf32>
    %207 = arith.addf %201, %206 : vector<12x128xf32>
    %208 = vector.extract_strided_slice %178 {offsets = [0, 5], sizes = [12, 1], strides = [1, 1]} : vector<12x12xf32> to vector<12x1xf32>
    %209 = vector.extract_strided_slice %162 {offsets = [5, 0], sizes = [1, 128], strides = [1, 1]} : vector<12x128xf32> to vector<1x128xf32>
    %210 = vector.broadcast %208 : vector<12x1xf32> to vector<12x128xf32>
    %211 = vector.broadcast %209 : vector<1x128xf32> to vector<12x128xf32>
    %212 = arith.mulf %210, %211 : vector<12x128xf32>
    %213 = arith.addf %207, %212 : vector<12x128xf32>
    %214 = vector.extract_strided_slice %178 {offsets = [0, 6], sizes = [12, 1], strides = [1, 1]} : vector<12x12xf32> to vector<12x1xf32>
    %215 = vector.extract_strided_slice %162 {offsets = [6, 0], sizes = [1, 128], strides = [1, 1]} : vector<12x128xf32> to vector<1x128xf32>
    %216 = vector.broadcast %214 : vector<12x1xf32> to vector<12x128xf32>
    %217 = vector.broadcast %215 : vector<1x128xf32> to vector<12x128xf32>
    %218 = arith.mulf %216, %217 : vector<12x128xf32>
    %219 = arith.addf %213, %218 : vector<12x128xf32>
    %220 = vector.extract_strided_slice %178 {offsets = [0, 7], sizes = [12, 1], strides = [1, 1]} : vector<12x12xf32> to vector<12x1xf32>
    %221 = vector.extract_strided_slice %162 {offsets = [7, 0], sizes = [1, 128], strides = [1, 1]} : vector<12x128xf32> to vector<1x128xf32>
    %222 = vector.broadcast %220 : vector<12x1xf32> to vector<12x128xf32>
    %223 = vector.broadcast %221 : vector<1x128xf32> to vector<12x128xf32>
    %224 = arith.mulf %222, %223 : vector<12x128xf32>
    %225 = arith.addf %219, %224 : vector<12x128xf32>
    %226 = vector.extract_strided_slice %178 {offsets = [0, 8], sizes = [12, 1], strides = [1, 1]} : vector<12x12xf32> to vector<12x1xf32>
    %227 = vector.extract_strided_slice %162 {offsets = [8, 0], sizes = [1, 128], strides = [1, 1]} : vector<12x128xf32> to vector<1x128xf32>
    %228 = vector.broadcast %226 : vector<12x1xf32> to vector<12x128xf32>
    %229 = vector.broadcast %227 : vector<1x128xf32> to vector<12x128xf32>
    %230 = arith.mulf %228, %229 : vector<12x128xf32>
    %231 = arith.addf %225, %230 : vector<12x128xf32>
    %232 = vector.extract_strided_slice %178 {offsets = [0, 9], sizes = [12, 1], strides = [1, 1]} : vector<12x12xf32> to vector<12x1xf32>
    %233 = vector.extract_strided_slice %162 {offsets = [9, 0], sizes = [1, 128], strides = [1, 1]} : vector<12x128xf32> to vector<1x128xf32>
    %234 = vector.broadcast %232 : vector<12x1xf32> to vector<12x128xf32>
    %235 = vector.broadcast %233 : vector<1x128xf32> to vector<12x128xf32>
    %236 = arith.mulf %234, %235 : vector<12x128xf32>
    %237 = arith.addf %231, %236 : vector<12x128xf32>
    %238 = vector.extract_strided_slice %178 {offsets = [0, 10], sizes = [12, 1], strides = [1, 1]} : vector<12x12xf32> to vector<12x1xf32>
    %239 = vector.extract_strided_slice %162 {offsets = [10, 0], sizes = [1, 128], strides = [1, 1]} : vector<12x128xf32> to vector<1x128xf32>
    %240 = vector.broadcast %238 : vector<12x1xf32> to vector<12x128xf32>
    %241 = vector.broadcast %239 : vector<1x128xf32> to vector<12x128xf32>
    %242 = arith.mulf %240, %241 : vector<12x128xf32>
    %243 = arith.addf %237, %242 : vector<12x128xf32>
    %244 = vector.extract_strided_slice %178 {offsets = [0, 11], sizes = [12, 1], strides = [1, 1]} : vector<12x12xf32> to vector<12x1xf32>
    %245 = vector.extract_strided_slice %162 {offsets = [11, 0], sizes = [1, 128], strides = [1, 1]} : vector<12x128xf32> to vector<1x128xf32>
    %246 = vector.broadcast %244 : vector<12x1xf32> to vector<12x128xf32>
    %247 = vector.broadcast %245 : vector<1x128xf32> to vector<12x128xf32>
    %248 = arith.mulf %246, %247 : vector<12x128xf32>
    %249 = arith.addf %243, %248 : vector<12x128xf32>
    %250 = arith.addf %162, %249 : vector<12x128xf32>
    %251 = arith.truncf %250 : vector<12x128xf32> to vector<12x128xbf16>
    %cst_40 = arith.constant 0.000000e+00 : f32
    %252 = vector.broadcast %cst_40 : f32 to vector<72x128xf32>
    %253 = arith.addf %7, %252 : vector<72x128xf32>
    %cst_41 = arith.constant 0.0883883461 : f32
    %254 = vector.broadcast %cst_41 : f32 to vector<72x128xf32>
    %255 = arith.mulf %253, %254 : vector<72x128xf32>
    %256 = arith.truncf %255 : vector<72x128xf32> to vector<72x128xbf16>
    %cst_42 = arith.constant dense<0.000000e+00> : vector<72x12xf32>
    %257 = tpu.matmul %256, %251, %cst_42 {dimension_numbers = #tpu.dot_dimension_numbers<[1], [1], [0], [0], [0, 0, 1, 0], [], []>} : vector<72x128xbf16>, vector<12x128xbf16>, vector<72x12xf32> -> vector<72x12xf32>
    %cst_43 = arith.constant -1.000000e+30 : f32
    %258 = vector.broadcast %cst_43 : f32 to vector<72x12xf32>
    %259 = arith.select %74, %257, %258 : vector<72x12xi1>, vector<72x12xf32>
    %cst_44 = arith.constant dense<0xFF800000> : vector<72xf32>
    %260 = vector.multi_reduction <maximumf>, %259, %cst_44 [1] : vector<72x12xf32> to vector<72xf32>
    %261 = vector.shape_cast %260 : vector<72xf32> to vector<72x1xf32>
    %262 = vector.broadcast %261 : vector<72x1xf32> to vector<72x12xf32>
    %263 = arith.subf %259, %262 : vector<72x12xf32>
    %264 = math.exp %263 : vector<72x12xf32>
    %cst_45 = arith.constant dense<0.000000e+00> : vector<72xf32>
    %265 = vector.multi_reduction <add>, %264, %cst_45 [1] : vector<72x12xf32> to vector<72xf32>
    %266 = vector.shape_cast %265 : vector<72xf32> to vector<72x1xf32>
    %267 = vector.broadcast %266 : vector<72x1xf32> to vector<72x12xf32>
    %268 = arith.divf %264, %267 : vector<72x12xf32>
    %269 = vector.extract_strided_slice %268 {offsets = [0, 0], sizes = [72, 1], strides = [1, 1]} : vector<72x12xf32> to vector<72x1xf32>
    %270 = vector.extract_strided_slice %250 {offsets = [0, 0], sizes = [1, 128], strides = [1, 1]} : vector<12x128xf32> to vector<1x128xf32>
    %271 = vector.broadcast %269 : vector<72x1xf32> to vector<72x128xf32>
    %272 = vector.broadcast %270 : vector<1x128xf32> to vector<72x128xf32>
    %273 = arith.mulf %271, %272 : vector<72x128xf32>
    %274 = vector.extract_strided_slice %268 {offsets = [0, 1], sizes = [72, 1], strides = [1, 1]} : vector<72x12xf32> to vector<72x1xf32>
    %275 = vector.extract_strided_slice %250 {offsets = [1, 0], sizes = [1, 128], strides = [1, 1]} : vector<12x128xf32> to vector<1x128xf32>
    %276 = vector.broadcast %274 : vector<72x1xf32> to vector<72x128xf32>
    %277 = vector.broadcast %275 : vector<1x128xf32> to vector<72x128xf32>
    %278 = arith.mulf %276, %277 : vector<72x128xf32>
    %279 = arith.addf %273, %278 : vector<72x128xf32>
    %280 = vector.extract_strided_slice %268 {offsets = [0, 2], sizes = [72, 1], strides = [1, 1]} : vector<72x12xf32> to vector<72x1xf32>
    %281 = vector.extract_strided_slice %250 {offsets = [2, 0], sizes = [1, 128], strides = [1, 1]} : vector<12x128xf32> to vector<1x128xf32>
    %282 = vector.broadcast %280 : vector<72x1xf32> to vector<72x128xf32>
    %283 = vector.broadcast %281 : vector<1x128xf32> to vector<72x128xf32>
    %284 = arith.mulf %282, %283 : vector<72x128xf32>
    %285 = arith.addf %279, %284 : vector<72x128xf32>
    %286 = vector.extract_strided_slice %268 {offsets = [0, 3], sizes = [72, 1], strides = [1, 1]} : vector<72x12xf32> to vector<72x1xf32>
    %287 = vector.extract_strided_slice %250 {offsets = [3, 0], sizes = [1, 128], strides = [1, 1]} : vector<12x128xf32> to vector<1x128xf32>
    %288 = vector.broadcast %286 : vector<72x1xf32> to vector<72x128xf32>
    %289 = vector.broadcast %287 : vector<1x128xf32> to vector<72x128xf32>
    %290 = arith.mulf %288, %289 : vector<72x128xf32>
    %291 = arith.addf %285, %290 : vector<72x128xf32>
    %292 = vector.extract_strided_slice %268 {offsets = [0, 4], sizes = [72, 1], strides = [1, 1]} : vector<72x12xf32> to vector<72x1xf32>
    %293 = vector.extract_strided_slice %250 {offsets = [4, 0], sizes = [1, 128], strides = [1, 1]} : vector<12x128xf32> to vector<1x128xf32>
    %294 = vector.broadcast %292 : vector<72x1xf32> to vector<72x128xf32>
    %295 = vector.broadcast %293 : vector<1x128xf32> to vector<72x128xf32>
    %296 = arith.mulf %294, %295 : vector<72x128xf32>
    %297 = arith.addf %291, %296 : vector<72x128xf32>
    %298 = vector.extract_strided_slice %268 {offsets = [0, 5], sizes = [72, 1], strides = [1, 1]} : vector<72x12xf32> to vector<72x1xf32>
    %299 = vector.extract_strided_slice %250 {offsets = [5, 0], sizes = [1, 128], strides = [1, 1]} : vector<12x128xf32> to vector<1x128xf32>
    %300 = vector.broadcast %298 : vector<72x1xf32> to vector<72x128xf32>
    %301 = vector.broadcast %299 : vector<1x128xf32> to vector<72x128xf32>
    %302 = arith.mulf %300, %301 : vector<72x128xf32>
    %303 = arith.addf %297, %302 : vector<72x128xf32>
    %304 = vector.extract_strided_slice %268 {offsets = [0, 6], sizes = [72, 1], strides = [1, 1]} : vector<72x12xf32> to vector<72x1xf32>
    %305 = vector.extract_strided_slice %250 {offsets = [6, 0], sizes = [1, 128], strides = [1, 1]} : vector<12x128xf32> to vector<1x128xf32>
    %306 = vector.broadcast %304 : vector<72x1xf32> to vector<72x128xf32>
    %307 = vector.broadcast %305 : vector<1x128xf32> to vector<72x128xf32>
    %308 = arith.mulf %306, %307 : vector<72x128xf32>
    %309 = arith.addf %303, %308 : vector<72x128xf32>
    %310 = vector.extract_strided_slice %268 {offsets = [0, 7], sizes = [72, 1], strides = [1, 1]} : vector<72x12xf32> to vector<72x1xf32>
    %311 = vector.extract_strided_slice %250 {offsets = [7, 0], sizes = [1, 128], strides = [1, 1]} : vector<12x128xf32> to vector<1x128xf32>
    %312 = vector.broadcast %310 : vector<72x1xf32> to vector<72x128xf32>
    %313 = vector.broadcast %311 : vector<1x128xf32> to vector<72x128xf32>
    %314 = arith.mulf %312, %313 : vector<72x128xf32>
    %315 = arith.addf %309, %314 : vector<72x128xf32>
    %316 = vector.extract_strided_slice %268 {offsets = [0, 8], sizes = [72, 1], strides = [1, 1]} : vector<72x12xf32> to vector<72x1xf32>
    %317 = vector.extract_strided_slice %250 {offsets = [8, 0], sizes = [1, 128], strides = [1, 1]} : vector<12x128xf32> to vector<1x128xf32>
    %318 = vector.broadcast %316 : vector<72x1xf32> to vector<72x128xf32>
    %319 = vector.broadcast %317 : vector<1x128xf32> to vector<72x128xf32>
    %320 = arith.mulf %318, %319 : vector<72x128xf32>
    %321 = arith.addf %315, %320 : vector<72x128xf32>
    %322 = vector.extract_strided_slice %268 {offsets = [0, 9], sizes = [72, 1], strides = [1, 1]} : vector<72x12xf32> to vector<72x1xf32>
    %323 = vector.extract_strided_slice %250 {offsets = [9, 0], sizes = [1, 128], strides = [1, 1]} : vector<12x128xf32> to vector<1x128xf32>
    %324 = vector.broadcast %322 : vector<72x1xf32> to vector<72x128xf32>
    %325 = vector.broadcast %323 : vector<1x128xf32> to vector<72x128xf32>
    %326 = arith.mulf %324, %325 : vector<72x128xf32>
    %327 = arith.addf %321, %326 : vector<72x128xf32>
    %328 = vector.extract_strided_slice %268 {offsets = [0, 10], sizes = [72, 1], strides = [1, 1]} : vector<72x12xf32> to vector<72x1xf32>
    %329 = vector.extract_strided_slice %250 {offsets = [10, 0], sizes = [1, 128], strides = [1, 1]} : vector<12x128xf32> to vector<1x128xf32>
    %330 = vector.broadcast %328 : vector<72x1xf32> to vector<72x128xf32>
    %331 = vector.broadcast %329 : vector<1x128xf32> to vector<72x128xf32>
    %332 = arith.mulf %330, %331 : vector<72x128xf32>
    %333 = arith.addf %327, %332 : vector<72x128xf32>
    %334 = vector.extract_strided_slice %268 {offsets = [0, 11], sizes = [72, 1], strides = [1, 1]} : vector<72x12xf32> to vector<72x1xf32>
    %335 = vector.extract_strided_slice %250 {offsets = [11, 0], sizes = [1, 128], strides = [1, 1]} : vector<12x128xf32> to vector<1x128xf32>
    %336 = vector.broadcast %334 : vector<72x1xf32> to vector<72x128xf32>
    %337 = vector.broadcast %335 : vector<1x128xf32> to vector<72x128xf32>
    %338 = arith.mulf %336, %337 : vector<72x128xf32>
    %339 = arith.addf %333, %338 : vector<72x128xf32>
    %340 = arith.addf %252, %339 : vector<72x128xf32>
    %c0_46 = arith.constant 0 : index
    %c0_47 = arith.constant 0 : index
    %c0_48 = arith.constant 0 : index
    %341 = vector.load %arg12[%c0_46, %c0_47, %c0_48] : memref<3x72x12xf32, #tpu.memory_space<vmem>>, vector<1x72x12xf32>
    %342 = vector.shape_cast %341 : vector<1x72x12xf32> to vector<72x12xf32>
    %343 = vector.shape_cast %268 : vector<72x12xf32> to vector<1x72x12xf32>
    tpu.vector_store %arg12[%c0_46, %c0_47, %c0_48], %343 {strides = array<i32>} : memref<3x72x12xf32, #tpu.memory_space<vmem>>, vector<1x72x12xf32>,
    %344 = arith.addf %7, %340 : vector<72x128xf32>
    %cst_49 = arith.constant 0.0883883461 : f32
    %345 = vector.broadcast %cst_49 : f32 to vector<72x128xf32>
    %346 = arith.mulf %344, %345 : vector<72x128xf32>
    %347 = arith.truncf %346 : vector<72x128xf32> to vector<72x128xbf16>
    %cst_50 = arith.constant dense<0.000000e+00> : vector<72x12xf32>
    %348 = tpu.matmul %347, %251, %cst_50 {dimension_numbers = #tpu.dot_dimension_numbers<[1], [1], [0], [0], [0, 0, 1, 0], [], []>} : vector<72x128xbf16>, vector<12x128xbf16>, vector<72x12xf32> -> vector<72x12xf32>
    %cst_51 = arith.constant -1.000000e+30 : f32
    %349 = vector.broadcast %cst_51 : f32 to vector<72x12xf32>
    %350 = arith.select %74, %348, %349 : vector<72x12xi1>, vector<72x12xf32>
    %cst_52 = arith.constant dense<0xFF800000> : vector<72xf32>
    %351 = vector.multi_reduction <maximumf>, %350, %cst_52 [1] : vector<72x12xf32> to vector<72xf32>
    %352 = vector.shape_cast %351 : vector<72xf32> to vector<72x1xf32>
    %353 = vector.broadcast %352 : vector<72x1xf32> to vector<72x12xf32>
    %354 = arith.subf %350, %353 : vector<72x12xf32>
    %355 = math.exp %354 : vector<72x12xf32>
    %cst_53 = arith.constant dense<0.000000e+00> : vector<72xf32>
    %356 = vector.multi_reduction <add>, %355, %cst_53 [1] : vector<72x12xf32> to vector<72xf32>
    %357 = vector.shape_cast %356 : vector<72xf32> to vector<72x1xf32>
    %358 = vector.broadcast %357 : vector<72x1xf32> to vector<72x12xf32>
    %359 = arith.divf %355, %358 : vector<72x12xf32>
    %360 = vector.extract_strided_slice %359 {offsets = [0, 0], sizes = [72, 1], strides = [1, 1]} : vector<72x12xf32> to vector<72x1xf32>
    %361 = vector.extract_strided_slice %250 {offsets = [0, 0], sizes = [1, 128], strides = [1, 1]} : vector<12x128xf32> to vector<1x128xf32>
    %362 = vector.broadcast %360 : vector<72x1xf32> to vector<72x128xf32>
    %363 = vector.broadcast %361 : vector<1x128xf32> to vector<72x128xf32>
    %364 = arith.mulf %362, %363 : vector<72x128xf32>
    %365 = vector.extract_strided_slice %359 {offsets = [0, 1], sizes = [72, 1], strides = [1, 1]} : vector<72x12xf32> to vector<72x1xf32>
    %366 = vector.extract_strided_slice %250 {offsets = [1, 0], sizes = [1, 128], strides = [1, 1]} : vector<12x128xf32> to vector<1x128xf32>
    %367 = vector.broadcast %365 : vector<72x1xf32> to vector<72x128xf32>
    %368 = vector.broadcast %366 : vector<1x128xf32> to vector<72x128xf32>
    %369 = arith.mulf %367, %368 : vector<72x128xf32>
    %370 = arith.addf %364, %369 : vector<72x128xf32>
    %371 = vector.extract_strided_slice %359 {offsets = [0, 2], sizes = [72, 1], strides = [1, 1]} : vector<72x12xf32> to vector<72x1xf32>
    %372 = vector.extract_strided_slice %250 {offsets = [2, 0], sizes = [1, 128], strides = [1, 1]} : vector<12x128xf32> to vector<1x128xf32>
    %373 = vector.broadcast %371 : vector<72x1xf32> to vector<72x128xf32>
    %374 = vector.broadcast %372 : vector<1x128xf32> to vector<72x128xf32>
    %375 = arith.mulf %373, %374 : vector<72x128xf32>
    %376 = arith.addf %370, %375 : vector<72x128xf32>
    %377 = vector.extract_strided_slice %359 {offsets = [0, 3], sizes = [72, 1], strides = [1, 1]} : vector<72x12xf32> to vector<72x1xf32>
    %378 = vector.extract_strided_slice %250 {offsets = [3, 0], sizes = [1, 128], strides = [1, 1]} : vector<12x128xf32> to vector<1x128xf32>
    %379 = vector.broadcast %377 : vector<72x1xf32> to vector<72x128xf32>
    %380 = vector.broadcast %378 : vector<1x128xf32> to vector<72x128xf32>
    %381 = arith.mulf %379, %380 : vector<72x128xf32>
    %382 = arith.addf %376, %381 : vector<72x128xf32>
    %383 = vector.extract_strided_slice %359 {offsets = [0, 4], sizes = [72, 1], strides = [1, 1]} : vector<72x12xf32> to vector<72x1xf32>
    %384 = vector.extract_strided_slice %250 {offsets = [4, 0], sizes = [1, 128], strides = [1, 1]} : vector<12x128xf32> to vector<1x128xf32>
    %385 = vector.broadcast %383 : vector<72x1xf32> to vector<72x128xf32>
    %386 = vector.broadcast %384 : vector<1x128xf32> to vector<72x128xf32>
    %387 = arith.mulf %385, %386 : vector<72x128xf32>
    %388 = arith.addf %382, %387 : vector<72x128xf32>
    %389 = vector.extract_strided_slice %359 {offsets = [0, 5], sizes = [72, 1], strides = [1, 1]} : vector<72x12xf32> to vector<72x1xf32>
    %390 = vector.extract_strided_slice %250 {offsets = [5, 0], sizes = [1, 128], strides = [1, 1]} : vector<12x128xf32> to vector<1x128xf32>
    %391 = vector.broadcast %389 : vector<72x1xf32> to vector<72x128xf32>
    %392 = vector.broadcast %390 : vector<1x128xf32> to vector<72x128xf32>
    %393 = arith.mulf %391, %392 : vector<72x128xf32>
    %394 = arith.addf %388, %393 : vector<72x128xf32>
    %395 = vector.extract_strided_slice %359 {offsets = [0, 6], sizes = [72, 1], strides = [1, 1]} : vector<72x12xf32> to vector<72x1xf32>
    %396 = vector.extract_strided_slice %250 {offsets = [6, 0], sizes = [1, 128], strides = [1, 1]} : vector<12x128xf32> to vector<1x128xf32>
    %397 = vector.broadcast %395 : vector<72x1xf32> to vector<72x128xf32>
    %398 = vector.broadcast %396 : vector<1x128xf32> to vector<72x128xf32>
    %399 = arith.mulf %397, %398 : vector<72x128xf32>
    %400 = arith.addf %394, %399 : vector<72x128xf32>
    %401 = vector.extract_strided_slice %359 {offsets = [0, 7], sizes = [72, 1], strides = [1, 1]} : vector<72x12xf32> to vector<72x1xf32>
    %402 = vector.extract_strided_slice %250 {offsets = [7, 0], sizes = [1, 128], strides = [1, 1]} : vector<12x128xf32> to vector<1x128xf32>
    %403 = vector.broadcast %401 : vector<72x1xf32> to vector<72x128xf32>
    %404 = vector.broadcast %402 : vector<1x128xf32> to vector<72x128xf32>
    %405 = arith.mulf %403, %404 : vector<72x128xf32>
    %406 = arith.addf %400, %405 : vector<72x128xf32>
    %407 = vector.extract_strided_slice %359 {offsets = [0, 8], sizes = [72, 1], strides = [1, 1]} : vector<72x12xf32> to vector<72x1xf32>
    %408 = vector.extract_strided_slice %250 {offsets = [8, 0], sizes = [1, 128], strides = [1, 1]} : vector<12x128xf32> to vector<1x128xf32>
    %409 = vector.broadcast %407 : vector<72x1xf32> to vector<72x128xf32>
    %410 = vector.broadcast %408 : vector<1x128xf32> to vector<72x128xf32>
    %411 = arith.mulf %409, %410 : vector<72x128xf32>
    %412 = arith.addf %406, %411 : vector<72x128xf32>
    %413 = vector.extract_strided_slice %359 {offsets = [0, 9], sizes = [72, 1], strides = [1, 1]} : vector<72x12xf32> to vector<72x1xf32>
    %414 = vector.extract_strided_slice %250 {offsets = [9, 0], sizes = [1, 128], strides = [1, 1]} : vector<12x128xf32> to vector<1x128xf32>
    %415 = vector.broadcast %413 : vector<72x1xf32> to vector<72x128xf32>
    %416 = vector.broadcast %414 : vector<1x128xf32> to vector<72x128xf32>
    %417 = arith.mulf %415, %416 : vector<72x128xf32>
    %418 = arith.addf %412, %417 : vector<72x128xf32>
    %419 = vector.extract_strided_slice %359 {offsets = [0, 10], sizes = [72, 1], strides = [1, 1]} : vector<72x12xf32> to vector<72x1xf32>
    %420 = vector.extract_strided_slice %250 {offsets = [10, 0], sizes = [1, 128], strides = [1, 1]} : vector<12x128xf32> to vector<1x128xf32>
    %421 = vector.broadcast %419 : vector<72x1xf32> to vector<72x128xf32>
    %422 = vector.broadcast %420 : vector<1x128xf32> to vector<72x128xf32>
    %423 = arith.mulf %421, %422 : vector<72x128xf32>
    %424 = arith.addf %418, %423 : vector<72x128xf32>
    %425 = vector.extract_strided_slice %359 {offsets = [0, 11], sizes = [72, 1], strides = [1, 1]} : vector<72x12xf32> to vector<72x1xf32>
    %426 = vector.extract_strided_slice %250 {offsets = [11, 0], sizes = [1, 128], strides = [1, 1]} : vector<12x128xf32> to vector<1x128xf32>
    %427 = vector.broadcast %425 : vector<72x1xf32> to vector<72x128xf32>
    %428 = vector.broadcast %426 : vector<1x128xf32> to vector<72x128xf32>
    %429 = arith.mulf %427, %428 : vector<72x128xf32>
    %430 = arith.addf %424, %429 : vector<72x128xf32>
    %431 = arith.addf %340, %430 : vector<72x128xf32>
    %c1 = arith.constant 1 : index
    %c0_54 = arith.constant 0 : index
    %c0_55 = arith.constant 0 : index
    %432 = vector.load %arg12[%c1, %c0_54, %c0_55] : memref<3x72x12xf32, #tpu.memory_space<vmem>>, vector<1x72x12xf32>
    %433 = vector.shape_cast %432 : vector<1x72x12xf32> to vector<72x12xf32>
    %434 = vector.shape_cast %359 : vector<72x12xf32> to vector<1x72x12xf32>
    tpu.vector_store %arg12[%c1, %c0_54, %c0_55], %434 {strides = array<i32>} : memref<3x72x12xf32, #tpu.memory_space<vmem>>, vector<1x72x12xf32>,
    %435 = arith.addf %7, %431 : vector<72x128xf32>
    %cst_56 = arith.constant 0.0883883461 : f32
    %436 = vector.broadcast %cst_56 : f32 to vector<72x128xf32>
    %437 = arith.mulf %435, %436 : vector<72x128xf32>
    %438 = arith.truncf %437 : vector<72x128xf32> to vector<72x128xbf16>
    %cst_57 = arith.constant dense<0.000000e+00> : vector<72x12xf32>
    %439 = tpu.matmul %438, %251, %cst_57 {dimension_numbers = #tpu.dot_dimension_numbers<[1], [1], [0], [0], [0, 0, 1, 0], [], []>} : vector<72x128xbf16>, vector<12x128xbf16>, vector<72x12xf32> -> vector<72x12xf32>
    %cst_58 = arith.constant -1.000000e+30 : f32
    %440 = vector.broadcast %cst_58 : f32 to vector<72x12xf32>
    %441 = arith.select %74, %439, %440 : vector<72x12xi1>, vector<72x12xf32>
    %cst_59 = arith.constant dense<0xFF800000> : vector<72xf32>
    %442 = vector.multi_reduction <maximumf>, %441, %cst_59 [1] : vector<72x12xf32> to vector<72xf32>
    %443 = vector.shape_cast %442 : vector<72xf32> to vector<72x1xf32>
    %444 = vector.broadcast %443 : vector<72x1xf32> to vector<72x12xf32>
    %445 = arith.subf %441, %444 : vector<72x12xf32>
    %446 = math.exp %445 : vector<72x12xf32>
    %cst_60 = arith.constant dense<0.000000e+00> : vector<72xf32>
    %447 = vector.multi_reduction <add>, %446, %cst_60 [1] : vector<72x12xf32> to vector<72xf32>
    %448 = vector.shape_cast %447 : vector<72xf32> to vector<72x1xf32>
    %449 = vector.broadcast %448 : vector<72x1xf32> to vector<72x12xf32>
    %450 = arith.divf %446, %449 : vector<72x12xf32>
    %451 = vector.extract_strided_slice %450 {offsets = [0, 0], sizes = [72, 1], strides = [1, 1]} : vector<72x12xf32> to vector<72x1xf32>
    %452 = vector.extract_strided_slice %250 {offsets = [0, 0], sizes = [1, 128], strides = [1, 1]} : vector<12x128xf32> to vector<1x128xf32>
    %453 = vector.broadcast %451 : vector<72x1xf32> to vector<72x128xf32>
    %454 = vector.broadcast %452 : vector<1x128xf32> to vector<72x128xf32>
    %455 = arith.mulf %453, %454 : vector<72x128xf32>
    %456 = vector.extract_strided_slice %450 {offsets = [0, 1], sizes = [72, 1], strides = [1, 1]} : vector<72x12xf32> to vector<72x1xf32>
    %457 = vector.extract_strided_slice %250 {offsets = [1, 0], sizes = [1, 128], strides = [1, 1]} : vector<12x128xf32> to vector<1x128xf32>
    %458 = vector.broadcast %456 : vector<72x1xf32> to vector<72x128xf32>
    %459 = vector.broadcast %457 : vector<1x128xf32> to vector<72x128xf32>
    %460 = arith.mulf %458, %459 : vector<72x128xf32>
    %461 = arith.addf %455, %460 : vector<72x128xf32>
    %462 = vector.extract_strided_slice %450 {offsets = [0, 2], sizes = [72, 1], strides = [1, 1]} : vector<72x12xf32> to vector<72x1xf32>
    %463 = vector.extract_strided_slice %250 {offsets = [2, 0], sizes = [1, 128], strides = [1, 1]} : vector<12x128xf32> to vector<1x128xf32>
    %464 = vector.broadcast %462 : vector<72x1xf32> to vector<72x128xf32>
    %465 = vector.broadcast %463 : vector<1x128xf32> to vector<72x128xf32>
    %466 = arith.mulf %464, %465 : vector<72x128xf32>
    %467 = arith.addf %461, %466 : vector<72x128xf32>
    %468 = vector.extract_strided_slice %450 {offsets = [0, 3], sizes = [72, 1], strides = [1, 1]} : vector<72x12xf32> to vector<72x1xf32>
    %469 = vector.extract_strided_slice %250 {offsets = [3, 0], sizes = [1, 128], strides = [1, 1]} : vector<12x128xf32> to vector<1x128xf32>
    %470 = vector.broadcast %468 : vector<72x1xf32> to vector<72x128xf32>
    %471 = vector.broadcast %469 : vector<1x128xf32> to vector<72x128xf32>
    %472 = arith.mulf %470, %471 : vector<72x128xf32>
    %473 = arith.addf %467, %472 : vector<72x128xf32>
    %474 = vector.extract_strided_slice %450 {offsets = [0, 4], sizes = [72, 1], strides = [1, 1]} : vector<72x12xf32> to vector<72x1xf32>
    %475 = vector.extract_strided_slice %250 {offsets = [4, 0], sizes = [1, 128], strides = [1, 1]} : vector<12x128xf32> to vector<1x128xf32>
    %476 = vector.broadcast %474 : vector<72x1xf32> to vector<72x128xf32>
    %477 = vector.broadcast %475 : vector<1x128xf32> to vector<72x128xf32>
    %478 = arith.mulf %476, %477 : vector<72x128xf32>
    %479 = arith.addf %473, %478 : vector<72x128xf32>
    %480 = vector.extract_strided_slice %450 {offsets = [0, 5], sizes = [72, 1], strides = [1, 1]} : vector<72x12xf32> to vector<72x1xf32>
    %481 = vector.extract_strided_slice %250 {offsets = [5, 0], sizes = [1, 128], strides = [1, 1]} : vector<12x128xf32> to vector<1x128xf32>
    %482 = vector.broadcast %480 : vector<72x1xf32> to vector<72x128xf32>
    %483 = vector.broadcast %481 : vector<1x128xf32> to vector<72x128xf32>
    %484 = arith.mulf %482, %483 : vector<72x128xf32>
    %485 = arith.addf %479, %484 : vector<72x128xf32>
    %486 = vector.extract_strided_slice %450 {offsets = [0, 6], sizes = [72, 1], strides = [1, 1]} : vector<72x12xf32> to vector<72x1xf32>
    %487 = vector.extract_strided_slice %250 {offsets = [6, 0], sizes = [1, 128], strides = [1, 1]} : vector<12x128xf32> to vector<1x128xf32>
    %488 = vector.broadcast %486 : vector<72x1xf32> to vector<72x128xf32>
    %489 = vector.broadcast %487 : vector<1x128xf32> to vector<72x128xf32>
    %490 = arith.mulf %488, %489 : vector<72x128xf32>
    %491 = arith.addf %485, %490 : vector<72x128xf32>
    %492 = vector.extract_strided_slice %450 {offsets = [0, 7], sizes = [72, 1], strides = [1, 1]} : vector<72x12xf32> to vector<72x1xf32>
    %493 = vector.extract_strided_slice %250 {offsets = [7, 0], sizes = [1, 128], strides = [1, 1]} : vector<12x128xf32> to vector<1x128xf32>
    %494 = vector.broadcast %492 : vector<72x1xf32> to vector<72x128xf32>
    %495 = vector.broadcast %493 : vector<1x128xf32> to vector<72x128xf32>
    %496 = arith.mulf %494, %495 : vector<72x128xf32>
    %497 = arith.addf %491, %496 : vector<72x128xf32>
    %498 = vector.extract_strided_slice %450 {offsets = [0, 8], sizes = [72, 1], strides = [1, 1]} : vector<72x12xf32> to vector<72x1xf32>
    %499 = vector.extract_strided_slice %250 {offsets = [8, 0], sizes = [1, 128], strides = [1, 1]} : vector<12x128xf32> to vector<1x128xf32>
    %500 = vector.broadcast %498 : vector<72x1xf32> to vector<72x128xf32>
    %501 = vector.broadcast %499 : vector<1x128xf32> to vector<72x128xf32>
    %502 = arith.mulf %500, %501 : vector<72x128xf32>
    %503 = arith.addf %497, %502 : vector<72x128xf32>
    %504 = vector.extract_strided_slice %450 {offsets = [0, 9], sizes = [72, 1], strides = [1, 1]} : vector<72x12xf32> to vector<72x1xf32>
    %505 = vector.extract_strided_slice %250 {offsets = [9, 0], sizes = [1, 128], strides = [1, 1]} : vector<12x128xf32> to vector<1x128xf32>
    %506 = vector.broadcast %504 : vector<72x1xf32> to vector<72x128xf32>
    %507 = vector.broadcast %505 : vector<1x128xf32> to vector<72x128xf32>
    %508 = arith.mulf %506, %507 : vector<72x128xf32>
    %509 = arith.addf %503, %508 : vector<72x128xf32>
    %510 = vector.extract_strided_slice %450 {offsets = [0, 10], sizes = [72, 1], strides = [1, 1]} : vector<72x12xf32> to vector<72x1xf32>
    %511 = vector.extract_strided_slice %250 {offsets = [10, 0], sizes = [1, 128], strides = [1, 1]} : vector<12x128xf32> to vector<1x128xf32>
    %512 = vector.broadcast %510 : vector<72x1xf32> to vector<72x128xf32>
    %513 = vector.broadcast %511 : vector<1x128xf32> to vector<72x128xf32>
    %514 = arith.mulf %512, %513 : vector<72x128xf32>
    %515 = arith.addf %509, %514 : vector<72x128xf32>
    %516 = vector.extract_strided_slice %450 {offsets = [0, 11], sizes = [72, 1], strides = [1, 1]} : vector<72x12xf32> to vector<72x1xf32>
    %517 = vector.extract_strided_slice %250 {offsets = [11, 0], sizes = [1, 128], strides = [1, 1]} : vector<12x128xf32> to vector<1x128xf32>
    %518 = vector.broadcast %516 : vector<72x1xf32> to vector<72x128xf32>
    %519 = vector.broadcast %517 : vector<1x128xf32> to vector<72x128xf32>
    %520 = arith.mulf %518, %519 : vector<72x128xf32>
    %521 = arith.addf %515, %520 : vector<72x128xf32>
    %522 = arith.addf %431, %521 : vector<72x128xf32>
    %c2 = arith.constant 2 : index
    %c0_61 = arith.constant 0 : index
    %c0_62 = arith.constant 0 : index
    %523 = vector.load %arg12[%c2, %c0_61, %c0_62] : memref<3x72x12xf32, #tpu.memory_space<vmem>>, vector<1x72x12xf32>
    %524 = vector.shape_cast %523 : vector<1x72x12xf32> to vector<72x12xf32>
    %525 = vector.shape_cast %450 : vector<72x12xf32> to vector<1x72x12xf32>
    tpu.vector_store %arg12[%c2, %c0_61, %c0_62], %525 {strides = array<i32>} : memref<3x72x12xf32, #tpu.memory_space<vmem>>, vector<1x72x12xf32>,
    %cst_63 = arith.constant dense<0.000000e+00> : vector<128xf32>
    %526 = vector.multi_reduction <add>, %522, %cst_63 [0] : vector<72x128xf32> to vector<128xf32>
    %527 = vector.shape_cast %526 : vector<128xf32> to vector<1x128xf32>
    %c0_64 = arith.constant 0 : index
    %c0_65 = arith.constant 0 : index
    %c0_66 = arith.constant 0 : index
    %528 = vector.load %arg10[%c0_64, %c0_65, %c0_66] : memref<1x1x128xf32, #tpu.memory_space<vmem>>, vector<1x1x128xf32>
    %529 = vector.shape_cast %528 : vector<1x1x128xf32> to vector<1x128xf32>
    %530 = vector.shape_cast %527 : vector<1x128xf32> to vector<1x1x128xf32>
    tpu.vector_store %arg10[%c0_64, %c0_65, %c0_66], %530 {strides = array<i32>} : memref<1x1x128xf32, #tpu.memory_space<vmem>>, vector<1x1x128xf32>,
    %cst_67 = arith.constant dense<0.000000e+00> : vector<128xf32>
    %531 = vector.multi_reduction <add>, %24, %cst_67 [0] : vector<16x128xf32> to vector<128xf32>
    %532 = vector.shape_cast %531 : vector<128xf32> to vector<1x128xf32>
    %c0_68 = arith.constant 0 : index
    %c0_69 = arith.constant 0 : index
    %c0_70 = arith.constant 0 : index
    %533 = vector.load %arg11[%c0_68, %c0_69, %c0_70] : memref<1x1x128xf32, #tpu.memory_space<vmem>>, vector<1x1x128xf32>
    %534 = vector.shape_cast %533 : vector<1x1x128xf32> to vector<1x128xf32>
    %535 = vector.shape_cast %532 : vector<1x128xf32> to vector<1x1x128xf32>
    tpu.vector_store %arg11[%c0_68, %c0_69, %c0_70], %535 {strides = array<i32>} : memref<1x1x128xf32, #tpu.memory_space<vmem>>, vector<1x1x128xf32>,
    return
  }
  func.func @transform_0(%arg0: i32) -> (i32, i32) {
    %c0_i32 = arith.constant 0 : i32
    %c0_i32_0 = arith.constant 0 : i32
    return %arg0, %c0_i32 : i32, i32
  }
  func.func @transform_1(%arg0: i32) -> (i32, i32) {
    %c0_i32 = arith.constant 0 : i32
    %c0_i32_0 = arith.constant 0 : i32
    return %arg0, %c0_i32 : i32, i32
  }
  func.func @transform_2(%arg0: i32) -> (i32, i32) {
    %c0_i32 = arith.constant 0 : i32
    %c0_i32_0 = arith.constant 0 : i32
    return %arg0, %c0_i32 : i32, i32
  }
  func.func @transform_3(%arg0: i32) -> (i32, i32) {
    %c0_i32 = arith.constant 0 : i32
    %c0_i32_0 = arith.constant 0 : i32
    %c0_i32_1 = arith.constant 0 : i32
    return %c0_i32, %c0_i32_0 : i32, i32
  }
  func.func @transform_4(%arg0: i32) -> (i32, i32) {
    %c0_i32 = arith.constant 0 : i32
    %c0_i32_0 = arith.constant 0 : i32
    %c0_i32_1 = arith.constant 0 : i32
    return %c0_i32, %c0_i32_0 : i32, i32
  }
  func.func @transform_5(%arg0: i32) -> (i32, i32) {
    %c0_i32 = arith.constant 0 : i32
    %c0_i32_0 = arith.constant 0 : i32
    %c0_i32_1 = arith.constant 0 : i32
    return %c0_i32, %c0_i32_0 : i32, i32
  }
  func.func @transform_6(%arg0: i32) -> (i32, i32) {
    %c0_i32 = arith.constant 0 : i32
    %c0_i32_0 = arith.constant 0 : i32
    %c0_i32_1 = arith.constant 0 : i32
    return %c0_i32, %c0_i32_0 : i32, i32
  }
  func.func @transform_7(%arg0: i32) -> (i32, i32) {
    %c0_i32 = arith.constant 0 : i32
    %c0_i32_0 = arith.constant 0 : i32
    %c0_i32_1 = arith.constant 0 : i32
    return %c0_i32, %c0_i32_0 : i32, i32
  }
  func.func @transform_8(%arg0: i32) -> (i32, i32) {
    %c0_i32 = arith.constant 0 : i32
    %c0_i32_0 = arith.constant 0 : i32
    %c0_i32_1 = arith.constant 0 : i32
    return %c0_i32, %c0_i32_0 : i32, i32
  }
  func.func @transform_9(%arg0: i32) -> (i32, i32, i32) {
    %c0_i32 = arith.constant 0 : i32
    %c0_i32_0 = arith.constant 0 : i32
    %c0_i32_1 = arith.constant 0 : i32
    return %arg0, %c0_i32, %c0_i32_0 : i32, i32, i32
  }
  func.func @transform_10(%arg0: i32) -> (i32, i32, i32) {
    %c0_i32 = arith.constant 0 : i32
    %c0_i32_0 = arith.constant 0 : i32
    %c0_i32_1 = arith.constant 0 : i32
    return %arg0, %c0_i32, %c0_i32_0 : i32, i32, i32
  }
  func.func @transform_11(%arg0: i32) -> (i32, i32, i32) {
    %c0_i32 = arith.constant 0 : i32
    %c0_i32_0 = arith.constant 0 : i32
    %c0_i32_1 = arith.constant 0 : i32
    return %c0_i32, %arg0, %c0_i32_0 : i32, i32, i32
  }
}

</mosaic_0001>

<llo_original>
// kernel: euler_forward.1
$region0: #{euler_forward.1}
  #allocation0 [shape = 'u32[]', space=smem, size = 0x4, offset = 0x4, fixed_abs, tag = 'smem constant byte address 0x4 - core index']
  #allocation1 [shape = 'u32[144,128]{1,0:T(1,128)}', space=vmem, size = 0x12000, scoped, tag = 'internal scratch']
  %s0 = inlined_call_operand.vmem [shape: f32[72,512], index: 0, kind: input, shape index: {}]
  %s1 = inlined_call_operand.vmem [shape: f32[12,1024], index: 1, kind: input, shape index: {}]
  %s2 = inlined_call_operand.vmem [shape: f32[16,128], index: 2, kind: input, shape index: {}]
  %s3 = inlined_call_operand.vmem [shape: f32[512,128], index: 3, kind: input, shape index: {}]
  %s4 = inlined_call_operand.vmem [shape: f32[1,128], index: 4, kind: input, shape index: {}]
  %s5 = inlined_call_operand.vmem [shape: f32[1024,128], index: 5, kind: input, shape index: {}]
  %s6 = inlined_call_operand.vmem [shape: f32[1,128], index: 6, kind: input, shape index: {}]
  %s7 = inlined_call_operand.vmem [shape: f32[128,128], index: 7, kind: input, shape index: {}]
  %s8 = inlined_call_operand.vmem [shape: f32[1,128], index: 8, kind: input, shape index: {}]
  %s9 = inlined_call_operand.vmem [shape: f32[1,1,128], index: 9, kind: output, shape index: {0}]
  %s10 = inlined_call_operand.vmem [shape: f32[1,1,128], index: 10, kind: output, shape index: {1}]
  %s11 = inlined_call_operand.vmem [shape: f32[3,72,12], index: 11, kind: output, shape index: {2}]
  %12 = xla_tuple %s9, %s10, %s11
  %s13 = sld [smem:[#allocation0]]
  $region62: #{euler_forward.1} parent=0
    _
  %s15 = ssub.s32 1, %s13
  %s16 = scalar_select 0, %s15, %s13
  // Predicated region
  $region2: #{euler_forward.1} parent=0 // pred_check
    _
  $region3: #{euler_forward.1} parent=0 // pred_check_branch
    %18 = sbr.rel (0) target = $region5
  $region4: #{euler_forward.1} parent=0 // pred_region
    _
  $region5: #{euler_forward.1} parent=0 // pred_fallthru
    _
  // Predicated region
  $region6: #{euler_forward.1} parent=0 // pred_check
    _
  $region7: #{euler_forward.1} parent=0 // pred_check_branch
    %20 = sbr.rel (0) target = $region9
  $region8: #{euler_forward.1} parent=0 // pred_region
    _
  $region9: #{euler_forward.1} parent=0 // pred_fallthru
    _
  // Predicated region
  $region10: #{euler_forward.1} parent=0 // pred_check
    _
  $region11: #{euler_forward.1} parent=0 // pred_check_branch
    %22 = sbr.rel (0) target = $region13
  $region12: #{euler_forward.1} parent=0 // pred_region
    _
  $region13: #{euler_forward.1} parent=0 // pred_fallthru
    _
  // Predicated region
  $region14: #{euler_forward.1} parent=0 // pred_check
    _
  $region15: #{euler_forward.1} parent=0 // pred_check_branch
    %24 = sbr.rel (0) target = $region17
  $region16: #{euler_forward.1} parent=0 // pred_region
    _
  $region17: #{euler_forward.1} parent=0 // pred_fallthru
    _
  // Predicated region
  $region18: #{euler_forward.1} parent=0 // pred_check
    _
  $region19: #{euler_forward.1} parent=0 // pred_check_branch
    %26 = sbr.rel (0) target = $region21
  $region20: #{euler_forward.1} parent=0 // pred_region
    _
  $region21: #{euler_forward.1} parent=0 // pred_fallthru
    _
  // Predicated region
  $region22: #{euler_forward.1} parent=0 // pred_check
    _
  $region23: #{euler_forward.1} parent=0 // pred_check_branch
    %28 = sbr.rel (0) target = $region25
  $region24: #{euler_forward.1} parent=0 // pred_region
    _
  $region25: #{euler_forward.1} parent=0 // pred_fallthru
    _
  // Predicated region
  $region26: #{euler_forward.1} parent=0 // pred_check
    _
  $region27: #{euler_forward.1} parent=0 // pred_check_branch
    %30 = sbr.rel (0) target = $region29
  $region28: #{euler_forward.1} parent=0 // pred_region
    _
  $region29: #{euler_forward.1} parent=0 // pred_fallthru
    _
  // Predicated region
  $region30: #{euler_forward.1} parent=0 // pred_check
    _
  $region31: #{euler_forward.1} parent=0 // pred_check_branch
    %32 = sbr.rel (0) target = $region33
  $region32: #{euler_forward.1} parent=0 // pred_region
    _
  $region33: #{euler_forward.1} parent=0 // pred_fallthru
    _
  // Predicated region
  $region34: #{euler_forward.1} parent=0 // pred_check
    _
  $region35: #{euler_forward.1} parent=0 // pred_check_branch
    %34 = sbr.rel (0) target = $region37
  $region36: #{euler_forward.1} parent=0 // pred_region
    _
  $region37: #{euler_forward.1} parent=0 // pred_fallthru
    _
  %v36 = vld [vmem:[%s0] sm:$0xff]
  %v37 = vld [vmem:[%s0 + $0x8] sm:$0xff]
  %v38 = vld [vmem:[%s0 + $0x10] sm:$0xff]
  %v39 = vld [vmem:[%s0 + $0x18] sm:$0xff]
  %v40 = vld [vmem:[%s0 + $0x20] sm:$0xff]
  %v41 = vld [vmem:[%s0 + $0x28] sm:$0xff]
  %v42 = vld [vmem:[%s0 + $0x30] sm:$0xff]
  %v43 = vld [vmem:[%s0 + $0x38] sm:$0xff]
  %v44 = vld [vmem:[%s0 + $0x40] sm:$0xff]
  %v45 = vld [vmem:[%s0 + $0x48] sm:$0xff]
  %v46 = vld [vmem:[%s0 + $0x50] sm:$0xff]
  %v47 = vld [vmem:[%s0 + $0x58] sm:$0xff]
  %v48 = vld [vmem:[%s0 + $0x60] sm:$0xff]
  %v49 = vld [vmem:[%s0 + $0x68] sm:$0xff]
  %v50 = vld [vmem:[%s0 + $0x70] sm:$0xff]
  %v51 = vld [vmem:[%s0 + $0x78] sm:$0xff]
  %v52 = vld [vmem:[%s0 + $0x80] sm:$0xff]
  %v53 = vld [vmem:[%s0 + $0x88] sm:$0xff]
  %v54 = vld [vmem:[%s0 + $0x90] sm:$0xff]
  %v55 = vld [vmem:[%s0 + $0x98] sm:$0xff]
  %v56 = vld [vmem:[%s0 + $0xa0] sm:$0xff]
  %v57 = vld [vmem:[%s0 + $0xa8] sm:$0xff]
  %v58 = vld [vmem:[%s0 + $0xb0] sm:$0xff]
  %v59 = vld [vmem:[%s0 + $0xb8] sm:$0xff]
  %v60 = vld [vmem:[%s0 + $0xc0] sm:$0xff]
  %v61 = vld [vmem:[%s0 + $0xc8] sm:$0xff]
  %v62 = vld [vmem:[%s0 + $0xd0] sm:$0xff]
  %v63 = vld [vmem:[%s0 + $0xd8] sm:$0xff]
  %v64 = vld [vmem:[%s0 + $0xe0] sm:$0xff]
  %v65 = vld [vmem:[%s0 + $0xe8] sm:$0xff]
  %v66 = vld [vmem:[%s0 + $0xf0] sm:$0xff]
  %v67 = vld [vmem:[%s0 + $0xf8] sm:$0xff]
  %v68 = vld [vmem:[%s0 + $0x100] sm:$0xff]
  %v69 = vld [vmem:[%s0 + $0x108] sm:$0xff]
  %v70 = vld [vmem:[%s0 + $0x110] sm:$0xff]
  %v71 = vld [vmem:[%s0 + $0x118] sm:$0xff]
  %v72 = vpack.c.bf16 %v40, %v36
  %v73 = vpack.c.bf16 %v41, %v37
  %v74 = vpack.c.bf16 %v42, %v38
  %v75 = vpack.c.bf16 %v43, %v39
  %v76 = vpack.c.bf16 %v48, %v44
  %v77 = vpack.c.bf16 %v49, %v45
  %v78 = vpack.c.bf16 %v50, %v46
  %v79 = vpack.c.bf16 %v51, %v47
  %v80 = vpack.c.bf16 %v56, %v52
  %v81 = vpack.c.bf16 %v57, %v53
  %v82 = vpack.c.bf16 %v58, %v54
  %v83 = vpack.c.bf16 %v59, %v55
  %v84 = vpack.c.bf16 %v64, %v60
  %v85 = vpack.c.bf16 %v65, %v61
  %v86 = vpack.c.bf16 %v66, %v62
  %v87 = vpack.c.bf16 %v67, %v63
  %v88 = vpack.c.bf16 %v68, %v68
  %v89 = vpack.c.bf16 %v69, %v69
  %v90 = vpack.c.bf16 %v70, %v70
  %v91 = vpack.c.bf16 %v71, %v71
  %v92 = vld [vmem:[%s3] sm:$0xff]
  %v93 = vld [vmem:[%s3 + $0x8] sm:$0xff]
  %v94 = vld [vmem:[%s3 + $0x10] sm:$0xff]
  %v95 = vld [vmem:[%s3 + $0x18] sm:$0xff]
  %v96 = vld [vmem:[%s3 + $0x20] sm:$0xff]
  %v97 = vld [vmem:[%s3 + $0x28] sm:$0xff]
  %v98 = vld [vmem:[%s3 + $0x30] sm:$0xff]
  %v99 = vld [vmem:[%s3 + $0x38] sm:$0xff]
  %v100 = vld [vmem:[%s3 + $0x40] sm:$0xff]
  %v101 = vld [vmem:[%s3 + $0x48] sm:$0xff]
  %v102 = vld [vmem:[%s3 + $0x50] sm:$0xff]
  %v103 = vld [vmem:[%s3 + $0x58] sm:$0xff]
  %v104 = vld [vmem:[%s3 + $0x60] sm:$0xff]
  %v105 = vld [vmem:[%s3 + $0x68] sm:$0xff]
  %v106 = vld [vmem:[%s3 + $0x70] sm:$0xff]
  %v107 = vld [vmem:[%s3 + $0x78] sm:$0xff]
  %v108 = vld [vmem:[%s3 + $0x80] sm:$0xff]
  %v109 = vld [vmem:[%s3 + $0x88] sm:$0xff]
  %v110 = vld [vmem:[%s3 + $0x90] sm:$0xff]
  %v111 = vld [vmem:[%s3 + $0x98] sm:$0xff]
  %v112 = vld [vmem:[%s3 + $0xa0] sm:$0xff]
  %v113 = vld [vmem:[%s3 + $0xa8] sm:$0xff]
  %v114 = vld [vmem:[%s3 + $0xb0] sm:$0xff]
  %v115 = vld [vmem:[%s3 + $0xb8] sm:$0xff]
  %v116 = vld [vmem:[%s3 + $0xc0] sm:$0xff]
  %v117 = vld [vmem:[%s3 + $0xc8] sm:$0xff]
  %v118 = vld [vmem:[%s3 + $0xd0] sm:$0xff]
  %v119 = vld [vmem:[%s3 + $0xd8] sm:$0xff]
  %v120 = vld [vmem:[%s3 + $0xe0] sm:$0xff]
  %v121 = vld [vmem:[%s3 + $0xe8] sm:$0xff]
  %v122 = vld [vmem:[%s3 + $0xf0] sm:$0xff]
  %v123 = vld [vmem:[%s3 + $0xf8] sm:$0xff]
  %v124 = vld [vmem:[%s3 + $0x100] sm:$0xff]
  %v125 = vld [vmem:[%s3 + $0x108] sm:$0xff]
  %v126 = vld [vmem:[%s3 + $0x110] sm:$0xff]
  %v127 = vld [vmem:[%s3 + $0x118] sm:$0xff]
  %v128 = vld [vmem:[%s3 + $0x120] sm:$0xff]
  %v129 = vld [vmem:[%s3 + $0x128] sm:$0xff]
  %v130 = vld [vmem:[%s3 + $0x130] sm:$0xff]
  %v131 = vld [vmem:[%s3 + $0x138] sm:$0xff]
  %v132 = vld [vmem:[%s3 + $0x140] sm:$0xff]
  %v133 = vld [vmem:[%s3 + $0x148] sm:$0xff]
  %v134 = vld [vmem:[%s3 + $0x150] sm:$0xff]
  %v135 = vld [vmem:[%s3 + $0x158] sm:$0xff]
  %v136 = vld [vmem:[%s3 + $0x160] sm:$0xff]
  %v137 = vld [vmem:[%s3 + $0x168] sm:$0xff]
  %v138 = vld [vmem:[%s3 + $0x170] sm:$0xff]
  %v139 = vld [vmem:[%s3 + $0x178] sm:$0xff]
  %v140 = vld [vmem:[%s3 + $0x180] sm:$0xff]
  %v141 = vld [vmem:[%s3 + $0x188] sm:$0xff]
  %v142 = vld [vmem:[%s3 + $0x190] sm:$0xff]
  %v143 = vld [vmem:[%s3 + $0x198] sm:$0xff]
  %v144 = vld [vmem:[%s3 + $0x1a0] sm:$0xff]
  %v145 = vld [vmem:[%s3 + $0x1a8] sm:$0xff]
  %v146 = vld [vmem:[%s3 + $0x1b0] sm:$0xff]
  %v147 = vld [vmem:[%s3 + $0x1b8] sm:$0xff]
  %v148 = vld [vmem:[%s3 + $0x1c0] sm:$0xff]
  %v149 = vld [vmem:[%s3 + $0x1c8] sm:$0xff]
  %v150 = vld [vmem:[%s3 + $0x1d0] sm:$0xff]
  %v151 = vld [vmem:[%s3 + $0x1d8] sm:$0xff]
  %v152 = vld [vmem:[%s3 + $0x1e0] sm:$0xff]
  %v153 = vld [vmem:[%s3 + $0x1e8] sm:$0xff]
  %v154 = vld [vmem:[%s3 + $0x1f0] sm:$0xff]
  %v155 = vld [vmem:[%s3 + $0x1f8] sm:$0xff]
  %v156 = vpack.c.bf16 %v93, %v92
  %v157 = vpack.c.bf16 %v95, %v94
  %v158 = vpack.c.bf16 %v97, %v96
  %v159 = vpack.c.bf16 %v99, %v98
  %v160 = vpack.c.bf16 %v101, %v100
  %v161 = vpack.c.bf16 %v103, %v102
  %v162 = vpack.c.bf16 %v105, %v104
  %v163 = vpack.c.bf16 %v107, %v106
  %v164 = vpack.c.bf16 %v109, %v108
  %v165 = vpack.c.bf16 %v111, %v110
  %v166 = vpack.c.bf16 %v113, %v112
  %v167 = vpack.c.bf16 %v115, %v114
  %v168 = vpack.c.bf16 %v117, %v116
  %v169 = vpack.c.bf16 %v119, %v118
  %v170 = vpack.c.bf16 %v121, %v120
  %v171 = vpack.c.bf16 %v123, %v122
  %v172 = vpack.c.bf16 %v125, %v124
  %v173 = vpack.c.bf16 %v127, %v126
  %v174 = vpack.c.bf16 %v129, %v128
  %v175 = vpack.c.bf16 %v131, %v130
  %v176 = vpack.c.bf16 %v133, %v132
  %v177 = vpack.c.bf16 %v135, %v134
  %v178 = vpack.c.bf16 %v137, %v136
  %v179 = vpack.c.bf16 %v139, %v138
  %v180 = vpack.c.bf16 %v141, %v140
  %v181 = vpack.c.bf16 %v143, %v142
  %v182 = vpack.c.bf16 %v145, %v144
  %v183 = vpack.c.bf16 %v147, %v146
  %v184 = vpack.c.bf16 %v149, %v148
  %v185 = vpack.c.bf16 %v151, %v150
  %v186 = vpack.c.bf16 %v153, %v152
  %v187 = vpack.c.bf16 %v155, %v154
  %v188 = vld [vmem:[%s4] sm:$0x1]
  %v190 = vlaneseq
  %v191 = vshrl.u32 %v190, 7
  %v192 = vsub.s32 0, %v191
  %v193 = vrot.slane %v188, %v192
  %195 = vmatprep.subr.bf16.mxu0 0
  %196 = vmatpush1.bf16.msra.mxu0 %v163
  %197 = vmatprep.subr.bf16.mxu0 0
  %198 = vmatpush1.bf16.msra.mxu0 %v162
  %199 = vmatprep.subr.bf16.mxu0 0
  %200 = vmatpush1.bf16.msra.mxu0 %v161
  %201 = vmatprep.subr.bf16.mxu0 0
  %202 = vmatpush1.bf16.msra.mxu0 %v160
  %203 = vmatprep.subr.bf16.mxu0 0
  %204 = vmatpush1.bf16.msra.mxu0 %v159
  %205 = vmatprep.subr.bf16.mxu0 0
  %206 = vmatpush1.bf16.msra.mxu0 %v158
  %207 = vmatprep.subr.bf16.mxu0 0
  %208 = vmatpush1.bf16.msra.mxu0 %v157
  %209 = vmatprep.subr.bf16.mxu0 0
  %210 = vmatpush1.bf16.msra.mxu0 %v156
  %211 = vmatprep.subr.bf16.mxu0 0
  %212 = vmatpush2.bf16.msra.mxu0 %v171
  %213 = vmatprep.subr.bf16.mxu0 0
  %214 = vmatpush2.bf16.msra.mxu0 %v170
  %215 = vmatprep.subr.bf16.mxu0 0
  %216 = vmatpush2.bf16.msra.mxu0 %v169
  %217 = vmatprep.subr.bf16.mxu0 0
  %218 = vmatpush2.bf16.msra.mxu0 %v168
  %219 = vmatprep.subr.bf16.mxu0 0
  %220 = vmatpush2.bf16.msra.mxu0 %v167
  %221 = vmatprep.subr.bf16.mxu0 0
  %222 = vmatpush2.bf16.msra.mxu0 %v166
  %223 = vmatprep.subr.bf16.mxu0 0
  %224 = vmatpush2.bf16.msra.mxu0 %v165
  %225 = vmatprep.subr.bf16.mxu0 0
  %226 = vmatpush2.bf16.msra.mxu0 %v164
  %227 = vmatprep.mubr.bf16.mxu0 %v73
  %228 = vmatmul.mubr.bf16.gmra.mxu0 %v72
  %v229 = vpop.f32.mrf.mxu0
  %v230 = vadd.f32 %v193, %v229
  %v231 = vpop.f32.mrf.mxu0
  %v232 = vpop.f32.mrf.mxu0
  %v233 = vadd.f32 %v193, %v232
  %v234 = vpop.f32.mrf.mxu0
  %235 = vmatprep.mubr.bf16.mxu0 %v77
  %236 = vmatmul.mubr.bf16.gmra.mxu0 %v76
  %v237 = vpop.f32.mrf.mxu0
  %v238 = vadd.f32 %v193, %v237
  %v239 = vpop.f32.mrf.mxu0
  %v240 = vpop.f32.mrf.mxu0
  %v241 = vadd.f32 %v193, %v240
  %v242 = vpop.f32.mrf.mxu0
  %243 = vmatprep.mubr.bf16.mxu0 %v81
  %244 = vmatmul.mubr.bf16.gmra.mxu0 %v80
  %v245 = vpop.f32.mrf.mxu0
  %v246 = vadd.f32 %v193, %v245
  %v247 = vpop.f32.mrf.mxu0
  %v248 = vpop.f32.mrf.mxu0
  %v249 = vadd.f32 %v193, %v248
  %v250 = vpop.f32.mrf.mxu0
  %251 = vmatprep.mubr.bf16.mxu0 %v85
  %252 = vmatmul.mubr.bf16.gmra.mxu0 %v84
  %v253 = vpop.f32.mrf.mxu0
  %v254 = vadd.f32 %v193, %v253
  %v255 = vpop.f32.mrf.mxu0
  %v256 = vpop.f32.mrf.mxu0
  %v257 = vadd.f32 %v193, %v256
  %v258 = vpop.f32.mrf.mxu0
  %259 = vmatprep.mubr.bf16.mxu0 %v89
  %260 = vmatmul.mubr.bf16.gmra.mxu0 %v88
  %v261 = vpop.f32.mrf.mxu0
  %v262 = vadd.f32 %v193, %v261
  %v263 = vpop.f32.mrf.mxu0
  %v264 = vpop.f32.mrf.mxu0
  %v265 = vpop.f32.mrf.mxu0
  %266 = vdwg.mxu0
  %267 = vmatprep.subr.bf16.mxu0 0
  %268 = vmatpush1.bf16.msra.mxu0 %v179
  %269 = vmatprep.subr.bf16.mxu0 0
  %270 = vmatpush1.bf16.msra.mxu0 %v178
  %271 = vmatprep.subr.bf16.mxu0 0
  %272 = vmatpush1.bf16.msra.mxu0 %v177
  %273 = vmatprep.subr.bf16.mxu0 0
  %274 = vmatpush1.bf16.msra.mxu0 %v176
  %275 = vmatprep.subr.bf16.mxu0 0
  %276 = vmatpush1.bf16.msra.mxu0 %v175
  %277 = vmatprep.subr.bf16.mxu0 0
  %278 = vmatpush1.bf16.msra.mxu0 %v174
  %279 = vmatprep.subr.bf16.mxu0 0
  %280 = vmatpush1.bf16.msra.mxu0 %v173
  %281 = vmatprep.subr.bf16.mxu0 0
  %282 = vmatpush1.bf16.msra.mxu0 %v172
  %283 = vmatprep.subr.bf16.mxu0 0
  %284 = vmatpush2.bf16.msra.mxu0 %v187
  %285 = vmatprep.subr.bf16.mxu0 0
  %286 = vmatpush2.bf16.msra.mxu0 %v186
  %287 = vmatprep.subr.bf16.mxu0 0
  %288 = vmatpush2.bf16.msra.mxu0 %v185
  %289 = vmatprep.subr.bf16.mxu0 0
  %290 = vmatpush2.bf16.msra.mxu0 %v184
  %291 = vmatprep.subr.bf16.mxu0 0
  %292 = vmatpush2.bf16.msra.mxu0 %v183
  %293 = vmatprep.subr.bf16.mxu0 0
  %294 = vmatpush2.bf16.msra.mxu0 %v182
  %295 = vmatprep.subr.bf16.mxu0 0
  %296 = vmatpush2.bf16.msra.mxu0 %v181
  %297 = vmatprep.subr.bf16.mxu0 0
  %298 = vmatpush2.bf16.msra.mxu0 %v180
  %299 = vmatprep.mubr.bf16.mxu0 %v75
  %300 = vmatmul.mubr.bf16.gmra.mxu0 %v74
  %v301 = vpop.f32.mrf.mxu0
  %v302 = vadd.f32 %v230, %v301
  %v303 = vpop.f32.mrf.mxu0
  %v304 = vpop.f32.mrf.mxu0
  %v305 = vadd.f32 %v233, %v304
  %v306 = vpop.f32.mrf.mxu0
  %307 = vmatprep.mubr.bf16.mxu0 %v79
  %308 = vmatmul.mubr.bf16.gmra.mxu0 %v78
  %v309 = vpop.f32.mrf.mxu0
  %v310 = vadd.f32 %v238, %v309
  %v311 = vpop.f32.mrf.mxu0
  %v312 = vpop.f32.mrf.mxu0
  %v313 = vadd.f32 %v241, %v312
  %v314 = vpop.f32.mrf.mxu0
  %315 = vmatprep.mubr.bf16.mxu0 %v83
  %316 = vmatmul.mubr.bf16.gmra.mxu0 %v82
  %v317 = vpop.f32.mrf.mxu0
  %v318 = vadd.f32 %v246, %v317
  %v319 = vpop.f32.mrf.mxu0
  %v320 = vpop.f32.mrf.mxu0
  %v321 = vadd.f32 %v249, %v320
  %v322 = vpop.f32.mrf.mxu0
  %323 = vmatprep.mubr.bf16.mxu0 %v87
  %324 = vmatmul.mubr.bf16.gmra.mxu0 %v86
  %v325 = vpop.f32.mrf.mxu0
  %v326 = vadd.f32 %v254, %v325
  %v327 = vpop.f32.mrf.mxu0
  %v328 = vpop.f32.mrf.mxu0
  %v329 = vadd.f32 %v257, %v328
  %v330 = vpop.f32.mrf.mxu0
  %331 = vmatprep.mubr.bf16.mxu0 %v91
  %332 = vmatmul.mubr.bf16.gmra.mxu0 %v90
  %v333 = vpop.f32.mrf.mxu0
  %v334 = vadd.f32 %v262, %v333
  %v335 = vpop.f32.mrf.mxu0
  %v336 = vpop.f32.mrf.mxu0
  %v337 = vpop.f32.mrf.mxu0
  %338 = vdwg.mxu0
  %v339 = vld [vmem:[%s1] sm:$0xff]
  %v340 = vld [vmem:[%s1 + $0x8] sm:$0xff]
  %v341 = vld [vmem:[%s1 + $0x10] sm:$0xff]
  %v342 = vld [vmem:[%s1 + $0x18] sm:$0xff]
  %v343 = vld [vmem:[%s1 + $0x20] sm:$0xff]
  %v344 = vld [vmem:[%s1 + $0x28] sm:$0xff]
  %v345 = vld [vmem:[%s1 + $0x30] sm:$0xff]
  %v346 = vld [vmem:[%s1 + $0x38] sm:$0xff]
  %v347 = vld [vmem:[%s1 + $0x40] sm:$0xf]
  %v348 = vld [vmem:[%s1 + $0x48] sm:$0xf]
  %v349 = vld [vmem:[%s1 + $0x50] sm:$0xf]
  %v350 = vld [vmem:[%s1 + $0x58] sm:$0xf]
  %v351 = vld [vmem:[%s1 + $0x60] sm:$0xf]
  %v352 = vld [vmem:[%s1 + $0x68] sm:$0xf]
  %v353 = vld [vmem:[%s1 + $0x70] sm:$0xf]
  %v354 = vld [vmem:[%s1 + $0x78] sm:$0xf]
  %v355 = vpack.c.bf16 %v347, %v339
  %v356 = vpack.c.bf16 %v348, %v340
  %v357 = vpack.c.bf16 %v349, %v341
  %v358 = vpack.c.bf16 %v350, %v342
  %v359 = vpack.c.bf16 %v351, %v343
  %v360 = vpack.c.bf16 %v352, %v344
  %v361 = vpack.c.bf16 %v353, %v345
  %v362 = vpack.c.bf16 %v354, %v346
  %v363 = vld [vmem:[%s5] sm:$0xff]
  %v364 = vld [vmem:[%s5 + $0x8] sm:$0xff]
  %v365 = vld [vmem:[%s5 + $0x10] sm:$0xff]
  %v366 = vld [vmem:[%s5 + $0x18] sm:$0xff]
  %v367 = vld [vmem:[%s5 + $0x20] sm:$0xff]
  %v368 = vld [vmem:[%s5 + $0x28] sm:$0xff]
  %v369 = vld [vmem:[%s5 + $0x30] sm:$0xff]
  %v370 = vld [vmem:[%s5 + $0x38] sm:$0xff]
  %v371 = vld [vmem:[%s5 + $0x40] sm:$0xff]
  %v372 = vld [vmem:[%s5 + $0x48] sm:$0xff]
  %v373 = vld [vmem:[%s5 + $0x50] sm:$0xff]
  %v374 = vld [vmem:[%s5 + $0x58] sm:$0xff]
  %v375 = vld [vmem:[%s5 + $0x60] sm:$0xff]
  %v376 = vld [vmem:[%s5 + $0x68] sm:$0xff]
  %v377 = vld [vmem:[%s5 + $0x70] sm:$0xff]
  %v378 = vld [vmem:[%s5 + $0x78] sm:$0xff]
  %v379 = vld [vmem:[%s5 + $0x80] sm:$0xff]
  %v380 = vld [vmem:[%s5 + $0x88] sm:$0xff]
  %v381 = vld [vmem:[%s5 + $0x90] sm:$0xff]
  %v382 = vld [vmem:[%s5 + $0x98] sm:$0xff]
  %v383 = vld [vmem:[%s5 + $0xa0] sm:$0xff]
  %v384 = vld [vmem:[%s5 + $0xa8] sm:$0xff]
  %v385 = vld [vmem:[%s5 + $0xb0] sm:$0xff]
  %v386 = vld [vmem:[%s5 + $0xb8] sm:$0xff]
  %v387 = vld [vmem:[%s5 + $0xc0] sm:$0xff]
  %v388 = vld [vmem:[%s5 + $0xc8] sm:$0xff]
  %v389 = vld [vmem:[%s5 + $0xd0] sm:$0xff]
  %v390 = vld [vmem:[%s5 + $0xd8] sm:$0xff]
  %v391 = vld [vmem:[%s5 + $0xe0] sm:$0xff]
  %v392 = vld [vmem:[%s5 + $0xe8] sm:$0xff]
  %v393 = vld [vmem:[%s5 + $0xf0] sm:$0xff]
  %v394 = vld [vmem:[%s5 + $0xf8] sm:$0xff]
  %v395 = vld [vmem:[%s5 + $0x100] sm:$0xff]
  %v396 = vld [vmem:[%s5 + $0x108] sm:$0xff]
  %v397 = vld [vmem:[%s5 + $0x110] sm:$0xff]
  %v398 = vld [vmem:[%s5 + $0x118] sm:$0xff]
  %v399 = vld [vmem:[%s5 + $0x120] sm:$0xff]
  %v400 = vld [vmem:[%s5 + $0x128] sm:$0xff]
  %v401 = vld [vmem:[%s5 + $0x130] sm:$0xff]
  %v402 = vld [vmem:[%s5 + $0x138] sm:$0xff]
  %v403 = vld [vmem:[%s5 + $0x140] sm:$0xff]
  %v404 = vld [vmem:[%s5 + $0x148] sm:$0xff]
  %v405 = vld [vmem:[%s5 + $0x150] sm:$0xff]
  %v406 = vld [vmem:[%s5 + $0x158] sm:$0xff]
  %v407 = vld [vmem:[%s5 + $0x160] sm:$0xff]
  %v408 = vld [vmem:[%s5 + $0x168] sm:$0xff]
  %v409 = vld [vmem:[%s5 + $0x170] sm:$0xff]
  %v410 = vld [vmem:[%s5 + $0x178] sm:$0xff]
  %v411 = vld [vmem:[%s5 + $0x180] sm:$0xff]
  %v412 = vld [vmem:[%s5 + $0x188] sm:$0xff]
  %v413 = vld [vmem:[%s5 + $0x190] sm:$0xff]
  %v414 = vld [vmem:[%s5 + $0x198] sm:$0xff]
  %v415 = vld [vmem:[%s5 + $0x1a0] sm:$0xff]
  %v416 = vld [vmem:[%s5 + $0x1a8] sm:$0xff]
  %v417 = vld [vmem:[%s5 + $0x1b0] sm:$0xff]
  %v418 = vld [vmem:[%s5 + $0x1b8] sm:$0xff]
  %v419 = vld [vmem:[%s5 + $0x1c0] sm:$0xff]
  %v420 = vld [vmem:[%s5 + $0x1c8] sm:$0xff]
  %v421 = vld [vmem:[%s5 + $0x1d0] sm:$0xff]
  %v422 = vld [vmem:[%s5 + $0x1d8] sm:$0xff]
  %v423 = vld [vmem:[%s5 + $0x1e0] sm:$0xff]
  %v424 = vld [vmem:[%s5 + $0x1e8] sm:$0xff]
  %v425 = vld [vmem:[%s5 + $0x1f0] sm:$0xff]
  %v426 = vld [vmem:[%s5 + $0x1f8] sm:$0xff]
  %v427 = vld [vmem:[%s5 + $0x200] sm:$0xff]
  %v428 = vld [vmem:[%s5 + $0x208] sm:$0xff]
  %v429 = vld [vmem:[%s5 + $0x210] sm:$0xff]
  %v430 = vld [vmem:[%s5 + $0x218] sm:$0xff]
  %v431 = vld [vmem:[%s5 + $0x220] sm:$0xff]
  %v432 = vld [vmem:[%s5 + $0x228] sm:$0xff]
  %v433 = vld [vmem:[%s5 + $0x230] sm:$0xff]
  %v434 = vld [vmem:[%s5 + $0x238] sm:$0xff]
  %v435 = vld [vmem:[%s5 + $0x240] sm:$0xff]
  %v436 = vld [vmem:[%s5 + $0x248] sm:$0xff]
  %v437 = vld [vmem:[%s5 + $0x250] sm:$0xff]
  %v438 = vld [vmem:[%s5 + $0x258] sm:$0xff]
  %v439 = vld [vmem:[%s5 + $0x260] sm:$0xff]
  %v440 = vld [vmem:[%s5 + $0x268] sm:$0xff]
  %v441 = vld [vmem:[%s5 + $0x270] sm:$0xff]
  %v442 = vld [vmem:[%s5 + $0x278] sm:$0xff]
  %v443 = vld [vmem:[%s5 + $0x280] sm:$0xff]
  %v444 = vld [vmem:[%s5 + $0x288] sm:$0xff]
  %v445 = vld [vmem:[%s5 + $0x290] sm:$0xff]
  %v446 = vld [vmem:[%s5 + $0x298] sm:$0xff]
  %v447 = vld [vmem:[%s5 + $0x2a0] sm:$0xff]
  %v448 = vld [vmem:[%s5 + $0x2a8] sm:$0xff]
  %v449 = vld [vmem:[%s5 + $0x2b0] sm:$0xff]
  %v450 = vld [vmem:[%s5 + $0x2b8] sm:$0xff]
  %v451 = vld [vmem:[%s5 + $0x2c0] sm:$0xff]
  %v452 = vld [vmem:[%s5 + $0x2c8] sm:$0xff]
  %v453 = vld [vmem:[%s5 + $0x2d0] sm:$0xff]
  %v454 = vld [vmem:[%s5 + $0x2d8] sm:$0xff]
  %v455 = vld [vmem:[%s5 + $0x2e0] sm:$0xff]
  %v456 = vld [vmem:[%s5 + $0x2e8] sm:$0xff]
  %v457 = vld [vmem:[%s5 + $0x2f0] sm:$0xff]
  %v458 = vld [vmem:[%s5 + $0x2f8] sm:$0xff]
  %v459 = vld [vmem:[%s5 + $0x300] sm:$0xff]
  %v460 = vld [vmem:[%s5 + $0x308] sm:$0xff]
  %v461 = vld [vmem:[%s5 + $0x310] sm:$0xff]
  %v462 = vld [vmem:[%s5 + $0x318] sm:$0xff]
  %v463 = vld [vmem:[%s5 + $0x320] sm:$0xff]
  %v464 = vld [vmem:[%s5 + $0x328] sm:$0xff]
  %v465 = vld [vmem:[%s5 + $0x330] sm:$0xff]
  %v466 = vld [vmem:[%s5 + $0x338] sm:$0xff]
  %v467 = vld [vmem:[%s5 + $0x340] sm:$0xff]
  %v468 = vld [vmem:[%s5 + $0x348] sm:$0xff]
  %v469 = vld [vmem:[%s5 + $0x350] sm:$0xff]
  %v470 = vld [vmem:[%s5 + $0x358] sm:$0xff]
  %v471 = vld [vmem:[%s5 + $0x360] sm:$0xff]
  %v472 = vld [vmem:[%s5 + $0x368] sm:$0xff]
  %v473 = vld [vmem:[%s5 + $0x370] sm:$0xff]
  %v474 = vld [vmem:[%s5 + $0x378] sm:$0xff]
  %v475 = vld [vmem:[%s5 + $0x380] sm:$0xff]
  %v476 = vld [vmem:[%s5 + $0x388] sm:$0xff]
  %v477 = vld [vmem:[%s5 + $0x390] sm:$0xff]
  %v478 = vld [vmem:[%s5 + $0x398] sm:$0xff]
  %v479 = vld [vmem:[%s5 + $0x3a0] sm:$0xff]
  %v480 = vld [vmem:[%s5 + $0x3a8] sm:$0xff]
  %v481 = vld [vmem:[%s5 + $0x3b0] sm:$0xff]
  %v482 = vld [vmem:[%s5 + $0x3b8] sm:$0xff]
  %v483 = vld [vmem:[%s5 + $0x3c0] sm:$0xff]
  %v484 = vld [vmem:[%s5 + $0x3c8] sm:$0xff]
  %v485 = vld [vmem:[%s5 + $0x3d0] sm:$0xff]
  %v486 = vld [vmem:[%s5 + $0x3d8] sm:$0xff]
  %v487 = vld [vmem:[%s5 + $0x3e0] sm:$0xff]
  %v488 = vld [vmem:[%s5 + $0x3e8] sm:$0xff]
  %v489 = vld [vmem:[%s5 + $0x3f0] sm:$0xff]
  %v490 = vld [vmem:[%s5 + $0x3f8] sm:$0xff]
  %v491 = vpack.c.bf16 %v364, %v363
  %v492 = vpack.c.bf16 %v366, %v365
  %v493 = vpack.c.bf16 %v368, %v367
  %v494 = vpack.c.bf16 %v370, %v369
  %v495 = vpack.c.bf16 %v372, %v371
  %v496 = vpack.c.bf16 %v374, %v373
  %v497 = vpack.c.bf16 %v376, %v375
  %v498 = vpack.c.bf16 %v378, %v377
  %v499 = vpack.c.bf16 %v380, %v379
  %v500 = vpack.c.bf16 %v382, %v381
  %v501 = vpack.c.bf16 %v384, %v383
  %v502 = vpack.c.bf16 %v386, %v385
  %v503 = vpack.c.bf16 %v388, %v387
  %v504 = vpack.c.bf16 %v390, %v389
  %v505 = vpack.c.bf16 %v392, %v391
  %v506 = vpack.c.bf16 %v394, %v393
  %v507 = vpack.c.bf16 %v396, %v395
  %v508 = vpack.c.bf16 %v398, %v397
  %v509 = vpack.c.bf16 %v400, %v399
  %v510 = vpack.c.bf16 %v402, %v401
  %v511 = vpack.c.bf16 %v404, %v403
  %v512 = vpack.c.bf16 %v406, %v405
  %v513 = vpack.c.bf16 %v408, %v407
  %v514 = vpack.c.bf16 %v410, %v409
  %v515 = vpack.c.bf16 %v412, %v411
  %v516 = vpack.c.bf16 %v414, %v413
  %v517 = vpack.c.bf16 %v416, %v415
  %v518 = vpack.c.bf16 %v418, %v417
  %v519 = vpack.c.bf16 %v420, %v419
  %v520 = vpack.c.bf16 %v422, %v421
  %v521 = vpack.c.bf16 %v424, %v423
  %v522 = vpack.c.bf16 %v426, %v425
  %v523 = vpack.c.bf16 %v428, %v427
  %v524 = vpack.c.bf16 %v430, %v429
  %v525 = vpack.c.bf16 %v432, %v431
  %v526 = vpack.c.bf16 %v434, %v433
  %v527 = vpack.c.bf16 %v436, %v435
  %v528 = vpack.c.bf16 %v438, %v437
  %v529 = vpack.c.bf16 %v440, %v439
  %v530 = vpack.c.bf16 %v442, %v441
  %v531 = vpack.c.bf16 %v444, %v443
  %v532 = vpack.c.bf16 %v446, %v445
  %v533 = vpack.c.bf16 %v448, %v447
  %v534 = vpack.c.bf16 %v450, %v449
  %v535 = vpack.c.bf16 %v452, %v451
  %v536 = vpack.c.bf16 %v454, %v453
  %v537 = vpack.c.bf16 %v456, %v455
  %v538 = vpack.c.bf16 %v458, %v457
  %v539 = vpack.c.bf16 %v460, %v459
  %v540 = vpack.c.bf16 %v462, %v461
  %v541 = vpack.c.bf16 %v464, %v463
  %v542 = vpack.c.bf16 %v466, %v465
  %v543 = vpack.c.bf16 %v468, %v467
  %v544 = vpack.c.bf16 %v470, %v469
  %v545 = vpack.c.bf16 %v472, %v471
  %v546 = vpack.c.bf16 %v474, %v473
  %v547 = vpack.c.bf16 %v476, %v475
  %v548 = vpack.c.bf16 %v478, %v477
  %v549 = vpack.c.bf16 %v480, %v479
  %v550 = vpack.c.bf16 %v482, %v481
  %v551 = vpack.c.bf16 %v484, %v483
  %v552 = vpack.c.bf16 %v486, %v485
  %v553 = vpack.c.bf16 %v488, %v487
  %v554 = vpack.c.bf16 %v490, %v489
  %v555 = vld [vmem:[%s6] sm:$0x1]
  %v557 = vlaneseq
  %v558 = vshrl.u32 %v557, 7
  %v559 = vsub.s32 0, %v558
  %v560 = vrot.slane %v555, %v559
  %562 = vmatprep.subr.bf16.mxu0 0
  %563 = vmatpush1.bf16.msra.mxu0 %v498
  %564 = vmatprep.subr.bf16.mxu0 0
  %565 = vmatpush1.bf16.msra.mxu0 %v497
  %566 = vmatprep.subr.bf16.mxu0 0
  %567 = vmatpush1.bf16.msra.mxu0 %v496
  %568 = vmatprep.subr.bf16.mxu0 0
  %569 = vmatpush1.bf16.msra.mxu0 %v495
  %570 = vmatprep.subr.bf16.mxu0 0
  %571 = vmatpush1.bf16.msra.mxu0 %v494
  %572 = vmatprep.subr.bf16.mxu0 0
  %573 = vmatpush1.bf16.msra.mxu0 %v493
  %574 = vmatprep.subr.bf16.mxu0 0
  %575 = vmatpush1.bf16.msra.mxu0 %v492
  %576 = vmatprep.subr.bf16.mxu0 0
  %577 = vmatpush1.bf16.msra.mxu0 %v491
  %578 = vmatprep.subr.bf16.mxu0 0
  %579 = vmatpush2.bf16.msra.mxu0 %v506
  %580 = vmatprep.subr.bf16.mxu0 0
  %581 = vmatpush2.bf16.msra.mxu0 %v505
  %582 = vmatprep.subr.bf16.mxu0 0
  %583 = vmatpush2.bf16.msra.mxu0 %v504
  %584 = vmatprep.subr.bf16.mxu0 0
  %585 = vmatpush2.bf16.msra.mxu0 %v503
  %586 = vmatprep.subr.bf16.mxu0 0
  %587 = vmatpush2.bf16.msra.mxu0 %v502
  %588 = vmatprep.subr.bf16.mxu0 0
  %589 = vmatpush2.bf16.msra.mxu0 %v501
  %590 = vmatprep.subr.bf16.mxu0 0
  %591 = vmatpush2.bf16.msra.mxu0 %v500
  %592 = vmatprep.subr.bf16.mxu0 0
  %593 = vmatpush2.bf16.msra.mxu0 %v499
  %594 = vmatprep.mubr.bf16.mxu0 %v356
  %595 = vmatmul.mubr.bf16.gmra.mxu0 %v355
  %v596 = vpop.f32.mrf.mxu0
  %v597 = vadd.f32 %v560, %v596
  %v598 = vpop.f32.mrf.mxu0
  %v599 = vpop.f32.mrf.mxu0
  %v600 = vadd.f32 %v560, %v599
  %v601 = vpop.f32.mrf.mxu0
  %602 = vdwg.mxu0
  %603 = vmatprep.subr.bf16.mxu0 0
  %604 = vmatpush1.bf16.msra.mxu0 %v514
  %605 = vmatprep.subr.bf16.mxu0 0
  %606 = vmatpush1.bf16.msra.mxu0 %v513
  %607 = vmatprep.subr.bf16.mxu0 0
  %608 = vmatpush1.bf16.msra.mxu0 %v512
  %609 = vmatprep.subr.bf16.mxu0 0
  %610 = vmatpush1.bf16.msra.mxu0 %v511
  %611 = vmatprep.subr.bf16.mxu0 0
  %612 = vmatpush1.bf16.msra.mxu0 %v510
  %613 = vmatprep.subr.bf16.mxu0 0
  %614 = vmatpush1.bf16.msra.mxu0 %v509
  %615 = vmatprep.subr.bf16.mxu0 0
  %616 = vmatpush1.bf16.msra.mxu0 %v508
  %617 = vmatprep.subr.bf16.mxu0 0
  %618 = vmatpush1.bf16.msra.mxu0 %v507
  %619 = vmatprep.subr.bf16.mxu0 0
  %620 = vmatpush2.bf16.msra.mxu0 %v522
  %621 = vmatprep.subr.bf16.mxu0 0
  %622 = vmatpush2.bf16.msra.mxu0 %v521
  %623 = vmatprep.subr.bf16.mxu0 0
  %624 = vmatpush2.bf16.msra.mxu0 %v520
  %625 = vmatprep.subr.bf16.mxu0 0
  %626 = vmatpush2.bf16.msra.mxu0 %v519
  %627 = vmatprep.subr.bf16.mxu0 0
  %628 = vmatpush2.bf16.msra.mxu0 %v518
  %629 = vmatprep.subr.bf16.mxu0 0
  %630 = vmatpush2.bf16.msra.mxu0 %v517
  %631 = vmatprep.subr.bf16.mxu0 0
  %632 = vmatpush2.bf16.msra.mxu0 %v516
  %633 = vmatprep.subr.bf16.mxu0 0
  %634 = vmatpush2.bf16.msra.mxu0 %v515
  %635 = vmatprep.mubr.bf16.mxu0 %v358
  %636 = vmatmul.mubr.bf16.gmra.mxu0 %v357
  %v637 = vpop.f32.mrf.mxu0
  %v638 = vadd.f32 %v597, %v637
  %v639 = vpop.f32.mrf.mxu0
  %v640 = vpop.f32.mrf.mxu0
  %v641 = vadd.f32 %v600, %v640
  %v642 = vpop.f32.mrf.mxu0
  %643 = vdwg.mxu0
  %644 = vmatprep.subr.bf16.mxu0 0
  %645 = vmatpush1.bf16.msra.mxu0 %v530
  %646 = vmatprep.subr.bf16.mxu0 0
  %647 = vmatpush1.bf16.msra.mxu0 %v529
  %648 = vmatprep.subr.bf16.mxu0 0
  %649 = vmatpush1.bf16.msra.mxu0 %v528
  %650 = vmatprep.subr.bf16.mxu0 0
  %651 = vmatpush1.bf16.msra.mxu0 %v527
  %652 = vmatprep.subr.bf16.mxu0 0
  %653 = vmatpush1.bf16.msra.mxu0 %v526
  %654 = vmatprep.subr.bf16.mxu0 0
  %655 = vmatpush1.bf16.msra.mxu0 %v525
  %656 = vmatprep.subr.bf16.mxu0 0
  %657 = vmatpush1.bf16.msra.mxu0 %v524
  %658 = vmatprep.subr.bf16.mxu0 0
  %659 = vmatpush1.bf16.msra.mxu0 %v523
  %660 = vmatprep.subr.bf16.mxu0 0
  %661 = vmatpush2.bf16.msra.mxu0 %v538
  %662 = vmatprep.subr.bf16.mxu0 0
  %663 = vmatpush2.bf16.msra.mxu0 %v537
  %664 = vmatprep.subr.bf16.mxu0 0
  %665 = vmatpush2.bf16.msra.mxu0 %v536
  %666 = vmatprep.subr.bf16.mxu0 0
  %667 = vmatpush2.bf16.msra.mxu0 %v535
  %668 = vmatprep.subr.bf16.mxu0 0
  %669 = vmatpush2.bf16.msra.mxu0 %v534
  %670 = vmatprep.subr.bf16.mxu0 0
  %671 = vmatpush2.bf16.msra.mxu0 %v533
  %672 = vmatprep.subr.bf16.mxu0 0
  %673 = vmatpush2.bf16.msra.mxu0 %v532
  %674 = vmatprep.subr.bf16.mxu0 0
  %675 = vmatpush2.bf16.msra.mxu0 %v531
  %676 = vmatprep.mubr.bf16.mxu0 %v360
  %677 = vmatmul.mubr.bf16.gmra.mxu0 %v359
  %v678 = vpop.f32.mrf.mxu0
  %v679 = vadd.f32 %v638, %v678
  %v680 = vpop.f32.mrf.mxu0
  %v681 = vpop.f32.mrf.mxu0
  %v682 = vadd.f32 %v641, %v681
  %v683 = vpop.f32.mrf.mxu0
  %684 = vdwg.mxu0
  %685 = vmatprep.subr.bf16.mxu0 0
  %686 = vmatpush1.bf16.msra.mxu0 %v546
  %687 = vmatprep.subr.bf16.mxu0 0
  %688 = vmatpush1.bf16.msra.mxu0 %v545
  %689 = vmatprep.subr.bf16.mxu0 0
  %690 = vmatpush1.bf16.msra.mxu0 %v544
  %691 = vmatprep.subr.bf16.mxu0 0
  %692 = vmatpush1.bf16.msra.mxu0 %v543
  %693 = vmatprep.subr.bf16.mxu0 0
  %694 = vmatpush1.bf16.msra.mxu0 %v542
  %695 = vmatprep.subr.bf16.mxu0 0
  %696 = vmatpush1.bf16.msra.mxu0 %v541
  %697 = vmatprep.subr.bf16.mxu0 0
  %698 = vmatpush1.bf16.msra.mxu0 %v540
  %699 = vmatprep.subr.bf16.mxu0 0
  %700 = vmatpush1.bf16.msra.mxu0 %v539
  %701 = vmatprep.subr.bf16.mxu0 0
  %702 = vmatpush2.bf16.msra.mxu0 %v554
  %703 = vmatprep.subr.bf16.mxu0 0
  %704 = vmatpush2.bf16.msra.mxu0 %v553
  %705 = vmatprep.subr.bf16.mxu0 0
  %706 = vmatpush2.bf16.msra.mxu0 %v552
  %707 = vmatprep.subr.bf16.mxu0 0
  %708 = vmatpush2.bf16.msra.mxu0 %v551
  %709 = vmatprep.subr.bf16.mxu0 0
  %710 = vmatpush2.bf16.msra.mxu0 %v550
  %711 = vmatprep.subr.bf16.mxu0 0
  %712 = vmatpush2.bf16.msra.mxu0 %v549
  %713 = vmatprep.subr.bf16.mxu0 0
  %714 = vmatpush2.bf16.msra.mxu0 %v548
  %715 = vmatprep.subr.bf16.mxu0 0
  %716 = vmatpush2.bf16.msra.mxu0 %v547
  %717 = vmatprep.mubr.bf16.mxu0 %v362
  %718 = vmatmul.mubr.bf16.gmra.mxu0 %v361
  %v719 = vpop.f32.mrf.mxu0
  %v720 = vadd.f32 %v679, %v719
  %v721 = vpop.f32.mrf.mxu0
  %v722 = vpop.f32.mrf.mxu0
  %v723 = vadd.f32 %v682, %v722
  %v724 = vpop.f32.mrf.mxu0
  %725 = vdwg.mxu0
  %v726 = vld [vmem:[%s2] sm:$0xff]
  %v727 = vld [vmem:[%s2 + $0x8] sm:$0xff]
  %v728 = vpack.c.bf16 %v727, %v726
  %v729 = vld [vmem:[%s7] sm:$0xff]
  %v730 = vld [vmem:[%s7 + $0x8] sm:$0xff]
  %v731 = vld [vmem:[%s7 + $0x10] sm:$0xff]
  %v732 = vld [vmem:[%s7 + $0x18] sm:$0xff]
  %v733 = vld [vmem:[%s7 + $0x20] sm:$0xff]
  %v734 = vld [vmem:[%s7 + $0x28] sm:$0xff]
  %v735 = vld [vmem:[%s7 + $0x30] sm:$0xff]
  %v736 = vld [vmem:[%s7 + $0x38] sm:$0xff]
  %v737 = vld [vmem:[%s7 + $0x40] sm:$0xff]
  %v738 = vld [vmem:[%s7 + $0x48] sm:$0xff]
  %v739 = vld [vmem:[%s7 + $0x50] sm:$0xff]
  %v740 = vld [vmem:[%s7 + $0x58] sm:$0xff]
  %v741 = vld [vmem:[%s7 + $0x60] sm:$0xff]
  %v742 = vld [vmem:[%s7 + $0x68] sm:$0xff]
  %v743 = vld [vmem:[%s7 + $0x70] sm:$0xff]
  %v744 = vld [vmem:[%s7 + $0x78] sm:$0xff]
  %v745 = vpack.c.bf16 %v730, %v729
  %v746 = vpack.c.bf16 %v732, %v731
  %v747 = vpack.c.bf16 %v734, %v733
  %v748 = vpack.c.bf16 %v736, %v735
  %v749 = vpack.c.bf16 %v738, %v737
  %v750 = vpack.c.bf16 %v740, %v739
  %v751 = vpack.c.bf16 %v742, %v741
  %v752 = vpack.c.bf16 %v744, %v743
  %v753 = vld [vmem:[%s8] sm:$0x1]
  %v755 = vlaneseq
  %v756 = vshrl.u32 %v755, 7
  %v757 = vsub.s32 0, %v756
  %v758 = vrot.slane %v753, %v757
  %760 = vmatprep.subr.bf16.mxu0 0
  %761 = vmatpush1.bf16.msra.mxu0 %v752
  %762 = vmatprep.subr.bf16.mxu0 0
  %763 = vmatpush1.bf16.msra.mxu0 %v751
  %764 = vmatprep.subr.bf16.mxu0 0
  %765 = vmatpush1.bf16.msra.mxu0 %v750
  %766 = vmatprep.subr.bf16.mxu0 0
  %767 = vmatpush1.bf16.msra.mxu0 %v749
  %768 = vmatprep.subr.bf16.mxu0 0
  %769 = vmatpush1.bf16.msra.mxu0 %v748
  %770 = vmatprep.subr.bf16.mxu0 0
  %771 = vmatpush1.bf16.msra.mxu0 %v747
  %772 = vmatprep.subr.bf16.mxu0 0
  %773 = vmatpush1.bf16.msra.mxu0 %v746
  %774 = vmatprep.subr.bf16.mxu0 0
  %775 = vmatpush1.bf16.msra.mxu0 %v745
  %776 = vmatprep.subr.bf16.mxu0 0
  %777 = vmatpush2.bf16.msra.mxu0 0
  %778 = vmatprep.subr.bf16.mxu0 0
  %779 = vmatpush2.bf16.msra.mxu0 0
  %780 = vmatprep.subr.bf16.mxu0 0
  %781 = vmatpush2.bf16.msra.mxu0 0
  %782 = vmatprep.subr.bf16.mxu0 0
  %783 = vmatpush2.bf16.msra.mxu0 0
  %784 = vmatprep.subr.bf16.mxu0 0
  %785 = vmatpush2.bf16.msra.mxu0 0
  %786 = vmatprep.subr.bf16.mxu0 0
  %787 = vmatpush2.bf16.msra.mxu0 0
  %788 = vmatprep.subr.bf16.mxu0 0
  %789 = vmatpush2.bf16.msra.mxu0 0
  %790 = vmatprep.subr.bf16.mxu0 0
  %791 = vmatpush2.bf16.msra.mxu0 0
  %792 = vmatprep.mubr.bf16.mxu0 0
  %793 = vmatmul.mubr.bf16.gmra.mxu0 %v728
  %v794 = vpop.f32.mrf.mxu0
  %v795 = vadd.f32 %v758, %v794
  %v796 = vpop.f32.mrf.mxu0
  %v797 = vpop.f32.mrf.mxu0
  %v798 = vadd.f32 %v758, %v797
  %v799 = vpop.f32.mrf.mxu0
  %800 = vdwg.mxu0
  %v801 = vtanh.pop %v795
  %v802 = vtanh.pop %v798
  %v803 = vlaneseq
  %v804 = vshrl.u32 %v803, 7
  %v805 = vadd.s32 %v804, 8
  %v806 = vlaneseq
  %v807 = vand.u32 %v806, 127
  %vm808 = vcmp.ge.s32.totalorder %v804, 0
  %vm809 = vcmp.ge.s32.totalorder %v805, 0
  %vm810 = vcmp.lt.s32.totalorder %v804, 6
  %vm811 = vcmp.lt.s32.totalorder %v805, 6
  %vm812 = vmand %vm808, %vm810
  %vm813 = vmand %vm809, %vm811
  %vm814 = vcmp.ge.s32.totalorder %v807, 0
  %vm815 = vmand %vm812, %vm814
  %vm816 = vmand %vm813, %vm814
  %vm817 = vcmp.lt.s32.totalorder %v807, 6
  %vm818 = vmand %vm815, %vm817
  %vm819 = vmand %vm816, %vm817
  %vm820 = vcmp.ge.s32.totalorder %v804, 6
  %vm821 = vcmp.ge.s32.totalorder %v805, 6
  %vm822 = vcmp.lt.s32.totalorder %v804, 12
  %vm823 = vcmp.lt.s32.totalorder %v805, 12
  %vm824 = vmand %vm820, %vm822
  %vm825 = vmand %vm821, %vm823
  %vm826 = vcmp.ge.s32.totalorder %v807, 6
  %vm827 = vmand %vm824, %vm826
  %vm828 = vmand %vm825, %vm826
  %vm829 = vcmp.lt.s32.totalorder %v807, 12
  %vm830 = vmand %vm827, %vm829
  %vm831 = vmand %vm828, %vm829
  %vm832 = vmor %vm818, %vm830
  %vm833 = vmor %vm819, %vm831
  %v834 = vadd.s32 %v804, 16
  %v835 = vadd.s32 %v804, 24
  %v836 = vadd.s32 %v804, 32
  %v837 = vadd.s32 %v804, 40
  %v838 = vadd.s32 %v804, 48
  %v839 = vadd.s32 %v804, 56
  %v840 = vadd.s32 %v804, 64
  %vm841 = vcmp.ge.s32.totalorder %v834, 0
  %vm842 = vcmp.ge.s32.totalorder %v835, 0
  %vm843 = vcmp.ge.s32.totalorder %v836, 0
  %vm844 = vcmp.ge.s32.totalorder %v837, 0
  %vm845 = vcmp.ge.s32.totalorder %v838, 0
  %vm846 = vcmp.ge.s32.totalorder %v839, 0
  %vm847 = vcmp.ge.s32.totalorder %v840, 0
  %vm848 = vcmp.lt.s32.totalorder %v804, 36
  %vm849 = vcmp.lt.s32.totalorder %v805, 36
  %vm850 = vcmp.lt.s32.totalorder %v834, 36
  %vm851 = vcmp.lt.s32.totalorder %v835, 36
  %vm852 = vcmp.lt.s32.totalorder %v836, 36
  %vm853 = vcmp.lt.s32.totalorder %v837, 36
  %vm854 = vcmp.lt.s32.totalorder %v838, 36
  %vm855 = vcmp.lt.s32.totalorder %v839, 36
  %vm856 = vcmp.lt.s32.totalorder %v840, 36
  %vm857 = vmand %vm808, %vm848
  %vm858 = vmand %vm809, %vm849
  %vm859 = vmand %vm841, %vm850
  %vm860 = vmand %vm842, %vm851
  %vm861 = vmand %vm843, %vm852
  %vm862 = vmand %vm844, %vm853
  %vm863 = vmand %vm845, %vm854
  %vm864 = vmand %vm846, %vm855
  %vm865 = vmand %vm847, %vm856
  %vm866 = vmand %vm857, %vm814
  %vm867 = vmand %vm858, %vm814
  %vm868 = vmand %vm859, %vm814
  %vm869 = vmand %vm860, %vm814
  %vm870 = vmand %vm861, %vm814
  %vm871 = vmand %vm862, %vm814
  %vm872 = vmand %vm863, %vm814
  %vm873 = vmand %vm864, %vm814
  %vm874 = vmand %vm865, %vm814
  %vm875 = vmand %vm866, %vm817
  %vm876 = vmand %vm867, %vm817
  %vm877 = vmand %vm868, %vm817
  %vm878 = vmand %vm869, %vm817
  %vm879 = vmand %vm870, %vm817
  %vm880 = vmand %vm871, %vm817
  %vm881 = vmand %vm872, %vm817
  %vm882 = vmand %vm873, %vm817
  %vm883 = vmand %vm874, %vm817
  %vm884 = vcmp.ge.s32.totalorder %v804, 36
  %vm885 = vcmp.ge.s32.totalorder %v805, 36
  %vm886 = vcmp.ge.s32.totalorder %v834, 36
  %vm887 = vcmp.ge.s32.totalorder %v835, 36
  %vm888 = vcmp.ge.s32.totalorder %v836, 36
  %vm889 = vcmp.ge.s32.totalorder %v837, 36
  %vm890 = vcmp.ge.s32.totalorder %v838, 36
  %vm891 = vcmp.ge.s32.totalorder %v839, 36
  %vm892 = vcmp.ge.s32.totalorder %v840, 36
  %vm893 = vcmp.lt.s32.totalorder %v804, 72
  %vm894 = vcmp.lt.s32.totalorder %v805, 72
  %vm895 = vcmp.lt.s32.totalorder %v834, 72
  %vm896 = vcmp.lt.s32.totalorder %v835, 72
  %vm897 = vcmp.lt.s32.totalorder %v836, 72
  %vm898 = vcmp.lt.s32.totalorder %v837, 72
  %vm899 = vcmp.lt.s32.totalorder %v838, 72
  %vm900 = vcmp.lt.s32.totalorder %v839, 72
  %vm901 = vcmp.lt.s32.totalorder %v840, 72
  %vm902 = vmand %vm884, %vm893
  %vm903 = vmand %vm885, %vm894
  %vm904 = vmand %vm886, %vm895
  %vm905 = vmand %vm887, %vm896
  %vm906 = vmand %vm888, %vm897
  %vm907 = vmand %vm889, %vm898
  %vm908 = vmand %vm890, %vm899
  %vm909 = vmand %vm891, %vm900
  %vm910 = vmand %vm892, %vm901
  %vm911 = vmand %vm902, %vm826
  %vm912 = vmand %vm903, %vm826
  %vm913 = vmand %vm904, %vm826
  %vm914 = vmand %vm905, %vm826
  %vm915 = vmand %vm906, %vm826
  %vm916 = vmand %vm907, %vm826
  %vm917 = vmand %vm908, %vm826
  %vm918 = vmand %vm909, %vm826
  %vm919 = vmand %vm910, %vm826
  %vm920 = vmand %vm911, %vm829
  %vm921 = vmand %vm912, %vm829
  %vm922 = vmand %vm913, %vm829
  %vm923 = vmand %vm914, %vm829
  %vm924 = vmand %vm915, %vm829
  %vm925 = vmand %vm916, %vm829
  %vm926 = vmand %vm917, %vm829
  %vm927 = vmand %vm918, %vm829
  %vm928 = vmand %vm919, %vm829
  %vm929 = vmor %vm875, %vm920
  %vm930 = vmor %vm876, %vm921
  %vm931 = vmor %vm877, %vm922
  %vm932 = vmor %vm878, %vm923
  %vm933 = vmor %vm879, %vm924
  %vm934 = vmor %vm880, %vm925
  %vm935 = vmor %vm881, %vm926
  %vm936 = vmor %vm882, %vm927
  %vm937 = vmor %vm883, %vm928
  %v938 = vpack.c.bf16 %v723, %v720
  %v939 = vmul.f32 %v720, 0.088388346
  %v940 = vmul.f32 %v723, 0.088388346
  %v941 = vpack.c.bf16 %v940, %v939
  %942 = vmatprep.subr.bf16.mxu0 0
  %943 = vmatpush1.bf16.xpose.msra.mxu0 0
  %944 = vmatprep.subr.bf16.mxu0 0
  %945 = vmatpush1.bf16.xpose.msra.mxu0 0
  %946 = vmatprep.subr.bf16.mxu0 0
  %947 = vmatpush1.bf16.xpose.msra.mxu0 0
  %948 = vmatprep.subr.bf16.mxu0 0
  %949 = vmatpush1.bf16.xpose.msra.mxu0 0
  %950 = vmatprep.subr.bf16.mxu0 0
  %951 = vmatpush1.bf16.xpose.msra.mxu0 0
  %952 = vmatprep.subr.bf16.mxu0 0
  %953 = vmatpush1.bf16.xpose.msra.mxu0 0
  %954 = vmatprep.subr.bf16.mxu0 0
  %955 = vmatpush1.bf16.xpose.msra.mxu0 0
  %956 = vmatprep.subr.bf16.mxu0 0
  %957 = vmatpush1.bf16.xpose.msra.mxu0 %v938
  %958 = vmatprep.subr.bf16.mxu0 0
  %959 = vmatpush2.bf16.xpose.msra.mxu0 0
  %960 = vmatprep.subr.bf16.mxu0 0
  %961 = vmatpush2.bf16.xpose.msra.mxu0 0
  %962 = vmatprep.subr.bf16.mxu0 0
  %963 = vmatpush2.bf16.xpose.msra.mxu0 0
  %964 = vmatprep.subr.bf16.mxu0 0
  %965 = vmatpush2.bf16.xpose.msra.mxu0 0
  %966 = vmatprep.subr.bf16.mxu0 0
  %967 = vmatpush2.bf16.xpose.msra.mxu0 0
  %968 = vmatprep.subr.bf16.mxu0 0
  %969 = vmatpush2.bf16.xpose.msra.mxu0 0
  %970 = vmatprep.subr.bf16.mxu0 0
  %971 = vmatpush2.bf16.xpose.msra.mxu0 0
  %972 = vmatprep.subr.bf16.mxu0 0
  %973 = vmatpush2.bf16.xpose.msra.mxu0 0
  %974 = vmatprep.mubr.bf16.mxu0 0
  %975 = vmatmul.mubr.bf16.gmra.mxu0 %v941
  %v976 = vpop.f32.mrf.mxu0
  %v977 = vadd.f32 0.0, %v976
  %v978 = vpop.f32.mrf.mxu0
  %v979 = vpop.f32.mrf.mxu0
  %v980 = vadd.f32 0.0, %v979
  %v981 = vpop.f32.mrf.mxu0
  %982 = vdwg.mxu0
  %v983 = vsel %vm832, %v977, -1e+30
  %v984 = vsel %vm833, %v980, -1e+30
  %vm985 = vcmask 97280
  %v986 = vsel %vm985, %v983, -inf
  %987 = vmax.xlane.f32.xlu0 %v986
  %v988 = vpop.xlane.xlu0 %987
  %vm989 = vcmask 93184
  %v990 = vsel %vm989, %v984, -inf
  %991 = vmax.xlane.f32.xlu0 %v990
  %v992 = vpop.xlane.xlu0 %991
  %v993 = vsub.f32 %v983, %v988
  %v994 = vsub.f32 %v984, %v992
  %v995 = vmul.f32 %v993, 1.442695
  %v996 = vpow.pop %v995
  %v997 = vmul.f32 %v994, 1.442695
  %v998 = vpow.pop %v997
  %v999 = vsel %vm985, %v996, 0.0
  %1000 = vadd.xlane.f32.xlu0 %v999
  %v1001 = vpop.xlane.xlu0 %1000
  %v1002 = vsel %vm989, %v998, 0.0
  %1003 = vadd.xlane.f32.xlu0 %v1002
  %v1004 = vpop.xlane.xlu0 %1003
  %v1005 = vrcp.pop %v1001
  %v1006 = vmul.f32 %v996, %v1005
  %v1007 = vrcp.pop %v1004
  %v1008 = vmul.f32 %v998, %v1007
  %1010 = vset.pattern.permute.xlu0 0
  %1011 = vperm.xlu0 %1010, %v1006
  %v1012 = vpop.permute.xlu0 %1011
  %1015 = vset.pattern.permute.xlu0 0
  %1016 = vperm.xlu0 %1015, %v1008
  %v1017 = vpop.permute.xlu0 %1016
  %v1019 = vlaneseq
  %v1020 = vshrl.u32 %v1019, 7
  %v1021 = vsub.s32 0, %v1020
  %v1022 = vrot.slane %v720, %v1021
  %v1023 = vmul.f32 %v1012, %v1022
  %v1024 = vmul.f32 %v1017, %v1022
  %1025 = vset.pattern.permute.xlu0 1
  %1026 = vperm.xlu0 %1025, %v1006
  %v1027 = vpop.permute.xlu0 %1026
  %1029 = vset.pattern.permute.xlu0 1
  %1030 = vperm.xlu0 %1029, %v1008
  %v1031 = vpop.permute.xlu0 %1030
  %v1033 = vlaneseq
  %v1034 = vshrl.u32 %v1033, 7
  %v1035 = vsub.s32 1, %v1034
  %v1036 = vrot.slane %v720, %v1035
  %v1037 = vmul.f32 %v1027, %v1036
  %v1038 = vmul.f32 %v1031, %v1036
  %v1039 = vadd.f32 %v1023, %v1037
  %v1040 = vadd.f32 %v1024, %v1038
  %1041 = vset.pattern.permute.xlu0 2
  %1042 = vperm.xlu0 %1041, %v1006
  %v1043 = vpop.permute.xlu0 %1042
  %1045 = vset.pattern.permute.xlu0 2
  %1046 = vperm.xlu0 %1045, %v1008
  %v1047 = vpop.permute.xlu0 %1046
  %v1049 = vlaneseq
  %v1050 = vshrl.u32 %v1049, 7
  %v1051 = vsub.s32 2, %v1050
  %v1052 = vrot.slane %v720, %v1051
  %v1053 = vmul.f32 %v1043, %v1052
  %v1054 = vmul.f32 %v1047, %v1052
  %v1055 = vadd.f32 %v1039, %v1053
  %v1056 = vadd.f32 %v1040, %v1054
  %1057 = vset.pattern.permute.xlu0 3
  %1058 = vperm.xlu0 %1057, %v1006
  %v1059 = vpop.permute.xlu0 %1058
  %1061 = vset.pattern.permute.xlu0 3
  %1062 = vperm.xlu0 %1061, %v1008
  %v1063 = vpop.permute.xlu0 %1062
  %v1065 = vlaneseq
  %v1066 = vshrl.u32 %v1065, 7
  %v1067 = vsub.s32 3, %v1066
  %v1068 = vrot.slane %v720, %v1067
  %v1069 = vmul.f32 %v1059, %v1068
  %v1070 = vmul.f32 %v1063, %v1068
  %v1071 = vadd.f32 %v1055, %v1069
  %v1072 = vadd.f32 %v1056, %v1070
  %1073 = vset.pattern.permute.xlu0 4
  %1074 = vperm.xlu0 %1073, %v1006
  %v1075 = vpop.permute.xlu0 %1074
  %1077 = vset.pattern.permute.xlu0 4
  %1078 = vperm.xlu0 %1077, %v1008
  %v1079 = vpop.permute.xlu0 %1078
  %v1081 = vlaneseq
  %v1082 = vshrl.u32 %v1081, 7
  %v1083 = vsub.s32 4, %v1082
  %v1084 = vrot.slane %v720, %v1083
  %v1085 = vmul.f32 %v1075, %v1084
  %v1086 = vmul.f32 %v1079, %v1084
  %v1087 = vadd.f32 %v1071, %v1085
  %v1088 = vadd.f32 %v1072, %v1086
  %1089 = vset.pattern.permute.xlu0 5
  %1090 = vperm.xlu0 %1089, %v1006
  %v1091 = vpop.permute.xlu0 %1090
  %1093 = vset.pattern.permute.xlu0 5
  %1094 = vperm.xlu0 %1093, %v1008
  %v1095 = vpop.permute.xlu0 %1094
  %v1097 = vlaneseq
  %v1098 = vshrl.u32 %v1097, 7
  %v1099 = vsub.s32 5, %v1098
  %v1100 = vrot.slane %v720, %v1099
  %v1101 = vmul.f32 %v1091, %v1100
  %v1102 = vmul.f32 %v1095, %v1100
  %v1103 = vadd.f32 %v1087, %v1101
  %v1104 = vadd.f32 %v1088, %v1102
  %1105 = vset.pattern.permute.xlu0 6
  %1106 = vperm.xlu0 %1105, %v1006
  %v1107 = vpop.permute.xlu0 %1106
  %1109 = vset.pattern.permute.xlu0 6
  %1110 = vperm.xlu0 %1109, %v1008
  %v1111 = vpop.permute.xlu0 %1110
  %v1113 = vlaneseq
  %v1114 = vshrl.u32 %v1113, 7
  %v1115 = vsub.s32 6, %v1114
  %v1116 = vrot.slane %v720, %v1115
  %v1117 = vmul.f32 %v1107, %v1116
  %v1118 = vmul.f32 %v1111, %v1116
  %v1119 = vadd.f32 %v1103, %v1117
  %v1120 = vadd.f32 %v1104, %v1118
  %1121 = vset.pattern.permute.xlu0 7
  %1122 = vperm.xlu0 %1121, %v1006
  %v1123 = vpop.permute.xlu0 %1122
  %1125 = vset.pattern.permute.xlu0 7
  %1126 = vperm.xlu0 %1125, %v1008
  %v1127 = vpop.permute.xlu0 %1126
  %v1129 = vlaneseq
  %v1130 = vshrl.u32 %v1129, 7
  %v1131 = vsub.s32 7, %v1130
  %v1132 = vrot.slane %v720, %v1131
  %v1133 = vmul.f32 %v1123, %v1132
  %v1134 = vmul.f32 %v1127, %v1132
  %v1135 = vadd.f32 %v1119, %v1133
  %v1136 = vadd.f32 %v1120, %v1134
  %1137 = vset.pattern.permute.xlu0 8
  %1138 = vperm.xlu0 %1137, %v1006
  %v1139 = vpop.permute.xlu0 %1138
  %1141 = vset.pattern.permute.xlu0 8
  %1142 = vperm.xlu0 %1141, %v1008
  %v1143 = vpop.permute.xlu0 %1142
  %v1145 = vlaneseq
  %v1146 = vshrl.u32 %v1145, 7
  %v1147 = vsub.s32 0, %v1146
  %v1148 = vrot.slane %v723, %v1147
  %v1149 = vmul.f32 %v1139, %v1148
  %v1150 = vmul.f32 %v1143, %v1148
  %v1151 = vadd.f32 %v1135, %v1149
  %v1152 = vadd.f32 %v1136, %v1150
  %1153 = vset.pattern.permute.xlu0 9
  %1154 = vperm.xlu0 %1153, %v1006
  %v1155 = vpop.permute.xlu0 %1154
  %1157 = vset.pattern.permute.xlu0 9
  %1158 = vperm.xlu0 %1157, %v1008
  %v1159 = vpop.permute.xlu0 %1158
  %v1161 = vlaneseq
  %v1162 = vshrl.u32 %v1161, 7
  %v1163 = vsub.s32 1, %v1162
  %v1164 = vrot.slane %v723, %v1163
  %v1165 = vmul.f32 %v1155, %v1164
  %v1166 = vmul.f32 %v1159, %v1164
  %v1167 = vadd.f32 %v1151, %v1165
  %v1168 = vadd.f32 %v1152, %v1166
  %1169 = vset.pattern.permute.xlu0 10
  %1170 = vperm.xlu0 %1169, %v1006
  %v1171 = vpop.permute.xlu0 %1170
  %1173 = vset.pattern.permute.xlu0 10
  %1174 = vperm.xlu0 %1173, %v1008
  %v1175 = vpop.permute.xlu0 %1174
  %v1177 = vlaneseq
  %v1178 = vshrl.u32 %v1177, 7
  %v1179 = vsub.s32 2, %v1178
  %v1180 = vrot.slane %v723, %v1179
  %v1181 = vmul.f32 %v1171, %v1180
  %v1182 = vmul.f32 %v1175, %v1180
  %v1183 = vadd.f32 %v1167, %v1181
  %v1184 = vadd.f32 %v1168, %v1182
  %1185 = vset.pattern.permute.xlu0 11
  %1186 = vperm.xlu0 %1185, %v1006
  %v1187 = vpop.permute.xlu0 %1186
  %1189 = vset.pattern.permute.xlu0 11
  %1190 = vperm.xlu0 %1189, %v1008
  %v1191 = vpop.permute.xlu0 %1190
  %v1193 = vlaneseq
  %v1194 = vshrl.u32 %v1193, 7
  %v1195 = vsub.s32 3, %v1194
  %v1196 = vrot.slane %v723, %v1195
  %v1197 = vmul.f32 %v1187, %v1196
  %v1198 = vmul.f32 %v1191, %v1196
  %v1199 = vadd.f32 %v1183, %v1197
  %v1200 = vadd.f32 %v1184, %v1198
  %v1201 = vadd.f32 %v720, %v1199
  %v1202 = vadd.f32 %v723, %v1200
  %v1203 = vpack.c.bf16 %v1202, %v1201
  %v1204 = vmul.f32 %v1201, 0.088388346
  %v1205 = vmul.f32 %v1202, 0.088388346
  %v1206 = vpack.c.bf16 %v1205, %v1204
  %1207 = vmatprep.subr.bf16.mxu0 0
  %1208 = vmatpush1.bf16.xpose.msra.mxu0 0
  %1209 = vmatprep.subr.bf16.mxu0 0
  %1210 = vmatpush1.bf16.xpose.msra.mxu0 0
  %1211 = vmatprep.subr.bf16.mxu0 0
  %1212 = vmatpush1.bf16.xpose.msra.mxu0 0
  %1213 = vmatprep.subr.bf16.mxu0 0
  %1214 = vmatpush1.bf16.xpose.msra.mxu0 0
  %1215 = vmatprep.subr.bf16.mxu0 0
  %1216 = vmatpush1.bf16.xpose.msra.mxu0 0
  %1217 = vmatprep.subr.bf16.mxu0 0
  %1218 = vmatpush1.bf16.xpose.msra.mxu0 0
  %1219 = vmatprep.subr.bf16.mxu0 0
  %1220 = vmatpush1.bf16.xpose.msra.mxu0 0
  %1221 = vmatprep.subr.bf16.mxu0 0
  %1222 = vmatpush1.bf16.xpose.msra.mxu0 %v1203
  %1223 = vmatprep.subr.bf16.mxu0 0
  %1224 = vmatpush2.bf16.xpose.msra.mxu0 0
  %1225 = vmatprep.subr.bf16.mxu0 0
  %1226 = vmatpush2.bf16.xpose.msra.mxu0 0
  %1227 = vmatprep.subr.bf16.mxu0 0
  %1228 = vmatpush2.bf16.xpose.msra.mxu0 0
  %1229 = vmatprep.subr.bf16.mxu0 0
  %1230 = vmatpush2.bf16.xpose.msra.mxu0 0
  %1231 = vmatprep.subr.bf16.mxu0 0
  %1232 = vmatpush2.bf16.xpose.msra.mxu0 0
  %1233 = vmatprep.subr.bf16.mxu0 0
  %1234 = vmatpush2.bf16.xpose.msra.mxu0 0
  %1235 = vmatprep.subr.bf16.mxu0 0
  %1236 = vmatpush2.bf16.xpose.msra.mxu0 0
  %1237 = vmatprep.subr.bf16.mxu0 0
  %1238 = vmatpush2.bf16.xpose.msra.mxu0 0
  %1239 = vmatprep.mubr.bf16.mxu0 0
  %1240 = vmatmul.mubr.bf16.gmra.mxu0 %v1206
  %v1241 = vpop.f32.mrf.mxu0
  %v1242 = vadd.f32 0.0, %v1241
  %v1243 = vpop.f32.mrf.mxu0
  %v1244 = vpop.f32.mrf.mxu0
  %v1245 = vadd.f32 0.0, %v1244
  %v1246 = vpop.f32.mrf.mxu0
  %1247 = vdwg.mxu0
  %v1248 = vsel %vm832, %v1242, -1e+30
  %v1249 = vsel %vm833, %v1245, -1e+30
  %v1250 = vsel %vm985, %v1248, -inf
  %1251 = vmax.xlane.f32.xlu0 %v1250
  %v1252 = vpop.xlane.xlu0 %1251
  %v1253 = vsel %vm989, %v1249, -inf
  %1254 = vmax.xlane.f32.xlu0 %v1253
  %v1255 = vpop.xlane.xlu0 %1254
  %v1256 = vsub.f32 %v1248, %v1252
  %v1257 = vsub.f32 %v1249, %v1255
  %v1258 = vmul.f32 %v1256, 1.442695
  %v1259 = vpow.pop %v1258
  %v1260 = vmul.f32 %v1257, 1.442695
  %v1261 = vpow.pop %v1260
  %v1262 = vsel %vm985, %v1259, 0.0
  %1263 = vadd.xlane.f32.xlu0 %v1262
  %v1264 = vpop.xlane.xlu0 %1263
  %v1265 = vsel %vm989, %v1261, 0.0
  %1266 = vadd.xlane.f32.xlu0 %v1265
  %v1267 = vpop.xlane.xlu0 %1266
  %v1268 = vrcp.pop %v1264
  %v1269 = vmul.f32 %v1259, %v1268
  %v1270 = vrcp.pop %v1267
  %v1271 = vmul.f32 %v1261, %v1270
  %1273 = vset.pattern.permute.xlu0 0
  %1274 = vperm.xlu0 %1273, %v1269
  %v1275 = vpop.permute.xlu0 %1274
  %1278 = vset.pattern.permute.xlu0 0
  %1279 = vperm.xlu0 %1278, %v1271
  %v1280 = vpop.permute.xlu0 %1279
  %v1282 = vlaneseq
  %v1283 = vshrl.u32 %v1282, 7
  %v1284 = vsub.s32 0, %v1283
  %v1285 = vrot.slane %v1201, %v1284
  %v1286 = vmul.f32 %v1275, %v1285
  %v1287 = vmul.f32 %v1280, %v1285
  %1288 = vset.pattern.permute.xlu0 1
  %1289 = vperm.xlu0 %1288, %v1269
  %v1290 = vpop.permute.xlu0 %1289
  %1292 = vset.pattern.permute.xlu0 1
  %1293 = vperm.xlu0 %1292, %v1271
  %v1294 = vpop.permute.xlu0 %1293
  %v1296 = vlaneseq
  %v1297 = vshrl.u32 %v1296, 7
  %v1298 = vsub.s32 1, %v1297
  %v1299 = vrot.slane %v1201, %v1298
  %v1300 = vmul.f32 %v1290, %v1299
  %v1301 = vmul.f32 %v1294, %v1299
  %v1302 = vadd.f32 %v1286, %v1300
  %v1303 = vadd.f32 %v1287, %v1301
  %1304 = vset.pattern.permute.xlu0 2
  %1305 = vperm.xlu0 %1304, %v1269
  %v1306 = vpop.permute.xlu0 %1305
  %1308 = vset.pattern.permute.xlu0 2
  %1309 = vperm.xlu0 %1308, %v1271
  %v1310 = vpop.permute.xlu0 %1309
  %v1312 = vlaneseq
  %v1313 = vshrl.u32 %v1312, 7
  %v1314 = vsub.s32 2, %v1313
  %v1315 = vrot.slane %v1201, %v1314
  %v1316 = vmul.f32 %v1306, %v1315
  %v1317 = vmul.f32 %v1310, %v1315
  %v1318 = vadd.f32 %v1302, %v1316
  %v1319 = vadd.f32 %v1303, %v1317
  %1320 = vset.pattern.permute.xlu0 3
  %1321 = vperm.xlu0 %1320, %v1269
  %v1322 = vpop.permute.xlu0 %1321
  %1324 = vset.pattern.permute.xlu0 3
  %1325 = vperm.xlu0 %1324, %v1271
  %v1326 = vpop.permute.xlu0 %1325
  %v1328 = vlaneseq
  %v1329 = vshrl.u32 %v1328, 7
  %v1330 = vsub.s32 3, %v1329
  %v1331 = vrot.slane %v1201, %v1330
  %v1332 = vmul.f32 %v1322, %v1331
  %v1333 = vmul.f32 %v1326, %v1331
  %v1334 = vadd.f32 %v1318, %v1332
  %v1335 = vadd.f32 %v1319, %v1333
  %1336 = vset.pattern.permute.xlu0 4
  %1337 = vperm.xlu0 %1336, %v1269
  %v1338 = vpop.permute.xlu0 %1337
  %1340 = vset.pattern.permute.xlu0 4
  %1341 = vperm.xlu0 %1340, %v1271
  %v1342 = vpop.permute.xlu0 %1341
  %v1344 = vlaneseq
  %v1345 = vshrl.u32 %v1344, 7
  %v1346 = vsub.s32 4, %v1345
  %v1347 = vrot.slane %v1201, %v1346
  %v1348 = vmul.f32 %v1338, %v1347
  %v1349 = vmul.f32 %v1342, %v1347
  %v1350 = vadd.f32 %v1334, %v1348
  %v1351 = vadd.f32 %v1335, %v1349
  %1352 = vset.pattern.permute.xlu0 5
  %1353 = vperm.xlu0 %1352, %v1269
  %v1354 = vpop.permute.xlu0 %1353
  %1356 = vset.pattern.permute.xlu0 5
  %1357 = vperm.xlu0 %1356, %v1271
  %v1358 = vpop.permute.xlu0 %1357
  %v1360 = vlaneseq
  %v1361 = vshrl.u32 %v1360, 7
  %v1362 = vsub.s32 5, %v1361
  %v1363 = vrot.slane %v1201, %v1362
  %v1364 = vmul.f32 %v1354, %v1363
  %v1365 = vmul.f32 %v1358, %v1363
  %v1366 = vadd.f32 %v1350, %v1364
  %v1367 = vadd.f32 %v1351, %v1365
  %1368 = vset.pattern.permute.xlu0 6
  %1369 = vperm.xlu0 %1368, %v1269
  %v1370 = vpop.permute.xlu0 %1369
  %1372 = vset.pattern.permute.xlu0 6
  %1373 = vperm.xlu0 %1372, %v1271
  %v1374 = vpop.permute.xlu0 %1373
  %v1376 = vlaneseq
  %v1377 = vshrl.u32 %v1376, 7
  %v1378 = vsub.s32 6, %v1377
  %v1379 = vrot.slane %v1201, %v1378
  %v1380 = vmul.f32 %v1370, %v1379
  %v1381 = vmul.f32 %v1374, %v1379
  %v1382 = vadd.f32 %v1366, %v1380
  %v1383 = vadd.f32 %v1367, %v1381
  %1384 = vset.pattern.permute.xlu0 7
  %1385 = vperm.xlu0 %1384, %v1269
  %v1386 = vpop.permute.xlu0 %1385
  %1388 = vset.pattern.permute.xlu0 7
  %1389 = vperm.xlu0 %1388, %v1271
  %v1390 = vpop.permute.xlu0 %1389
  %v1392 = vlaneseq
  %v1393 = vshrl.u32 %v1392, 7
  %v1394 = vsub.s32 7, %v1393
  %v1395 = vrot.slane %v1201, %v1394
  %v1396 = vmul.f32 %v1386, %v1395
  %v1397 = vmul.f32 %v1390, %v1395
  %v1398 = vadd.f32 %v1382, %v1396
  %v1399 = vadd.f32 %v1383, %v1397
  %1400 = vset.pattern.permute.xlu0 8
  %1401 = vperm.xlu0 %1400, %v1269
  %v1402 = vpop.permute.xlu0 %1401
  %1404 = vset.pattern.permute.xlu0 8
  %1405 = vperm.xlu0 %1404, %v1271
  %v1406 = vpop.permute.xlu0 %1405
  %v1408 = vlaneseq
  %v1409 = vshrl.u32 %v1408, 7
  %v1410 = vsub.s32 0, %v1409
  %v1411 = vrot.slane %v1202, %v1410
  %v1412 = vmul.f32 %v1402, %v1411
  %v1413 = vmul.f32 %v1406, %v1411
  %v1414 = vadd.f32 %v1398, %v1412
  %v1415 = vadd.f32 %v1399, %v1413
  %1416 = vset.pattern.permute.xlu0 9
  %1417 = vperm.xlu0 %1416, %v1269
  %v1418 = vpop.permute.xlu0 %1417
  %1420 = vset.pattern.permute.xlu0 9
  %1421 = vperm.xlu0 %1420, %v1271
  %v1422 = vpop.permute.xlu0 %1421
  %v1424 = vlaneseq
  %v1425 = vshrl.u32 %v1424, 7
  %v1426 = vsub.s32 1, %v1425
  %v1427 = vrot.slane %v1202, %v1426
  %v1428 = vmul.f32 %v1418, %v1427
  %v1429 = vmul.f32 %v1422, %v1427
  %v1430 = vadd.f32 %v1414, %v1428
  %v1431 = vadd.f32 %v1415, %v1429
  %1432 = vset.pattern.permute.xlu0 10
  %1433 = vperm.xlu0 %1432, %v1269
  %v1434 = vpop.permute.xlu0 %1433
  %1436 = vset.pattern.permute.xlu0 10
  %1437 = vperm.xlu0 %1436, %v1271
  %v1438 = vpop.permute.xlu0 %1437
  %v1440 = vlaneseq
  %v1441 = vshrl.u32 %v1440, 7
  %v1442 = vsub.s32 2, %v1441
  %v1443 = vrot.slane %v1202, %v1442
  %v1444 = vmul.f32 %v1434, %v1443
  %v1445 = vmul.f32 %v1438, %v1443
  %v1446 = vadd.f32 %v1430, %v1444
  %v1447 = vadd.f32 %v1431, %v1445
  %1448 = vset.pattern.permute.xlu0 11
  %1449 = vperm.xlu0 %1448, %v1269
  %v1450 = vpop.permute.xlu0 %1449
  %1452 = vset.pattern.permute.xlu0 11
  %1453 = vperm.xlu0 %1452, %v1271
  %v1454 = vpop.permute.xlu0 %1453
  %v1456 = vlaneseq
  %v1457 = vshrl.u32 %v1456, 7
  %v1458 = vsub.s32 3, %v1457
  %v1459 = vrot.slane %v1202, %v1458
  %v1460 = vmul.f32 %v1450, %v1459
  %v1461 = vmul.f32 %v1454, %v1459
  %v1462 = vadd.f32 %v1446, %v1460
  %v1463 = vadd.f32 %v1447, %v1461
  %v1464 = vadd.f32 %v1201, %v1462
  %v1465 = vadd.f32 %v1202, %v1463
  %v1466 = vpack.c.bf16 %v1465, %v1464
  %v1467 = vadd.f32 %v302, 0.0
  %v1468 = vadd.f32 %v305, 0.0
  %v1469 = vadd.f32 %v310, 0.0
  %v1470 = vadd.f32 %v313, 0.0
  %v1471 = vadd.f32 %v318, 0.0
  %v1472 = vadd.f32 %v321, 0.0
  %v1473 = vadd.f32 %v326, 0.0
  %v1474 = vadd.f32 %v329, 0.0
  %v1475 = vadd.f32 %v334, 0.0
  %v1476 = vmul.f32 %v1467, 0.088388346
  %v1477 = vmul.f32 %v1468, 0.088388346
  %v1478 = vmul.f32 %v1469, 0.088388346
  %v1479 = vmul.f32 %v1470, 0.088388346
  %v1480 = vmul.f32 %v1471, 0.088388346
  %v1481 = vmul.f32 %v1472, 0.088388346
  %v1482 = vmul.f32 %v1473, 0.088388346
  %v1483 = vmul.f32 %v1474, 0.088388346
  %v1484 = vmul.f32 %v1475, 0.088388346
  %v1485 = vpack.c.bf16 %v1477, %v1476
  %v1486 = vpack.c.bf16 %v1479, %v1478
  %v1487 = vpack.c.bf16 %v1481, %v1480
  %v1488 = vpack.c.bf16 %v1483, %v1482
  %v1489 = vpack.c.bf16 %v1484, %v1484
  %1490 = vmatprep.subr.bf16.mxu0 0
  %1491 = vmatpush1.bf16.xpose.msra.mxu0 0
  %1492 = vmatprep.subr.bf16.mxu0 0
  %1493 = vmatpush1.bf16.xpose.msra.mxu0 0
  %1494 = vmatprep.subr.bf16.mxu0 0
  %1495 = vmatpush1.bf16.xpose.msra.mxu0 0
  %1496 = vmatprep.subr.bf16.mxu0 0
  %1497 = vmatpush1.bf16.xpose.msra.mxu0 0
  %1498 = vmatprep.subr.bf16.mxu0 0
  %1499 = vmatpush1.bf16.xpose.msra.mxu0 0
  %1500 = vmatprep.subr.bf16.mxu0 0
  %1501 = vmatpush1.bf16.xpose.msra.mxu0 0
  %1502 = vmatprep.subr.bf16.mxu0 0
  %1503 = vmatpush1.bf16.xpose.msra.mxu0 0
  %1504 = vmatprep.subr.bf16.mxu0 0
  %1505 = vmatpush1.bf16.xpose.msra.mxu0 %v1466
  %1506 = vmatprep.subr.bf16.mxu0 0
  %1507 = vmatpush2.bf16.xpose.msra.mxu0 0
  %1508 = vmatprep.subr.bf16.mxu0 0
  %1509 = vmatpush2.bf16.xpose.msra.mxu0 0
  %1510 = vmatprep.subr.bf16.mxu0 0
  %1511 = vmatpush2.bf16.xpose.msra.mxu0 0
  %1512 = vmatprep.subr.bf16.mxu0 0
  %1513 = vmatpush2.bf16.xpose.msra.mxu0 0
  %1514 = vmatprep.subr.bf16.mxu0 0
  %1515 = vmatpush2.bf16.xpose.msra.mxu0 0
  %1516 = vmatprep.subr.bf16.mxu0 0
  %1517 = vmatpush2.bf16.xpose.msra.mxu0 0
  %1518 = vmatprep.subr.bf16.mxu0 0
  %1519 = vmatpush2.bf16.xpose.msra.mxu0 0
  %1520 = vmatprep.subr.bf16.mxu0 0
  %1521 = vmatpush2.bf16.xpose.msra.mxu0 0
  %1522 = vmatprep.mubr.bf16.mxu0 0
  %1523 = vmatmul.mubr.bf16.gmra.mxu0 %v1485
  %v1524 = vpop.f32.mrf.mxu0
  %v1525 = vadd.f32 0.0, %v1524
  %v1526 = vpop.f32.mrf.mxu0
  %v1527 = vpop.f32.mrf.mxu0
  %v1528 = vadd.f32 0.0, %v1527
  %v1529 = vpop.f32.mrf.mxu0
  %1530 = vmatprep.mubr.bf16.mxu0 0
  %1531 = vmatmul.mubr.bf16.gmra.mxu0 %v1486
  %v1532 = vpop.f32.mrf.mxu0
  %v1533 = vadd.f32 0.0, %v1532
  %v1534 = vpop.f32.mrf.mxu0
  %v1535 = vpop.f32.mrf.mxu0
  %v1536 = vadd.f32 0.0, %v1535
  %v1537 = vpop.f32.mrf.mxu0
  %1538 = vmatprep.mubr.bf16.mxu0 0
  %1539 = vmatmul.mubr.bf16.gmra.mxu0 %v1487
  %v1540 = vpop.f32.mrf.mxu0
  %v1541 = vadd.f32 0.0, %v1540
  %v1542 = vpop.f32.mrf.mxu0
  %v1543 = vpop.f32.mrf.mxu0
  %v1544 = vadd.f32 0.0, %v1543
  %v1545 = vpop.f32.mrf.mxu0
  %1546 = vmatprep.mubr.bf16.mxu0 0
  %1547 = vmatmul.mubr.bf16.gmra.mxu0 %v1488
  %v1548 = vpop.f32.mrf.mxu0
  %v1549 = vadd.f32 0.0, %v1548
  %v1550 = vpop.f32.mrf.mxu0
  %v1551 = vpop.f32.mrf.mxu0
  %v1552 = vadd.f32 0.0, %v1551
  %v1553 = vpop.f32.mrf.mxu0
  %1554 = vmatprep.mubr.bf16.mxu0 0
  %1555 = vmatmul.mubr.bf16.gmra.mxu0 %v1489
  %v1556 = vpop.f32.mrf.mxu0
  %v1557 = vadd.f32 0.0, %v1556
  %v1558 = vpop.f32.mrf.mxu0
  %v1559 = vpop.f32.mrf.mxu0
  %v1560 = vpop.f32.mrf.mxu0
  %1561 = vdwg.mxu0
  %v1562 = vsel %vm929, %v1525, -1e+30
  %v1563 = vsel %vm930, %v1528, -1e+30
  %v1564 = vsel %vm931, %v1533, -1e+30
  %v1565 = vsel %vm932, %v1536, -1e+30
  %v1566 = vsel %vm933, %v1541, -1e+30
  %v1567 = vsel %vm934, %v1544, -1e+30
  %v1568 = vsel %vm935, %v1549, -1e+30
  %v1569 = vsel %vm936, %v1552, -1e+30
  %v1570 = vsel %vm937, %v1557, -1e+30
  %v1571 = vsel %vm985, %v1562, -inf
  %1572 = vmax.xlane.f32.xlu0 %v1571
  %v1573 = vpop.xlane.xlu0 %1572
  %v1574 = vsel %vm985, %v1563, -inf
  %1575 = vmax.xlane.f32.xlu0 %v1574
  %v1576 = vpop.xlane.xlu0 %1575
  %v1577 = vsel %vm985, %v1564, -inf
  %1578 = vmax.xlane.f32.xlu0 %v1577
  %v1579 = vpop.xlane.xlu0 %1578
  %v1580 = vsel %vm985, %v1565, -inf
  %1581 = vmax.xlane.f32.xlu0 %v1580
  %v1582 = vpop.xlane.xlu0 %1581
  %v1583 = vsel %vm985, %v1566, -inf
  %1584 = vmax.xlane.f32.xlu0 %v1583
  %v1585 = vpop.xlane.xlu0 %1584
  %v1586 = vsel %vm985, %v1567, -inf
  %1587 = vmax.xlane.f32.xlu0 %v1586
  %v1588 = vpop.xlane.xlu0 %1587
  %v1589 = vsel %vm985, %v1568, -inf
  %1590 = vmax.xlane.f32.xlu0 %v1589
  %v1591 = vpop.xlane.xlu0 %1590
  %v1592 = vsel %vm985, %v1569, -inf
  %1593 = vmax.xlane.f32.xlu0 %v1592
  %v1594 = vpop.xlane.xlu0 %1593
  %v1595 = vsel %vm985, %v1570, -inf
  %1596 = vmax.xlane.f32.xlu0 %v1595
  %v1597 = vpop.xlane.xlu0 %1596
  %v1598 = vsub.f32 %v1562, %v1573
  %v1599 = vsub.f32 %v1563, %v1576
  %v1600 = vsub.f32 %v1564, %v1579
  %v1601 = vsub.f32 %v1565, %v1582
  %v1602 = vsub.f32 %v1566, %v1585
  %v1603 = vsub.f32 %v1567, %v1588
  %v1604 = vsub.f32 %v1568, %v1591
  %v1605 = vsub.f32 %v1569, %v1594
  %v1606 = vsub.f32 %v1570, %v1597
  %v1607 = vmul.f32 %v1598, 1.442695
  %v1608 = vpow.pop %v1607
  %v1609 = vmul.f32 %v1599, 1.442695
  %v1610 = vpow.pop %v1609
  %v1611 = vmul.f32 %v1600, 1.442695
  %v1612 = vpow.pop %v1611
  %v1613 = vmul.f32 %v1601, 1.442695
  %v1614 = vpow.pop %v1613
  %v1615 = vmul.f32 %v1602, 1.442695
  %v1616 = vpow.pop %v1615
  %v1617 = vmul.f32 %v1603, 1.442695
  %v1618 = vpow.pop %v1617
  %v1619 = vmul.f32 %v1604, 1.442695
  %v1620 = vpow.pop %v1619
  %v1621 = vmul.f32 %v1605, 1.442695
  %v1622 = vpow.pop %v1621
  %v1623 = vmul.f32 %v1606, 1.442695
  %v1624 = vpow.pop %v1623
  %v1625 = vsel %vm985, %v1608, 0.0
  %1626 = vadd.xlane.f32.xlu0 %v1625
  %v1627 = vpop.xlane.xlu0 %1626
  %v1628 = vsel %vm985, %v1610, 0.0
  %1629 = vadd.xlane.f32.xlu0 %v1628
  %v1630 = vpop.xlane.xlu0 %1629
  %v1631 = vsel %vm985, %v1612, 0.0
  %1632 = vadd.xlane.f32.xlu0 %v1631
  %v1633 = vpop.xlane.xlu0 %1632
  %v1634 = vsel %vm985, %v1614, 0.0
  %1635 = vadd.xlane.f32.xlu0 %v1634
  %v1636 = vpop.xlane.xlu0 %1635
  %v1637 = vsel %vm985, %v1616, 0.0
  %1638 = vadd.xlane.f32.xlu0 %v1637
  %v1639 = vpop.xlane.xlu0 %1638
  %v1640 = vsel %vm985, %v1618, 0.0
  %1641 = vadd.xlane.f32.xlu0 %v1640
  %v1642 = vpop.xlane.xlu0 %1641
  %v1643 = vsel %vm985, %v1620, 0.0
  %1644 = vadd.xlane.f32.xlu0 %v1643
  %v1645 = vpop.xlane.xlu0 %1644
  %v1646 = vsel %vm985, %v1622, 0.0
  %1647 = vadd.xlane.f32.xlu0 %v1646
  %v1648 = vpop.xlane.xlu0 %1647
  %v1649 = vsel %vm985, %v1624, 0.0
  %1650 = vadd.xlane.f32.xlu0 %v1649
  %v1651 = vpop.xlane.xlu0 %1650
  %v1652 = vrcp.pop %v1627
  %v1653 = vmul.f32 %v1608, %v1652
  %v1654 = vrcp.pop %v1630
  %v1655 = vmul.f32 %v1610, %v1654
  %v1656 = vrcp.pop %v1633
  %v1657 = vmul.f32 %v1612, %v1656
  %v1658 = vrcp.pop %v1636
  %v1659 = vmul.f32 %v1614, %v1658
  %v1660 = vrcp.pop %v1639
  %v1661 = vmul.f32 %v1616, %v1660
  %v1662 = vrcp.pop %v1642
  %v1663 = vmul.f32 %v1618, %v1662
  %v1664 = vrcp.pop %v1645
  %v1665 = vmul.f32 %v1620, %v1664
  %v1666 = vrcp.pop %v1648
  %v1667 = vmul.f32 %v1622, %v1666
  %v1668 = vrcp.pop %v1651
  %v1669 = vmul.f32 %v1624, %v1668
  %1671 = vset.pattern.permute.xlu0 0
  %1672 = vperm.xlu0 %1671, %v1653
  %v1673 = vpop.permute.xlu0 %1672
  %1676 = vset.pattern.permute.xlu0 0
  %1677 = vperm.xlu0 %1676, %v1655
  %v1678 = vpop.permute.xlu0 %1677
  %1681 = vset.pattern.permute.xlu0 0
  %1682 = vperm.xlu0 %1681, %v1657
  %v1683 = vpop.permute.xlu0 %1682
  %1686 = vset.pattern.permute.xlu0 0
  %1687 = vperm.xlu0 %1686, %v1659
  %v1688 = vpop.permute.xlu0 %1687
  %1691 = vset.pattern.permute.xlu0 0
  %1692 = vperm.xlu0 %1691, %v1661
  %v1693 = vpop.permute.xlu0 %1692
  %1696 = vset.pattern.permute.xlu0 0
  %1697 = vperm.xlu0 %1696, %v1663
  %v1698 = vpop.permute.xlu0 %1697
  %1701 = vset.pattern.permute.xlu0 0
  %1702 = vperm.xlu0 %1701, %v1665
  %v1703 = vpop.permute.xlu0 %1702
  %1706 = vset.pattern.permute.xlu0 0
  %1707 = vperm.xlu0 %1706, %v1667
  %v1708 = vpop.permute.xlu0 %1707
  %1711 = vset.pattern.permute.xlu0 0
  %1712 = vperm.xlu0 %1711, %v1669
  %v1713 = vpop.permute.xlu0 %1712
  %v1715 = vlaneseq
  %v1716 = vshrl.u32 %v1715, 7
  %v1717 = vsub.s32 0, %v1716
  %v1718 = vrot.slane %v1464, %v1717
  %v1719 = vmul.f32 %v1673, %v1718
  %v1720 = vmul.f32 %v1678, %v1718
  %v1721 = vmul.f32 %v1683, %v1718
  %v1722 = vmul.f32 %v1688, %v1718
  %v1723 = vmul.f32 %v1693, %v1718
  %v1724 = vmul.f32 %v1698, %v1718
  %v1725 = vmul.f32 %v1703, %v1718
  %v1726 = vmul.f32 %v1708, %v1718
  %v1727 = vmul.f32 %v1713, %v1718
  %1728 = vset.pattern.permute.xlu0 1
  %1729 = vperm.xlu0 %1728, %v1653
  %v1730 = vpop.permute.xlu0 %1729
  %1732 = vset.pattern.permute.xlu0 1
  %1733 = vperm.xlu0 %1732, %v1655
  %v1734 = vpop.permute.xlu0 %1733
  %1736 = vset.pattern.permute.xlu0 1
  %1737 = vperm.xlu0 %1736, %v1657
  %v1738 = vpop.permute.xlu0 %1737
  %1740 = vset.pattern.permute.xlu0 1
  %1741 = vperm.xlu0 %1740, %v1659
  %v1742 = vpop.permute.xlu0 %1741
  %1744 = vset.pattern.permute.xlu0 1
  %1745 = vperm.xlu0 %1744, %v1661
  %v1746 = vpop.permute.xlu0 %1745
  %1748 = vset.pattern.permute.xlu0 1
  %1749 = vperm.xlu0 %1748, %v1663
  %v1750 = vpop.permute.xlu0 %1749
  %1752 = vset.pattern.permute.xlu0 1
  %1753 = vperm.xlu0 %1752, %v1665
  %v1754 = vpop.permute.xlu0 %1753
  %1756 = vset.pattern.permute.xlu0 1
  %1757 = vperm.xlu0 %1756, %v1667
  %v1758 = vpop.permute.xlu0 %1757
  %1760 = vset.pattern.permute.xlu0 1
  %1761 = vperm.xlu0 %1760, %v1669
  %v1762 = vpop.permute.xlu0 %1761
  %v1764 = vlaneseq
  %v1765 = vshrl.u32 %v1764, 7
  %v1766 = vsub.s32 1, %v1765
  %v1767 = vrot.slane %v1464, %v1766
  %v1768 = vmul.f32 %v1730, %v1767
  %v1769 = vmul.f32 %v1734, %v1767
  %v1770 = vmul.f32 %v1738, %v1767
  %v1771 = vmul.f32 %v1742, %v1767
  %v1772 = vmul.f32 %v1746, %v1767
  %v1773 = vmul.f32 %v1750, %v1767
  %v1774 = vmul.f32 %v1754, %v1767
  %v1775 = vmul.f32 %v1758, %v1767
  %v1776 = vmul.f32 %v1762, %v1767
  %v1777 = vadd.f32 %v1719, %v1768
  %v1778 = vadd.f32 %v1720, %v1769
  %v1779 = vadd.f32 %v1721, %v1770
  %v1780 = vadd.f32 %v1722, %v1771
  %v1781 = vadd.f32 %v1723, %v1772
  %v1782 = vadd.f32 %v1724, %v1773
  %v1783 = vadd.f32 %v1725, %v1774
  %v1784 = vadd.f32 %v1726, %v1775
  %v1785 = vadd.f32 %v1727, %v1776
  %1786 = vset.pattern.permute.xlu0 2
  %1787 = vperm.xlu0 %1786, %v1653
  %v1788 = vpop.permute.xlu0 %1787
  %1790 = vset.pattern.permute.xlu0 2
  %1791 = vperm.xlu0 %1790, %v1655
  %v1792 = vpop.permute.xlu0 %1791
  %1794 = vset.pattern.permute.xlu0 2
  %1795 = vperm.xlu0 %1794, %v1657
  %v1796 = vpop.permute.xlu0 %1795
  %1798 = vset.pattern.permute.xlu0 2
  %1799 = vperm.xlu0 %1798, %v1659
  %v1800 = vpop.permute.xlu0 %1799
  %1802 = vset.pattern.permute.xlu0 2
  %1803 = vperm.xlu0 %1802, %v1661
  %v1804 = vpop.permute.xlu0 %1803
  %1806 = vset.pattern.permute.xlu0 2
  %1807 = vperm.xlu0 %1806, %v1663
  %v1808 = vpop.permute.xlu0 %1807
  %1810 = vset.pattern.permute.xlu0 2
  %1811 = vperm.xlu0 %1810, %v1665
  %v1812 = vpop.permute.xlu0 %1811
  %1814 = vset.pattern.permute.xlu0 2
  %1815 = vperm.xlu0 %1814, %v1667
  %v1816 = vpop.permute.xlu0 %1815
  %1818 = vset.pattern.permute.xlu0 2
  %1819 = vperm.xlu0 %1818, %v1669
  %v1820 = vpop.permute.xlu0 %1819
  %v1822 = vlaneseq
  %v1823 = vshrl.u32 %v1822, 7
  %v1824 = vsub.s32 2, %v1823
  %v1825 = vrot.slane %v1464, %v1824
  %v1826 = vmul.f32 %v1788, %v1825
  %v1827 = vmul.f32 %v1792, %v1825
  %v1828 = vmul.f32 %v1796, %v1825
  %v1829 = vmul.f32 %v1800, %v1825
  %v1830 = vmul.f32 %v1804, %v1825
  %v1831 = vmul.f32 %v1808, %v1825
  %v1832 = vmul.f32 %v1812, %v1825
  %v1833 = vmul.f32 %v1816, %v1825
  %v1834 = vmul.f32 %v1820, %v1825
  %v1835 = vadd.f32 %v1777, %v1826
  %v1836 = vadd.f32 %v1778, %v1827
  %v1837 = vadd.f32 %v1779, %v1828
  %v1838 = vadd.f32 %v1780, %v1829
  %v1839 = vadd.f32 %v1781, %v1830
  %v1840 = vadd.f32 %v1782, %v1831
  %v1841 = vadd.f32 %v1783, %v1832
  %v1842 = vadd.f32 %v1784, %v1833
  %v1843 = vadd.f32 %v1785, %v1834
  %1844 = vset.pattern.permute.xlu0 3
  %1845 = vperm.xlu0 %1844, %v1653
  %v1846 = vpop.permute.xlu0 %1845
  %1848 = vset.pattern.permute.xlu0 3
  %1849 = vperm.xlu0 %1848, %v1655
  %v1850 = vpop.permute.xlu0 %1849
  %1852 = vset.pattern.permute.xlu0 3
  %1853 = vperm.xlu0 %1852, %v1657
  %v1854 = vpop.permute.xlu0 %1853
  %1856 = vset.pattern.permute.xlu0 3
  %1857 = vperm.xlu0 %1856, %v1659
  %v1858 = vpop.permute.xlu0 %1857
  %1860 = vset.pattern.permute.xlu0 3
  %1861 = vperm.xlu0 %1860, %v1661
  %v1862 = vpop.permute.xlu0 %1861
  %1864 = vset.pattern.permute.xlu0 3
  %1865 = vperm.xlu0 %1864, %v1663
  %v1866 = vpop.permute.xlu0 %1865
  %1868 = vset.pattern.permute.xlu0 3
  %1869 = vperm.xlu0 %1868, %v1665
  %v1870 = vpop.permute.xlu0 %1869
  %1872 = vset.pattern.permute.xlu0 3
  %1873 = vperm.xlu0 %1872, %v1667
  %v1874 = vpop.permute.xlu0 %1873
  %1876 = vset.pattern.permute.xlu0 3
  %1877 = vperm.xlu0 %1876, %v1669
  %v1878 = vpop.permute.xlu0 %1877
  %v1880 = vlaneseq
  %v1881 = vshrl.u32 %v1880, 7
  %v1882 = vsub.s32 3, %v1881
  %v1883 = vrot.slane %v1464, %v1882
  %v1884 = vmul.f32 %v1846, %v1883
  %v1885 = vmul.f32 %v1850, %v1883
  %v1886 = vmul.f32 %v1854, %v1883
  %v1887 = vmul.f32 %v1858, %v1883
  %v1888 = vmul.f32 %v1862, %v1883
  %v1889 = vmul.f32 %v1866, %v1883
  %v1890 = vmul.f32 %v1870, %v1883
  %v1891 = vmul.f32 %v1874, %v1883
  %v1892 = vmul.f32 %v1878, %v1883
  %v1893 = vadd.f32 %v1835, %v1884
  %v1894 = vadd.f32 %v1836, %v1885
  %v1895 = vadd.f32 %v1837, %v1886
  %v1896 = vadd.f32 %v1838, %v1887
  %v1897 = vadd.f32 %v1839, %v1888
  %v1898 = vadd.f32 %v1840, %v1889
  %v1899 = vadd.f32 %v1841, %v1890
  %v1900 = vadd.f32 %v1842, %v1891
  %v1901 = vadd.f32 %v1843, %v1892
  %1902 = vset.pattern.permute.xlu0 4
  %1903 = vperm.xlu0 %1902, %v1653
  %v1904 = vpop.permute.xlu0 %1903
  %1906 = vset.pattern.permute.xlu0 4
  %1907 = vperm.xlu0 %1906, %v1655
  %v1908 = vpop.permute.xlu0 %1907
  %1910 = vset.pattern.permute.xlu0 4
  %1911 = vperm.xlu0 %1910, %v1657
  %v1912 = vpop.permute.xlu0 %1911
  %1914 = vset.pattern.permute.xlu0 4
  %1915 = vperm.xlu0 %1914, %v1659
  %v1916 = vpop.permute.xlu0 %1915
  %1918 = vset.pattern.permute.xlu0 4
  %1919 = vperm.xlu0 %1918, %v1661
  %v1920 = vpop.permute.xlu0 %1919
  %1922 = vset.pattern.permute.xlu0 4
  %1923 = vperm.xlu0 %1922, %v1663
  %v1924 = vpop.permute.xlu0 %1923
  %1926 = vset.pattern.permute.xlu0 4
  %1927 = vperm.xlu0 %1926, %v1665
  %v1928 = vpop.permute.xlu0 %1927
  %1930 = vset.pattern.permute.xlu0 4
  %1931 = vperm.xlu0 %1930, %v1667
  %v1932 = vpop.permute.xlu0 %1931
  %1934 = vset.pattern.permute.xlu0 4
  %1935 = vperm.xlu0 %1934, %v1669
  %v1936 = vpop.permute.xlu0 %1935
  %v1938 = vlaneseq
  %v1939 = vshrl.u32 %v1938, 7
  %v1940 = vsub.s32 4, %v1939
  %v1941 = vrot.slane %v1464, %v1940
  %v1942 = vmul.f32 %v1904, %v1941
  %v1943 = vmul.f32 %v1908, %v1941
  %v1944 = vmul.f32 %v1912, %v1941
  %v1945 = vmul.f32 %v1916, %v1941
  %v1946 = vmul.f32 %v1920, %v1941
  %v1947 = vmul.f32 %v1924, %v1941
  %v1948 = vmul.f32 %v1928, %v1941
  %v1949 = vmul.f32 %v1932, %v1941
  %v1950 = vmul.f32 %v1936, %v1941
  %v1951 = vadd.f32 %v1893, %v1942
  %v1952 = vadd.f32 %v1894, %v1943
  %v1953 = vadd.f32 %v1895, %v1944
  %v1954 = vadd.f32 %v1896, %v1945
  %v1955 = vadd.f32 %v1897, %v1946
  %v1956 = vadd.f32 %v1898, %v1947
  %v1957 = vadd.f32 %v1899, %v1948
  %v1958 = vadd.f32 %v1900, %v1949
  %v1959 = vadd.f32 %v1901, %v1950
  %1960 = vset.pattern.permute.xlu0 5
  %1961 = vperm.xlu0 %1960, %v1653
  %v1962 = vpop.permute.xlu0 %1961
  %1964 = vset.pattern.permute.xlu0 5
  %1965 = vperm.xlu0 %1964, %v1655
  %v1966 = vpop.permute.xlu0 %1965
  %1968 = vset.pattern.permute.xlu0 5
  %1969 = vperm.xlu0 %1968, %v1657
  %v1970 = vpop.permute.xlu0 %1969
  %1972 = vset.pattern.permute.xlu0 5
  %1973 = vperm.xlu0 %1972, %v1659
  %v1974 = vpop.permute.xlu0 %1973
  %1976 = vset.pattern.permute.xlu0 5
  %1977 = vperm.xlu0 %1976, %v1661
  %v1978 = vpop.permute.xlu0 %1977
  %1980 = vset.pattern.permute.xlu0 5
  %1981 = vperm.xlu0 %1980, %v1663
  %v1982 = vpop.permute.xlu0 %1981
  %1984 = vset.pattern.permute.xlu0 5
  %1985 = vperm.xlu0 %1984, %v1665
  %v1986 = vpop.permute.xlu0 %1985
  %1988 = vset.pattern.permute.xlu0 5
  %1989 = vperm.xlu0 %1988, %v1667
  %v1990 = vpop.permute.xlu0 %1989
  %1992 = vset.pattern.permute.xlu0 5
  %1993 = vperm.xlu0 %1992, %v1669
  %v1994 = vpop.permute.xlu0 %1993
  %v1996 = vlaneseq
  %v1997 = vshrl.u32 %v1996, 7
  %v1998 = vsub.s32 5, %v1997
  %v1999 = vrot.slane %v1464, %v1998
  %v2000 = vmul.f32 %v1962, %v1999
  %v2001 = vmul.f32 %v1966, %v1999
  %v2002 = vmul.f32 %v1970, %v1999
  %v2003 = vmul.f32 %v1974, %v1999
  %v2004 = vmul.f32 %v1978, %v1999
  %v2005 = vmul.f32 %v1982, %v1999
  %v2006 = vmul.f32 %v1986, %v1999
  %v2007 = vmul.f32 %v1990, %v1999
  %v2008 = vmul.f32 %v1994, %v1999
  %v2009 = vadd.f32 %v1951, %v2000
  %v2010 = vadd.f32 %v1952, %v2001
  %v2011 = vadd.f32 %v1953, %v2002
  %v2012 = vadd.f32 %v1954, %v2003
  %v2013 = vadd.f32 %v1955, %v2004
  %v2014 = vadd.f32 %v1956, %v2005
  %v2015 = vadd.f32 %v1957, %v2006
  %v2016 = vadd.f32 %v1958, %v2007
  %v2017 = vadd.f32 %v1959, %v2008
  %2018 = vset.pattern.permute.xlu0 6
  %2019 = vperm.xlu0 %2018, %v1653
  %v2020 = vpop.permute.xlu0 %2019
  %2022 = vset.pattern.permute.xlu0 6
  %2023 = vperm.xlu0 %2022, %v1655
  %v2024 = vpop.permute.xlu0 %2023
  %2026 = vset.pattern.permute.xlu0 6
  %2027 = vperm.xlu0 %2026, %v1657
  %v2028 = vpop.permute.xlu0 %2027
  %2030 = vset.pattern.permute.xlu0 6
  %2031 = vperm.xlu0 %2030, %v1659
  %v2032 = vpop.permute.xlu0 %2031
  %2034 = vset.pattern.permute.xlu0 6
  %2035 = vperm.xlu0 %2034, %v1661
  %v2036 = vpop.permute.xlu0 %2035
  %2038 = vset.pattern.permute.xlu0 6
  %2039 = vperm.xlu0 %2038, %v1663
  %v2040 = vpop.permute.xlu0 %2039
  %2042 = vset.pattern.permute.xlu0 6
  %2043 = vperm.xlu0 %2042, %v1665
  %v2044 = vpop.permute.xlu0 %2043
  %2046 = vset.pattern.permute.xlu0 6
  %2047 = vperm.xlu0 %2046, %v1667
  %v2048 = vpop.permute.xlu0 %2047
  %2050 = vset.pattern.permute.xlu0 6
  %2051 = vperm.xlu0 %2050, %v1669
  %v2052 = vpop.permute.xlu0 %2051
  %v2054 = vlaneseq
  %v2055 = vshrl.u32 %v2054, 7
  %v2056 = vsub.s32 6, %v2055
  %v2057 = vrot.slane %v1464, %v2056
  %v2058 = vmul.f32 %v2020, %v2057
  %v2059 = vmul.f32 %v2024, %v2057
  %v2060 = vmul.f32 %v2028, %v2057
  %v2061 = vmul.f32 %v2032, %v2057
  %v2062 = vmul.f32 %v2036, %v2057
  %v2063 = vmul.f32 %v2040, %v2057
  %v2064 = vmul.f32 %v2044, %v2057
  %v2065 = vmul.f32 %v2048, %v2057
  %v2066 = vmul.f32 %v2052, %v2057
  %v2067 = vadd.f32 %v2009, %v2058
  %v2068 = vadd.f32 %v2010, %v2059
  %v2069 = vadd.f32 %v2011, %v2060
  %v2070 = vadd.f32 %v2012, %v2061
  %v2071 = vadd.f32 %v2013, %v2062
  %v2072 = vadd.f32 %v2014, %v2063
  %v2073 = vadd.f32 %v2015, %v2064
  %v2074 = vadd.f32 %v2016, %v2065
  %v2075 = vadd.f32 %v2017, %v2066
  %2076 = vset.pattern.permute.xlu0 7
  %2077 = vperm.xlu0 %2076, %v1653
  %v2078 = vpop.permute.xlu0 %2077
  %2080 = vset.pattern.permute.xlu0 7
  %2081 = vperm.xlu0 %2080, %v1655
  %v2082 = vpop.permute.xlu0 %2081
  %2084 = vset.pattern.permute.xlu0 7
  %2085 = vperm.xlu0 %2084, %v1657
  %v2086 = vpop.permute.xlu0 %2085
  %2088 = vset.pattern.permute.xlu0 7
  %2089 = vperm.xlu0 %2088, %v1659
  %v2090 = vpop.permute.xlu0 %2089
  %2092 = vset.pattern.permute.xlu0 7
  %2093 = vperm.xlu0 %2092, %v1661
  %v2094 = vpop.permute.xlu0 %2093
  %2096 = vset.pattern.permute.xlu0 7
  %2097 = vperm.xlu0 %2096, %v1663
  %v2098 = vpop.permute.xlu0 %2097
  %2100 = vset.pattern.permute.xlu0 7
  %2101 = vperm.xlu0 %2100, %v1665
  %v2102 = vpop.permute.xlu0 %2101
  %2104 = vset.pattern.permute.xlu0 7
  %2105 = vperm.xlu0 %2104, %v1667
  %v2106 = vpop.permute.xlu0 %2105
  %2108 = vset.pattern.permute.xlu0 7
  %2109 = vperm.xlu0 %2108, %v1669
  %v2110 = vpop.permute.xlu0 %2109
  %v2112 = vlaneseq
  %v2113 = vshrl.u32 %v2112, 7
  %v2114 = vsub.s32 7, %v2113
  %v2115 = vrot.slane %v1464, %v2114
  %v2116 = vmul.f32 %v2078, %v2115
  %v2117 = vmul.f32 %v2082, %v2115
  %v2118 = vmul.f32 %v2086, %v2115
  %v2119 = vmul.f32 %v2090, %v2115
  %v2120 = vmul.f32 %v2094, %v2115
  %v2121 = vmul.f32 %v2098, %v2115
  %v2122 = vmul.f32 %v2102, %v2115
  %v2123 = vmul.f32 %v2106, %v2115
  %v2124 = vmul.f32 %v2110, %v2115
  %v2125 = vadd.f32 %v2067, %v2116
  %v2126 = vadd.f32 %v2068, %v2117
  %v2127 = vadd.f32 %v2069, %v2118
  %v2128 = vadd.f32 %v2070, %v2119
  %v2129 = vadd.f32 %v2071, %v2120
  %v2130 = vadd.f32 %v2072, %v2121
  %v2131 = vadd.f32 %v2073, %v2122
  %v2132 = vadd.f32 %v2074, %v2123
  %v2133 = vadd.f32 %v2075, %v2124
  %2134 = vset.pattern.permute.xlu0 8
  %2135 = vperm.xlu0 %2134, %v1653
  %v2136 = vpop.permute.xlu0 %2135
  %2138 = vset.pattern.permute.xlu0 8
  %2139 = vperm.xlu0 %2138, %v1655
  %v2140 = vpop.permute.xlu0 %2139
  %2142 = vset.pattern.permute.xlu0 8
  %2143 = vperm.xlu0 %2142, %v1657
  %v2144 = vpop.permute.xlu0 %2143
  %2146 = vset.pattern.permute.xlu0 8
  %2147 = vperm.xlu0 %2146, %v1659
  %v2148 = vpop.permute.xlu0 %2147
  %2150 = vset.pattern.permute.xlu0 8
  %2151 = vperm.xlu0 %2150, %v1661
  %v2152 = vpop.permute.xlu0 %2151
  %2154 = vset.pattern.permute.xlu0 8
  %2155 = vperm.xlu0 %2154, %v1663
  %v2156 = vpop.permute.xlu0 %2155
  %2158 = vset.pattern.permute.xlu0 8
  %2159 = vperm.xlu0 %2158, %v1665
  %v2160 = vpop.permute.xlu0 %2159
  %2162 = vset.pattern.permute.xlu0 8
  %2163 = vperm.xlu0 %2162, %v1667
  %v2164 = vpop.permute.xlu0 %2163
  %2166 = vset.pattern.permute.xlu0 8
  %2167 = vperm.xlu0 %2166, %v1669
  %v2168 = vpop.permute.xlu0 %2167
  %v2170 = vlaneseq
  %v2171 = vshrl.u32 %v2170, 7
  %v2172 = vsub.s32 0, %v2171
  %v2173 = vrot.slane %v1465, %v2172
  %v2174 = vmul.f32 %v2136, %v2173
  %v2175 = vmul.f32 %v2140, %v2173
  %v2176 = vmul.f32 %v2144, %v2173
  %v2177 = vmul.f32 %v2148, %v2173
  %v2178 = vmul.f32 %v2152, %v2173
  %v2179 = vmul.f32 %v2156, %v2173
  %v2180 = vmul.f32 %v2160, %v2173
  %v2181 = vmul.f32 %v2164, %v2173
  %v2182 = vmul.f32 %v2168, %v2173
  %v2183 = vadd.f32 %v2125, %v2174
  %v2184 = vadd.f32 %v2126, %v2175
  %v2185 = vadd.f32 %v2127, %v2176
  %v2186 = vadd.f32 %v2128, %v2177
  %v2187 = vadd.f32 %v2129, %v2178
  %v2188 = vadd.f32 %v2130, %v2179
  %v2189 = vadd.f32 %v2131, %v2180
  %v2190 = vadd.f32 %v2132, %v2181
  %v2191 = vadd.f32 %v2133, %v2182
  %2192 = vset.pattern.permute.xlu0 9
  %2193 = vperm.xlu0 %2192, %v1653
  %v2194 = vpop.permute.xlu0 %2193
  %2196 = vset.pattern.permute.xlu0 9
  %2197 = vperm.xlu0 %2196, %v1655
  %v2198 = vpop.permute.xlu0 %2197
  %2200 = vset.pattern.permute.xlu0 9
  %2201 = vperm.xlu0 %2200, %v1657
  %v2202 = vpop.permute.xlu0 %2201
  %2204 = vset.pattern.permute.xlu0 9
  %2205 = vperm.xlu0 %2204, %v1659
  %v2206 = vpop.permute.xlu0 %2205
  %2208 = vset.pattern.permute.xlu0 9
  %2209 = vperm.xlu0 %2208, %v1661
  %v2210 = vpop.permute.xlu0 %2209
  %2212 = vset.pattern.permute.xlu0 9
  %2213 = vperm.xlu0 %2212, %v1663
  %v2214 = vpop.permute.xlu0 %2213
  %2216 = vset.pattern.permute.xlu0 9
  %2217 = vperm.xlu0 %2216, %v1665
  %v2218 = vpop.permute.xlu0 %2217
  %2220 = vset.pattern.permute.xlu0 9
  %2221 = vperm.xlu0 %2220, %v1667
  %v2222 = vpop.permute.xlu0 %2221
  %2224 = vset.pattern.permute.xlu0 9
  %2225 = vperm.xlu0 %2224, %v1669
  %v2226 = vpop.permute.xlu0 %2225
  %v2228 = vlaneseq
  %v2229 = vshrl.u32 %v2228, 7
  %v2230 = vsub.s32 1, %v2229
  %v2231 = vrot.slane %v1465, %v2230
  %v2232 = vmul.f32 %v2194, %v2231
  %v2233 = vmul.f32 %v2198, %v2231
  %v2234 = vmul.f32 %v2202, %v2231
  %v2235 = vmul.f32 %v2206, %v2231
  %v2236 = vmul.f32 %v2210, %v2231
  %v2237 = vmul.f32 %v2214, %v2231
  %v2238 = vmul.f32 %v2218, %v2231
  %v2239 = vmul.f32 %v2222, %v2231
  %v2240 = vmul.f32 %v2226, %v2231
  %v2241 = vadd.f32 %v2183, %v2232
  %v2242 = vadd.f32 %v2184, %v2233
  %v2243 = vadd.f32 %v2185, %v2234
  %v2244 = vadd.f32 %v2186, %v2235
  %v2245 = vadd.f32 %v2187, %v2236
  %v2246 = vadd.f32 %v2188, %v2237
  %v2247 = vadd.f32 %v2189, %v2238
  %v2248 = vadd.f32 %v2190, %v2239
  %v2249 = vadd.f32 %v2191, %v2240
  %2250 = vset.pattern.permute.xlu0 10
  %2251 = vperm.xlu0 %2250, %v1653
  %v2252 = vpop.permute.xlu0 %2251
  %2254 = vset.pattern.permute.xlu0 10
  %2255 = vperm.xlu0 %2254, %v1655
  %v2256 = vpop.permute.xlu0 %2255
  %2258 = vset.pattern.permute.xlu0 10
  %2259 = vperm.xlu0 %2258, %v1657
  %v2260 = vpop.permute.xlu0 %2259
  %2262 = vset.pattern.permute.xlu0 10
  %2263 = vperm.xlu0 %2262, %v1659
  %v2264 = vpop.permute.xlu0 %2263
  %2266 = vset.pattern.permute.xlu0 10
  %2267 = vperm.xlu0 %2266, %v1661
  %v2268 = vpop.permute.xlu0 %2267
  %2270 = vset.pattern.permute.xlu0 10
  %2271 = vperm.xlu0 %2270, %v1663
  %v2272 = vpop.permute.xlu0 %2271
  %2274 = vset.pattern.permute.xlu0 10
  %2275 = vperm.xlu0 %2274, %v1665
  %v2276 = vpop.permute.xlu0 %2275
  %2278 = vset.pattern.permute.xlu0 10
  %2279 = vperm.xlu0 %2278, %v1667
  %v2280 = vpop.permute.xlu0 %2279
  %2282 = vset.pattern.permute.xlu0 10
  %2283 = vperm.xlu0 %2282, %v1669
  %v2284 = vpop.permute.xlu0 %2283
  %v2286 = vlaneseq
  %v2287 = vshrl.u32 %v2286, 7
  %v2288 = vsub.s32 2, %v2287
  %v2289 = vrot.slane %v1465, %v2288
  %v2290 = vmul.f32 %v2252, %v2289
  %v2291 = vmul.f32 %v2256, %v2289
  %v2292 = vmul.f32 %v2260, %v2289
  %v2293 = vmul.f32 %v2264, %v2289
  %v2294 = vmul.f32 %v2268, %v2289
  %v2295 = vmul.f32 %v2272, %v2289
  %v2296 = vmul.f32 %v2276, %v2289
  %v2297 = vmul.f32 %v2280, %v2289
  %v2298 = vmul.f32 %v2284, %v2289
  %v2299 = vadd.f32 %v2241, %v2290
  %v2300 = vadd.f32 %v2242, %v2291
  %v2301 = vadd.f32 %v2243, %v2292
  %v2302 = vadd.f32 %v2244, %v2293
  %v2303 = vadd.f32 %v2245, %v2294
  %v2304 = vadd.f32 %v2246, %v2295
  %v2305 = vadd.f32 %v2247, %v2296
  %v2306 = vadd.f32 %v2248, %v2297
  %v2307 = vadd.f32 %v2249, %v2298
  %2308 = vset.pattern.permute.xlu0 11
  %2309 = vperm.xlu0 %2308, %v1653
  %v2310 = vpop.permute.xlu0 %2309
  %2312 = vset.pattern.permute.xlu0 11
  %2313 = vperm.xlu0 %2312, %v1655
  %v2314 = vpop.permute.xlu0 %2313
  %2316 = vset.pattern.permute.xlu0 11
  %2317 = vperm.xlu0 %2316, %v1657
  %v2318 = vpop.permute.xlu0 %2317
  %2320 = vset.pattern.permute.xlu0 11
  %2321 = vperm.xlu0 %2320, %v1659
  %v2322 = vpop.permute.xlu0 %2321
  %2324 = vset.pattern.permute.xlu0 11
  %2325 = vperm.xlu0 %2324, %v1661
  %v2326 = vpop.permute.xlu0 %2325
  %2328 = vset.pattern.permute.xlu0 11
  %2329 = vperm.xlu0 %2328, %v1663
  %v2330 = vpop.permute.xlu0 %2329
  %2332 = vset.pattern.permute.xlu0 11
  %2333 = vperm.xlu0 %2332, %v1665
  %v2334 = vpop.permute.xlu0 %2333
  %2336 = vset.pattern.permute.xlu0 11
  %2337 = vperm.xlu0 %2336, %v1667
  %v2338 = vpop.permute.xlu0 %2337
  %2340 = vset.pattern.permute.xlu0 11
  %2341 = vperm.xlu0 %2340, %v1669
  %v2342 = vpop.permute.xlu0 %2341
  %v2344 = vlaneseq
  %v2345 = vshrl.u32 %v2344, 7
  %v2346 = vsub.s32 3, %v2345
  %v2347 = vrot.slane %v1465, %v2346
  %v2348 = vmul.f32 %v2310, %v2347
  %v2349 = vmul.f32 %v2314, %v2347
  %v2350 = vmul.f32 %v2318, %v2347
  %v2351 = vmul.f32 %v2322, %v2347
  %v2352 = vmul.f32 %v2326, %v2347
  %v2353 = vmul.f32 %v2330, %v2347
  %v2354 = vmul.f32 %v2334, %v2347
  %v2355 = vmul.f32 %v2338, %v2347
  %v2356 = vmul.f32 %v2342, %v2347
  %v2357 = vadd.f32 %v2299, %v2348
  %v2358 = vadd.f32 %v2300, %v2349
  %v2359 = vadd.f32 %v2301, %v2350
  %v2360 = vadd.f32 %v2302, %v2351
  %v2361 = vadd.f32 %v2303, %v2352
  %v2362 = vadd.f32 %v2304, %v2353
  %v2363 = vadd.f32 %v2305, %v2354
  %v2364 = vadd.f32 %v2306, %v2355
  %v2365 = vadd.f32 %v2307, %v2356
  %v2366 = vadd.f32 %v2357, 0.0
  %v2367 = vadd.f32 %v2358, 0.0
  %v2368 = vadd.f32 %v2359, 0.0
  %v2369 = vadd.f32 %v2360, 0.0
  %v2370 = vadd.f32 %v2361, 0.0
  %v2371 = vadd.f32 %v2362, 0.0
  %v2372 = vadd.f32 %v2363, 0.0
  %v2373 = vadd.f32 %v2364, 0.0
  %v2374 = vadd.f32 %v2365, 0.0
  %2375 = vst.msk [vmem:[%s11] sm:$0xff] %vm985, %v1653
  %2376 = vst.msk [vmem:[%s11 + $0x8] sm:$0xff] %vm985, %v1655
  %2377 = vst.msk [vmem:[%s11 + $0x10] sm:$0xff] %vm985, %v1657
  %2378 = vst.msk [vmem:[%s11 + $0x18] sm:$0xff] %vm985, %v1659
  %2379 = vst.msk [vmem:[%s11 + $0x20] sm:$0xff] %vm985, %v1661
  %2380 = vst.msk [vmem:[%s11 + $0x28] sm:$0xff] %vm985, %v1663
  %2381 = vst.msk [vmem:[%s11 + $0x30] sm:$0xff] %vm985, %v1665
  %2382 = vst.msk [vmem:[%s11 + $0x38] sm:$0xff] %vm985, %v1667
  %2383 = vst.msk [vmem:[%s11 + $0x40] sm:$0xff] %vm985, %v1669
  %v2384 = vadd.f32 %v302, %v2366
  %v2385 = vadd.f32 %v305, %v2367
  %v2386 = vadd.f32 %v310, %v2368
  %v2387 = vadd.f32 %v313, %v2369
  %v2388 = vadd.f32 %v318, %v2370
  %v2389 = vadd.f32 %v321, %v2371
  %v2390 = vadd.f32 %v326, %v2372
  %v2391 = vadd.f32 %v329, %v2373
  %v2392 = vadd.f32 %v334, %v2374
  %v2393 = vmul.f32 %v2384, 0.088388346
  %v2394 = vmul.f32 %v2385, 0.088388346
  %v2395 = vmul.f32 %v2386, 0.088388346
  %v2396 = vmul.f32 %v2387, 0.088388346
  %v2397 = vmul.f32 %v2388, 0.088388346
  %v2398 = vmul.f32 %v2389, 0.088388346
  %v2399 = vmul.f32 %v2390, 0.088388346
  %v2400 = vmul.f32 %v2391, 0.088388346
  %v2401 = vmul.f32 %v2392, 0.088388346
  %v2402 = vpack.c.bf16 %v2394, %v2393
  %v2403 = vpack.c.bf16 %v2396, %v2395
  %v2404 = vpack.c.bf16 %v2398, %v2397
  %v2405 = vpack.c.bf16 %v2400, %v2399
  %v2406 = vpack.c.bf16 %v2401, %v2401
  %2407 = vmatprep.subr.bf16.mxu0 0
  %2408 = vmatpush1.bf16.xpose.msra.mxu0 0
  %2409 = vmatprep.subr.bf16.mxu0 0
  %2410 = vmatpush1.bf16.xpose.msra.mxu0 0
  %2411 = vmatprep.subr.bf16.mxu0 0
  %2412 = vmatpush1.bf16.xpose.msra.mxu0 0
  %2413 = vmatprep.subr.bf16.mxu0 0
  %2414 = vmatpush1.bf16.xpose.msra.mxu0 0
  %2415 = vmatprep.subr.bf16.mxu0 0
  %2416 = vmatpush1.bf16.xpose.msra.mxu0 0
  %2417 = vmatprep.subr.bf16.mxu0 0
  %2418 = vmatpush1.bf16.xpose.msra.mxu0 0
  %2419 = vmatprep.subr.bf16.mxu0 0
  %2420 = vmatpush1.bf16.xpose.msra.mxu0 0
  %2421 = vmatprep.subr.bf16.mxu0 0
  %2422 = vmatpush1.bf16.xpose.msra.mxu0 %v1466
  %2423 = vmatprep.subr.bf16.mxu0 0
  %2424 = vmatpush2.bf16.xpose.msra.mxu0 0
  %2425 = vmatprep.subr.bf16.mxu0 0
  %2426 = vmatpush2.bf16.xpose.msra.mxu0 0
  %2427 = vmatprep.subr.bf16.mxu0 0
  %2428 = vmatpush2.bf16.xpose.msra.mxu0 0
  %2429 = vmatprep.subr.bf16.mxu0 0
  %2430 = vmatpush2.bf16.xpose.msra.mxu0 0
  %2431 = vmatprep.subr.bf16.mxu0 0
  %2432 = vmatpush2.bf16.xpose.msra.mxu0 0
  %2433 = vmatprep.subr.bf16.mxu0 0
  %2434 = vmatpush2.bf16.xpose.msra.mxu0 0
  %2435 = vmatprep.subr.bf16.mxu0 0
  %2436 = vmatpush2.bf16.xpose.msra.mxu0 0
  %2437 = vmatprep.subr.bf16.mxu0 0
  %2438 = vmatpush2.bf16.xpose.msra.mxu0 0
  %2439 = vmatprep.mubr.bf16.mxu0 0
  %2440 = vmatmul.mubr.bf16.gmra.mxu0 %v2402
  %v2441 = vpop.f32.mrf.mxu0
  %v2442 = vadd.f32 0.0, %v2441
  %v2443 = vpop.f32.mrf.mxu0
  %v2444 = vpop.f32.mrf.mxu0
  %v2445 = vadd.f32 0.0, %v2444
  %v2446 = vpop.f32.mrf.mxu0
  %2447 = vmatprep.mubr.bf16.mxu0 0
  %2448 = vmatmul.mubr.bf16.gmra.mxu0 %v2403
  %v2449 = vpop.f32.mrf.mxu0
  %v2450 = vadd.f32 0.0, %v2449
  %v2451 = vpop.f32.mrf.mxu0
  %v2452 = vpop.f32.mrf.mxu0
  %v2453 = vadd.f32 0.0, %v2452
  %v2454 = vpop.f32.mrf.mxu0
  %2455 = vmatprep.mubr.bf16.mxu0 0
  %2456 = vmatmul.mubr.bf16.gmra.mxu0 %v2404
  %v2457 = vpop.f32.mrf.mxu0
  %v2458 = vadd.f32 0.0, %v2457
  %v2459 = vpop.f32.mrf.mxu0
  %v2460 = vpop.f32.mrf.mxu0
  %v2461 = vadd.f32 0.0, %v2460
  %v2462 = vpop.f32.mrf.mxu0
  %2463 = vmatprep.mubr.bf16.mxu0 0
  %2464 = vmatmul.mubr.bf16.gmra.mxu0 %v2405
  %v2465 = vpop.f32.mrf.mxu0
  %v2466 = vadd.f32 0.0, %v2465
  %v2467 = vpop.f32.mrf.mxu0
  %v2468 = vpop.f32.mrf.mxu0
  %v2469 = vadd.f32 0.0, %v2468
  %v2470 = vpop.f32.mrf.mxu0
  %2471 = vmatprep.mubr.bf16.mxu0 0
  %2472 = vmatmul.mubr.bf16.gmra.mxu0 %v2406
  %v2473 = vpop.f32.mrf.mxu0
  %v2474 = vadd.f32 0.0, %v2473
  %v2475 = vpop.f32.mrf.mxu0
  %v2476 = vpop.f32.mrf.mxu0
  %v2477 = vpop.f32.mrf.mxu0
  %2478 = vdwg.mxu0
  %v2479 = vsel %vm929, %v2442, -1e+30
  %v2480 = vsel %vm930, %v2445, -1e+30
  %v2481 = vsel %vm931, %v2450, -1e+30
  %v2482 = vsel %vm932, %v2453, -1e+30
  %v2483 = vsel %vm933, %v2458, -1e+30
  %v2484 = vsel %vm934, %v2461, -1e+30
  %v2485 = vsel %vm935, %v2466, -1e+30
  %v2486 = vsel %vm936, %v2469, -1e+30
  %v2487 = vsel %vm937, %v2474, -1e+30
  %v2488 = vsel %vm985, %v2479, -inf
  %2489 = vmax.xlane.f32.xlu0 %v2488
  %v2490 = vpop.xlane.xlu0 %2489
  %v2491 = vsel %vm985, %v2480, -inf
  %2492 = vmax.xlane.f32.xlu0 %v2491
  %v2493 = vpop.xlane.xlu0 %2492
  %v2494 = vsel %vm985, %v2481, -inf
  %2495 = vmax.xlane.f32.xlu0 %v2494
  %v2496 = vpop.xlane.xlu0 %2495
  %v2497 = vsel %vm985, %v2482, -inf
  %2498 = vmax.xlane.f32.xlu0 %v2497
  %v2499 = vpop.xlane.xlu0 %2498
  %v2500 = vsel %vm985, %v2483, -inf
  %2501 = vmax.xlane.f32.xlu0 %v2500
  %v2502 = vpop.xlane.xlu0 %2501
  %v2503 = vsel %vm985, %v2484, -inf
  %2504 = vmax.xlane.f32.xlu0 %v2503
  %v2505 = vpop.xlane.xlu0 %2504
  %v2506 = vsel %vm985, %v2485, -inf
  %2507 = vmax.xlane.f32.xlu0 %v2506
  %v2508 = vpop.xlane.xlu0 %2507
  %v2509 = vsel %vm985, %v2486, -inf
  %2510 = vmax.xlane.f32.xlu0 %v2509
  %v2511 = vpop.xlane.xlu0 %2510
  %v2512 = vsel %vm985, %v2487, -inf
  %2513 = vmax.xlane.f32.xlu0 %v2512
  %v2514 = vpop.xlane.xlu0 %2513
  %v2515 = vsub.f32 %v2479, %v2490
  %v2516 = vsub.f32 %v2480, %v2493
  %v2517 = vsub.f32 %v2481, %v2496
  %v2518 = vsub.f32 %v2482, %v2499
  %v2519 = vsub.f32 %v2483, %v2502
  %v2520 = vsub.f32 %v2484, %v2505
  %v2521 = vsub.f32 %v2485, %v2508
  %v2522 = vsub.f32 %v2486, %v2511
  %v2523 = vsub.f32 %v2487, %v2514
  %v2524 = vmul.f32 %v2515, 1.442695
  %v2525 = vpow.pop %v2524
  %v2526 = vmul.f32 %v2516, 1.442695
  %v2527 = vpow.pop %v2526
  %v2528 = vmul.f32 %v2517, 1.442695
  %v2529 = vpow.pop %v2528
  %v2530 = vmul.f32 %v2518, 1.442695
  %v2531 = vpow.pop %v2530
  %v2532 = vmul.f32 %v2519, 1.442695
  %v2533 = vpow.pop %v2532
  %v2534 = vmul.f32 %v2520, 1.442695
  %v2535 = vpow.pop %v2534
  %v2536 = vmul.f32 %v2521, 1.442695
  %v2537 = vpow.pop %v2536
  %v2538 = vmul.f32 %v2522, 1.442695
  %v2539 = vpow.pop %v2538
  %v2540 = vmul.f32 %v2523, 1.442695
  %v2541 = vpow.pop %v2540
  %v2542 = vsel %vm985, %v2525, 0.0
  %2543 = vadd.xlane.f32.xlu0 %v2542
  %v2544 = vpop.xlane.xlu0 %2543
  %v2545 = vsel %vm985, %v2527, 0.0
  %2546 = vadd.xlane.f32.xlu0 %v2545
  %v2547 = vpop.xlane.xlu0 %2546
  %v2548 = vsel %vm985, %v2529, 0.0
  %2549 = vadd.xlane.f32.xlu0 %v2548
  %v2550 = vpop.xlane.xlu0 %2549
  %v2551 = vsel %vm985, %v2531, 0.0
  %2552 = vadd.xlane.f32.xlu0 %v2551
  %v2553 = vpop.xlane.xlu0 %2552
  %v2554 = vsel %vm985, %v2533, 0.0
  %2555 = vadd.xlane.f32.xlu0 %v2554
  %v2556 = vpop.xlane.xlu0 %2555
  %v2557 = vsel %vm985, %v2535, 0.0
  %2558 = vadd.xlane.f32.xlu0 %v2557
  %v2559 = vpop.xlane.xlu0 %2558
  %v2560 = vsel %vm985, %v2537, 0.0
  %2561 = vadd.xlane.f32.xlu0 %v2560
  %v2562 = vpop.xlane.xlu0 %2561
  %v2563 = vsel %vm985, %v2539, 0.0
  %2564 = vadd.xlane.f32.xlu0 %v2563
  %v2565 = vpop.xlane.xlu0 %2564
  %v2566 = vsel %vm985, %v2541, 0.0
  %2567 = vadd.xlane.f32.xlu0 %v2566
  %v2568 = vpop.xlane.xlu0 %2567
  %v2569 = vrcp.pop %v2544
  %v2570 = vmul.f32 %v2525, %v2569
  %v2571 = vrcp.pop %v2547
  %v2572 = vmul.f32 %v2527, %v2571
  %v2573 = vrcp.pop %v2550
  %v2574 = vmul.f32 %v2529, %v2573
  %v2575 = vrcp.pop %v2553
  %v2576 = vmul.f32 %v2531, %v2575
  %v2577 = vrcp.pop %v2556
  %v2578 = vmul.f32 %v2533, %v2577
  %v2579 = vrcp.pop %v2559
  %v2580 = vmul.f32 %v2535, %v2579
  %v2581 = vrcp.pop %v2562
  %v2582 = vmul.f32 %v2537, %v2581
  %v2583 = vrcp.pop %v2565
  %v2584 = vmul.f32 %v2539, %v2583
  %v2585 = vrcp.pop %v2568
  %v2586 = vmul.f32 %v2541, %v2585
  %2588 = vset.pattern.permute.xlu0 0
  %2589 = vperm.xlu0 %2588, %v2570
  %v2590 = vpop.permute.xlu0 %2589
  %2593 = vset.pattern.permute.xlu0 0
  %2594 = vperm.xlu0 %2593, %v2572
  %v2595 = vpop.permute.xlu0 %2594
  %2598 = vset.pattern.permute.xlu0 0
  %2599 = vperm.xlu0 %2598, %v2574
  %v2600 = vpop.permute.xlu0 %2599
  %2603 = vset.pattern.permute.xlu0 0
  %2604 = vperm.xlu0 %2603, %v2576
  %v2605 = vpop.permute.xlu0 %2604
  %2608 = vset.pattern.permute.xlu0 0
  %2609 = vperm.xlu0 %2608, %v2578
  %v2610 = vpop.permute.xlu0 %2609
  %2613 = vset.pattern.permute.xlu0 0
  %2614 = vperm.xlu0 %2613, %v2580
  %v2615 = vpop.permute.xlu0 %2614
  %2618 = vset.pattern.permute.xlu0 0
  %2619 = vperm.xlu0 %2618, %v2582
  %v2620 = vpop.permute.xlu0 %2619
  %2623 = vset.pattern.permute.xlu0 0
  %2624 = vperm.xlu0 %2623, %v2584
  %v2625 = vpop.permute.xlu0 %2624
  %2628 = vset.pattern.permute.xlu0 0
  %2629 = vperm.xlu0 %2628, %v2586
  %v2630 = vpop.permute.xlu0 %2629
  %v2632 = vmul.f32 %v2590, %v1718
  %v2633 = vmul.f32 %v2595, %v1718
  %v2634 = vmul.f32 %v2600, %v1718
  %v2635 = vmul.f32 %v2605, %v1718
  %v2636 = vmul.f32 %v2610, %v1718
  %v2637 = vmul.f32 %v2615, %v1718
  %v2638 = vmul.f32 %v2620, %v1718
  %v2639 = vmul.f32 %v2625, %v1718
  %v2640 = vmul.f32 %v2630, %v1718
  %2641 = vset.pattern.permute.xlu0 1
  %2642 = vperm.xlu0 %2641, %v2570
  %v2643 = vpop.permute.xlu0 %2642
  %2645 = vset.pattern.permute.xlu0 1
  %2646 = vperm.xlu0 %2645, %v2572
  %v2647 = vpop.permute.xlu0 %2646
  %2649 = vset.pattern.permute.xlu0 1
  %2650 = vperm.xlu0 %2649, %v2574
  %v2651 = vpop.permute.xlu0 %2650
  %2653 = vset.pattern.permute.xlu0 1
  %2654 = vperm.xlu0 %2653, %v2576
  %v2655 = vpop.permute.xlu0 %2654
  %2657 = vset.pattern.permute.xlu0 1
  %2658 = vperm.xlu0 %2657, %v2578
  %v2659 = vpop.permute.xlu0 %2658
  %2661 = vset.pattern.permute.xlu0 1
  %2662 = vperm.xlu0 %2661, %v2580
  %v2663 = vpop.permute.xlu0 %2662
  %2665 = vset.pattern.permute.xlu0 1
  %2666 = vperm.xlu0 %2665, %v2582
  %v2667 = vpop.permute.xlu0 %2666
  %2669 = vset.pattern.permute.xlu0 1
  %2670 = vperm.xlu0 %2669, %v2584
  %v2671 = vpop.permute.xlu0 %2670
  %2673 = vset.pattern.permute.xlu0 1
  %2674 = vperm.xlu0 %2673, %v2586
  %v2675 = vpop.permute.xlu0 %2674
  %v2677 = vmul.f32 %v2643, %v1767
  %v2678 = vmul.f32 %v2647, %v1767
  %v2679 = vmul.f32 %v2651, %v1767
  %v2680 = vmul.f32 %v2655, %v1767
  %v2681 = vmul.f32 %v2659, %v1767
  %v2682 = vmul.f32 %v2663, %v1767
  %v2683 = vmul.f32 %v2667, %v1767
  %v2684 = vmul.f32 %v2671, %v1767
  %v2685 = vmul.f32 %v2675, %v1767
  %v2686 = vadd.f32 %v2632, %v2677
  %v2687 = vadd.f32 %v2633, %v2678
  %v2688 = vadd.f32 %v2634, %v2679
  %v2689 = vadd.f32 %v2635, %v2680
  %v2690 = vadd.f32 %v2636, %v2681
  %v2691 = vadd.f32 %v2637, %v2682
  %v2692 = vadd.f32 %v2638, %v2683
  %v2693 = vadd.f32 %v2639, %v2684
  %v2694 = vadd.f32 %v2640, %v2685
  %2695 = vset.pattern.permute.xlu0 2
  %2696 = vperm.xlu0 %2695, %v2570
  %v2697 = vpop.permute.xlu0 %2696
  %2699 = vset.pattern.permute.xlu0 2
  %2700 = vperm.xlu0 %2699, %v2572
  %v2701 = vpop.permute.xlu0 %2700
  %2703 = vset.pattern.permute.xlu0 2
  %2704 = vperm.xlu0 %2703, %v2574
  %v2705 = vpop.permute.xlu0 %2704
  %2707 = vset.pattern.permute.xlu0 2
  %2708 = vperm.xlu0 %2707, %v2576
  %v2709 = vpop.permute.xlu0 %2708
  %2711 = vset.pattern.permute.xlu0 2
  %2712 = vperm.xlu0 %2711, %v2578
  %v2713 = vpop.permute.xlu0 %2712
  %2715 = vset.pattern.permute.xlu0 2
  %2716 = vperm.xlu0 %2715, %v2580
  %v2717 = vpop.permute.xlu0 %2716
  %2719 = vset.pattern.permute.xlu0 2
  %2720 = vperm.xlu0 %2719, %v2582
  %v2721 = vpop.permute.xlu0 %2720
  %2723 = vset.pattern.permute.xlu0 2
  %2724 = vperm.xlu0 %2723, %v2584
  %v2725 = vpop.permute.xlu0 %2724
  %2727 = vset.pattern.permute.xlu0 2
  %2728 = vperm.xlu0 %2727, %v2586
  %v2729 = vpop.permute.xlu0 %2728
  %v2731 = vmul.f32 %v2697, %v1825
  %v2732 = vmul.f32 %v2701, %v1825
  %v2733 = vmul.f32 %v2705, %v1825
  %v2734 = vmul.f32 %v2709, %v1825
  %v2735 = vmul.f32 %v2713, %v1825
  %v2736 = vmul.f32 %v2717, %v1825
  %v2737 = vmul.f32 %v2721, %v1825
  %v2738 = vmul.f32 %v2725, %v1825
  %v2739 = vmul.f32 %v2729, %v1825
  %v2740 = vadd.f32 %v2686, %v2731
  %v2741 = vadd.f32 %v2687, %v2732
  %v2742 = vadd.f32 %v2688, %v2733
  %v2743 = vadd.f32 %v2689, %v2734
  %v2744 = vadd.f32 %v2690, %v2735
  %v2745 = vadd.f32 %v2691, %v2736
  %v2746 = vadd.f32 %v2692, %v2737
  %v2747 = vadd.f32 %v2693, %v2738
  %v2748 = vadd.f32 %v2694, %v2739
  %2749 = vset.pattern.permute.xlu0 3
  %2750 = vperm.xlu0 %2749, %v2570
  %v2751 = vpop.permute.xlu0 %2750
  %2753 = vset.pattern.permute.xlu0 3
  %2754 = vperm.xlu0 %2753, %v2572
  %v2755 = vpop.permute.xlu0 %2754
  %2757 = vset.pattern.permute.xlu0 3
  %2758 = vperm.xlu0 %2757, %v2574
  %v2759 = vpop.permute.xlu0 %2758
  %2761 = vset.pattern.permute.xlu0 3
  %2762 = vperm.xlu0 %2761, %v2576
  %v2763 = vpop.permute.xlu0 %2762
  %2765 = vset.pattern.permute.xlu0 3
  %2766 = vperm.xlu0 %2765, %v2578
  %v2767 = vpop.permute.xlu0 %2766
  %2769 = vset.pattern.permute.xlu0 3
  %2770 = vperm.xlu0 %2769, %v2580
  %v2771 = vpop.permute.xlu0 %2770
  %2773 = vset.pattern.permute.xlu0 3
  %2774 = vperm.xlu0 %2773, %v2582
  %v2775 = vpop.permute.xlu0 %2774
  %2777 = vset.pattern.permute.xlu0 3
  %2778 = vperm.xlu0 %2777, %v2584
  %v2779 = vpop.permute.xlu0 %2778
  %2781 = vset.pattern.permute.xlu0 3
  %2782 = vperm.xlu0 %2781, %v2586
  %v2783 = vpop.permute.xlu0 %2782
  %v2785 = vmul.f32 %v2751, %v1883
  %v2786 = vmul.f32 %v2755, %v1883
  %v2787 = vmul.f32 %v2759, %v1883
  %v2788 = vmul.f32 %v2763, %v1883
  %v2789 = vmul.f32 %v2767, %v1883
  %v2790 = vmul.f32 %v2771, %v1883
  %v2791 = vmul.f32 %v2775, %v1883
  %v2792 = vmul.f32 %v2779, %v1883
  %v2793 = vmul.f32 %v2783, %v1883
  %v2794 = vadd.f32 %v2740, %v2785
  %v2795 = vadd.f32 %v2741, %v2786
  %v2796 = vadd.f32 %v2742, %v2787
  %v2797 = vadd.f32 %v2743, %v2788
  %v2798 = vadd.f32 %v2744, %v2789
  %v2799 = vadd.f32 %v2745, %v2790
  %v2800 = vadd.f32 %v2746, %v2791
  %v2801 = vadd.f32 %v2747, %v2792
  %v2802 = vadd.f32 %v2748, %v2793
  %2803 = vset.pattern.permute.xlu0 4
  %2804 = vperm.xlu0 %2803, %v2570
  %v2805 = vpop.permute.xlu0 %2804
  %2807 = vset.pattern.permute.xlu0 4
  %2808 = vperm.xlu0 %2807, %v2572
  %v2809 = vpop.permute.xlu0 %2808
  %2811 = vset.pattern.permute.xlu0 4
  %2812 = vperm.xlu0 %2811, %v2574
  %v2813 = vpop.permute.xlu0 %2812
  %2815 = vset.pattern.permute.xlu0 4
  %2816 = vperm.xlu0 %2815, %v2576
  %v2817 = vpop.permute.xlu0 %2816
  %2819 = vset.pattern.permute.xlu0 4
  %2820 = vperm.xlu0 %2819, %v2578
  %v2821 = vpop.permute.xlu0 %2820
  %2823 = vset.pattern.permute.xlu0 4
  %2824 = vperm.xlu0 %2823, %v2580
  %v2825 = vpop.permute.xlu0 %2824
  %2827 = vset.pattern.permute.xlu0 4
  %2828 = vperm.xlu0 %2827, %v2582
  %v2829 = vpop.permute.xlu0 %2828
  %2831 = vset.pattern.permute.xlu0 4
  %2832 = vperm.xlu0 %2831, %v2584
  %v2833 = vpop.permute.xlu0 %2832
  %2835 = vset.pattern.permute.xlu0 4
  %2836 = vperm.xlu0 %2835, %v2586
  %v2837 = vpop.permute.xlu0 %2836
  %v2839 = vmul.f32 %v2805, %v1941
  %v2840 = vmul.f32 %v2809, %v1941
  %v2841 = vmul.f32 %v2813, %v1941
  %v2842 = vmul.f32 %v2817, %v1941
  %v2843 = vmul.f32 %v2821, %v1941
  %v2844 = vmul.f32 %v2825, %v1941
  %v2845 = vmul.f32 %v2829, %v1941
  %v2846 = vmul.f32 %v2833, %v1941
  %v2847 = vmul.f32 %v2837, %v1941
  %v2848 = vadd.f32 %v2794, %v2839
  %v2849 = vadd.f32 %v2795, %v2840
  %v2850 = vadd.f32 %v2796, %v2841
  %v2851 = vadd.f32 %v2797, %v2842
  %v2852 = vadd.f32 %v2798, %v2843
  %v2853 = vadd.f32 %v2799, %v2844
  %v2854 = vadd.f32 %v2800, %v2845
  %v2855 = vadd.f32 %v2801, %v2846
  %v2856 = vadd.f32 %v2802, %v2847
  %2857 = vset.pattern.permute.xlu0 5
  %2858 = vperm.xlu0 %2857, %v2570
  %v2859 = vpop.permute.xlu0 %2858
  %2861 = vset.pattern.permute.xlu0 5
  %2862 = vperm.xlu0 %2861, %v2572
  %v2863 = vpop.permute.xlu0 %2862
  %2865 = vset.pattern.permute.xlu0 5
  %2866 = vperm.xlu0 %2865, %v2574
  %v2867 = vpop.permute.xlu0 %2866
  %2869 = vset.pattern.permute.xlu0 5
  %2870 = vperm.xlu0 %2869, %v2576
  %v2871 = vpop.permute.xlu0 %2870
  %2873 = vset.pattern.permute.xlu0 5
  %2874 = vperm.xlu0 %2873, %v2578
  %v2875 = vpop.permute.xlu0 %2874
  %2877 = vset.pattern.permute.xlu0 5
  %2878 = vperm.xlu0 %2877, %v2580
  %v2879 = vpop.permute.xlu0 %2878
  %2881 = vset.pattern.permute.xlu0 5
  %2882 = vperm.xlu0 %2881, %v2582
  %v2883 = vpop.permute.xlu0 %2882
  %2885 = vset.pattern.permute.xlu0 5
  %2886 = vperm.xlu0 %2885, %v2584
  %v2887 = vpop.permute.xlu0 %2886
  %2889 = vset.pattern.permute.xlu0 5
  %2890 = vperm.xlu0 %2889, %v2586
  %v2891 = vpop.permute.xlu0 %2890
  %v2893 = vmul.f32 %v2859, %v1999
  %v2894 = vmul.f32 %v2863, %v1999
  %v2895 = vmul.f32 %v2867, %v1999
  %v2896 = vmul.f32 %v2871, %v1999
  %v2897 = vmul.f32 %v2875, %v1999
  %v2898 = vmul.f32 %v2879, %v1999
  %v2899 = vmul.f32 %v2883, %v1999
  %v2900 = vmul.f32 %v2887, %v1999
  %v2901 = vmul.f32 %v2891, %v1999
  %v2902 = vadd.f32 %v2848, %v2893
  %v2903 = vadd.f32 %v2849, %v2894
  %v2904 = vadd.f32 %v2850, %v2895
  %v2905 = vadd.f32 %v2851, %v2896
  %v2906 = vadd.f32 %v2852, %v2897
  %v2907 = vadd.f32 %v2853, %v2898
  %v2908 = vadd.f32 %v2854, %v2899
  %v2909 = vadd.f32 %v2855, %v2900
  %v2910 = vadd.f32 %v2856, %v2901
  %2911 = vset.pattern.permute.xlu0 6
  %2912 = vperm.xlu0 %2911, %v2570
  %v2913 = vpop.permute.xlu0 %2912
  %2915 = vset.pattern.permute.xlu0 6
  %2916 = vperm.xlu0 %2915, %v2572
  %v2917 = vpop.permute.xlu0 %2916
  %2919 = vset.pattern.permute.xlu0 6
  %2920 = vperm.xlu0 %2919, %v2574
  %v2921 = vpop.permute.xlu0 %2920
  %2923 = vset.pattern.permute.xlu0 6
  %2924 = vperm.xlu0 %2923, %v2576
  %v2925 = vpop.permute.xlu0 %2924
  %2927 = vset.pattern.permute.xlu0 6
  %2928 = vperm.xlu0 %2927, %v2578
  %v2929 = vpop.permute.xlu0 %2928
  %2931 = vset.pattern.permute.xlu0 6
  %2932 = vperm.xlu0 %2931, %v2580
  %v2933 = vpop.permute.xlu0 %2932
  %2935 = vset.pattern.permute.xlu0 6
  %2936 = vperm.xlu0 %2935, %v2582
  %v2937 = vpop.permute.xlu0 %2936
  %2939 = vset.pattern.permute.xlu0 6
  %2940 = vperm.xlu0 %2939, %v2584
  %v2941 = vpop.permute.xlu0 %2940
  %2943 = vset.pattern.permute.xlu0 6
  %2944 = vperm.xlu0 %2943, %v2586
  %v2945 = vpop.permute.xlu0 %2944
  %v2947 = vmul.f32 %v2913, %v2057
  %v2948 = vmul.f32 %v2917, %v2057
  %v2949 = vmul.f32 %v2921, %v2057
  %v2950 = vmul.f32 %v2925, %v2057
  %v2951 = vmul.f32 %v2929, %v2057
  %v2952 = vmul.f32 %v2933, %v2057
  %v2953 = vmul.f32 %v2937, %v2057
  %v2954 = vmul.f32 %v2941, %v2057
  %v2955 = vmul.f32 %v2945, %v2057
  %v2956 = vadd.f32 %v2902, %v2947
  %v2957 = vadd.f32 %v2903, %v2948
  %v2958 = vadd.f32 %v2904, %v2949
  %v2959 = vadd.f32 %v2905, %v2950
  %v2960 = vadd.f32 %v2906, %v2951
  %v2961 = vadd.f32 %v2907, %v2952
  %v2962 = vadd.f32 %v2908, %v2953
  %v2963 = vadd.f32 %v2909, %v2954
  %v2964 = vadd.f32 %v2910, %v2955
  %2965 = vset.pattern.permute.xlu0 7
  %2966 = vperm.xlu0 %2965, %v2570
  %v2967 = vpop.permute.xlu0 %2966
  %2969 = vset.pattern.permute.xlu0 7
  %2970 = vperm.xlu0 %2969, %v2572
  %v2971 = vpop.permute.xlu0 %2970
  %2973 = vset.pattern.permute.xlu0 7
  %2974 = vperm.xlu0 %2973, %v2574
  %v2975 = vpop.permute.xlu0 %2974
  %2977 = vset.pattern.permute.xlu0 7
  %2978 = vperm.xlu0 %2977, %v2576
  %v2979 = vpop.permute.xlu0 %2978
  %2981 = vset.pattern.permute.xlu0 7
  %2982 = vperm.xlu0 %2981, %v2578
  %v2983 = vpop.permute.xlu0 %2982
  %2985 = vset.pattern.permute.xlu0 7
  %2986 = vperm.xlu0 %2985, %v2580
  %v2987 = vpop.permute.xlu0 %2986
  %2989 = vset.pattern.permute.xlu0 7
  %2990 = vperm.xlu0 %2989, %v2582
  %v2991 = vpop.permute.xlu0 %2990
  %2993 = vset.pattern.permute.xlu0 7
  %2994 = vperm.xlu0 %2993, %v2584
  %v2995 = vpop.permute.xlu0 %2994
  %2997 = vset.pattern.permute.xlu0 7
  %2998 = vperm.xlu0 %2997, %v2586
  %v2999 = vpop.permute.xlu0 %2998
  %v3001 = vmul.f32 %v2967, %v2115
  %v3002 = vmul.f32 %v2971, %v2115
  %v3003 = vmul.f32 %v2975, %v2115
  %v3004 = vmul.f32 %v2979, %v2115
  %v3005 = vmul.f32 %v2983, %v2115
  %v3006 = vmul.f32 %v2987, %v2115
  %v3007 = vmul.f32 %v2991, %v2115
  %v3008 = vmul.f32 %v2995, %v2115
  %v3009 = vmul.f32 %v2999, %v2115
  %v3010 = vadd.f32 %v2956, %v3001
  %v3011 = vadd.f32 %v2957, %v3002
  %v3012 = vadd.f32 %v2958, %v3003
  %v3013 = vadd.f32 %v2959, %v3004
  %v3014 = vadd.f32 %v2960, %v3005
  %v3015 = vadd.f32 %v2961, %v3006
  %v3016 = vadd.f32 %v2962, %v3007
  %v3017 = vadd.f32 %v2963, %v3008
  %v3018 = vadd.f32 %v2964, %v3009
  %3019 = vset.pattern.permute.xlu0 8
  %3020 = vperm.xlu0 %3019, %v2570
  %v3021 = vpop.permute.xlu0 %3020
  %3023 = vset.pattern.permute.xlu0 8
  %3024 = vperm.xlu0 %3023, %v2572
  %v3025 = vpop.permute.xlu0 %3024
  %3027 = vset.pattern.permute.xlu0 8
  %3028 = vperm.xlu0 %3027, %v2574
  %v3029 = vpop.permute.xlu0 %3028
  %3031 = vset.pattern.permute.xlu0 8
  %3032 = vperm.xlu0 %3031, %v2576
  %v3033 = vpop.permute.xlu0 %3032
  %3035 = vset.pattern.permute.xlu0 8
  %3036 = vperm.xlu0 %3035, %v2578
  %v3037 = vpop.permute.xlu0 %3036
  %3039 = vset.pattern.permute.xlu0 8
  %3040 = vperm.xlu0 %3039, %v2580
  %v3041 = vpop.permute.xlu0 %3040
  %3043 = vset.pattern.permute.xlu0 8
  %3044 = vperm.xlu0 %3043, %v2582
  %v3045 = vpop.permute.xlu0 %3044
  %3047 = vset.pattern.permute.xlu0 8
  %3048 = vperm.xlu0 %3047, %v2584
  %v3049 = vpop.permute.xlu0 %3048
  %3051 = vset.pattern.permute.xlu0 8
  %3052 = vperm.xlu0 %3051, %v2586
  %v3053 = vpop.permute.xlu0 %3052
  %v3055 = vmul.f32 %v3021, %v2173
  %v3056 = vmul.f32 %v3025, %v2173
  %v3057 = vmul.f32 %v3029, %v2173
  %v3058 = vmul.f32 %v3033, %v2173
  %v3059 = vmul.f32 %v3037, %v2173
  %v3060 = vmul.f32 %v3041, %v2173
  %v3061 = vmul.f32 %v3045, %v2173
  %v3062 = vmul.f32 %v3049, %v2173
  %v3063 = vmul.f32 %v3053, %v2173
  %v3064 = vadd.f32 %v3010, %v3055
  %v3065 = vadd.f32 %v3011, %v3056
  %v3066 = vadd.f32 %v3012, %v3057
  %v3067 = vadd.f32 %v3013, %v3058
  %v3068 = vadd.f32 %v3014, %v3059
  %v3069 = vadd.f32 %v3015, %v3060
  %v3070 = vadd.f32 %v3016, %v3061
  %v3071 = vadd.f32 %v3017, %v3062
  %v3072 = vadd.f32 %v3018, %v3063
  %3073 = vset.pattern.permute.xlu0 9
  %3074 = vperm.xlu0 %3073, %v2570
  %v3075 = vpop.permute.xlu0 %3074
  %3077 = vset.pattern.permute.xlu0 9
  %3078 = vperm.xlu0 %3077, %v2572
  %v3079 = vpop.permute.xlu0 %3078
  %3081 = vset.pattern.permute.xlu0 9
  %3082 = vperm.xlu0 %3081, %v2574
  %v3083 = vpop.permute.xlu0 %3082
  %3085 = vset.pattern.permute.xlu0 9
  %3086 = vperm.xlu0 %3085, %v2576
  %v3087 = vpop.permute.xlu0 %3086
  %3089 = vset.pattern.permute.xlu0 9
  %3090 = vperm.xlu0 %3089, %v2578
  %v3091 = vpop.permute.xlu0 %3090
  %3093 = vset.pattern.permute.xlu0 9
  %3094 = vperm.xlu0 %3093, %v2580
  %v3095 = vpop.permute.xlu0 %3094
  %3097 = vset.pattern.permute.xlu0 9
  %3098 = vperm.xlu0 %3097, %v2582
  %v3099 = vpop.permute.xlu0 %3098
  %3101 = vset.pattern.permute.xlu0 9
  %3102 = vperm.xlu0 %3101, %v2584
  %v3103 = vpop.permute.xlu0 %3102
  %3105 = vset.pattern.permute.xlu0 9
  %3106 = vperm.xlu0 %3105, %v2586
  %v3107 = vpop.permute.xlu0 %3106
  %v3109 = vmul.f32 %v3075, %v2231
  %v3110 = vmul.f32 %v3079, %v2231
  %v3111 = vmul.f32 %v3083, %v2231
  %v3112 = vmul.f32 %v3087, %v2231
  %v3113 = vmul.f32 %v3091, %v2231
  %v3114 = vmul.f32 %v3095, %v2231
  %v3115 = vmul.f32 %v3099, %v2231
  %v3116 = vmul.f32 %v3103, %v2231
  %v3117 = vmul.f32 %v3107, %v2231
  %v3118 = vadd.f32 %v3064, %v3109
  %v3119 = vadd.f32 %v3065, %v3110
  %v3120 = vadd.f32 %v3066, %v3111
  %v3121 = vadd.f32 %v3067, %v3112
  %v3122 = vadd.f32 %v3068, %v3113
  %v3123 = vadd.f32 %v3069, %v3114
  %v3124 = vadd.f32 %v3070, %v3115
  %v3125 = vadd.f32 %v3071, %v3116
  %v3126 = vadd.f32 %v3072, %v3117
  %3127 = vset.pattern.permute.xlu0 10
  %3128 = vperm.xlu0 %3127, %v2570
  %v3129 = vpop.permute.xlu0 %3128
  %3131 = vset.pattern.permute.xlu0 10
  %3132 = vperm.xlu0 %3131, %v2572
  %v3133 = vpop.permute.xlu0 %3132
  %3135 = vset.pattern.permute.xlu0 10
  %3136 = vperm.xlu0 %3135, %v2574
  %v3137 = vpop.permute.xlu0 %3136
  %3139 = vset.pattern.permute.xlu0 10
  %3140 = vperm.xlu0 %3139, %v2576
  %v3141 = vpop.permute.xlu0 %3140
  %3143 = vset.pattern.permute.xlu0 10
  %3144 = vperm.xlu0 %3143, %v2578
  %v3145 = vpop.permute.xlu0 %3144
  %3147 = vset.pattern.permute.xlu0 10
  %3148 = vperm.xlu0 %3147, %v2580
  %v3149 = vpop.permute.xlu0 %3148
  %3151 = vset.pattern.permute.xlu0 10
  %3152 = vperm.xlu0 %3151, %v2582
  %v3153 = vpop.permute.xlu0 %3152
  %3155 = vset.pattern.permute.xlu0 10
  %3156 = vperm.xlu0 %3155, %v2584
  %v3157 = vpop.permute.xlu0 %3156
  %3159 = vset.pattern.permute.xlu0 10
  %3160 = vperm.xlu0 %3159, %v2586
  %v3161 = vpop.permute.xlu0 %3160
  %v3163 = vmul.f32 %v3129, %v2289
  %v3164 = vmul.f32 %v3133, %v2289
  %v3165 = vmul.f32 %v3137, %v2289
  %v3166 = vmul.f32 %v3141, %v2289
  %v3167 = vmul.f32 %v3145, %v2289
  %v3168 = vmul.f32 %v3149, %v2289
  %v3169 = vmul.f32 %v3153, %v2289
  %v3170 = vmul.f32 %v3157, %v2289
  %v3171 = vmul.f32 %v3161, %v2289
  %v3172 = vadd.f32 %v3118, %v3163
  %v3173 = vadd.f32 %v3119, %v3164
  %v3174 = vadd.f32 %v3120, %v3165
  %v3175 = vadd.f32 %v3121, %v3166
  %v3176 = vadd.f32 %v3122, %v3167
  %v3177 = vadd.f32 %v3123, %v3168
  %v3178 = vadd.f32 %v3124, %v3169
  %v3179 = vadd.f32 %v3125, %v3170
  %v3180 = vadd.f32 %v3126, %v3171
  %3181 = vset.pattern.permute.xlu0 11
  %3182 = vperm.xlu0 %3181, %v2570
  %v3183 = vpop.permute.xlu0 %3182
  %3185 = vset.pattern.permute.xlu0 11
  %3186 = vperm.xlu0 %3185, %v2572
  %v3187 = vpop.permute.xlu0 %3186
  %3189 = vset.pattern.permute.xlu0 11
  %3190 = vperm.xlu0 %3189, %v2574
  %v3191 = vpop.permute.xlu0 %3190
  %3193 = vset.pattern.permute.xlu0 11
  %3194 = vperm.xlu0 %3193, %v2576
  %v3195 = vpop.permute.xlu0 %3194
  %3197 = vset.pattern.permute.xlu0 11
  %3198 = vperm.xlu0 %3197, %v2578
  %v3199 = vpop.permute.xlu0 %3198
  %3201 = vset.pattern.permute.xlu0 11
  %3202 = vperm.xlu0 %3201, %v2580
  %v3203 = vpop.permute.xlu0 %3202
  %3205 = vset.pattern.permute.xlu0 11
  %3206 = vperm.xlu0 %3205, %v2582
  %v3207 = vpop.permute.xlu0 %3206
  %3209 = vset.pattern.permute.xlu0 11
  %3210 = vperm.xlu0 %3209, %v2584
  %v3211 = vpop.permute.xlu0 %3210
  %3213 = vset.pattern.permute.xlu0 11
  %3214 = vperm.xlu0 %3213, %v2586
  %v3215 = vpop.permute.xlu0 %3214
  %v3217 = vmul.f32 %v3183, %v2347
  %v3218 = vmul.f32 %v3187, %v2347
  %v3219 = vmul.f32 %v3191, %v2347
  %v3220 = vmul.f32 %v3195, %v2347
  %v3221 = vmul.f32 %v3199, %v2347
  %v3222 = vmul.f32 %v3203, %v2347
  %v3223 = vmul.f32 %v3207, %v2347
  %v3224 = vmul.f32 %v3211, %v2347
  %v3225 = vmul.f32 %v3215, %v2347
  %v3226 = vadd.f32 %v3172, %v3217
  %v3227 = vadd.f32 %v3173, %v3218
  %v3228 = vadd.f32 %v3174, %v3219
  %v3229 = vadd.f32 %v3175, %v3220
  %v3230 = vadd.f32 %v3176, %v3221
  %v3231 = vadd.f32 %v3177, %v3222
  %v3232 = vadd.f32 %v3178, %v3223
  %v3233 = vadd.f32 %v3179, %v3224
  %v3234 = vadd.f32 %v3180, %v3225
  %v3235 = vadd.f32 %v2366, %v3226
  %v3236 = vadd.f32 %v2367, %v3227
  %v3237 = vadd.f32 %v2368, %v3228
  %v3238 = vadd.f32 %v2369, %v3229
  %v3239 = vadd.f32 %v2370, %v3230
  %v3240 = vadd.f32 %v2371, %v3231
  %v3241 = vadd.f32 %v2372, %v3232
  %v3242 = vadd.f32 %v2373, %v3233
  %v3243 = vadd.f32 %v2374, %v3234
  %s3244 = scalar_lea.vmem %s11, 72
  %3245 = vst.msk [vmem:[%s3244] sm:$0xff] %vm985, %v2570
  %3246 = vst.msk [vmem:[%s3244 + $0x8] sm:$0xff] %vm985, %v2572
  %3247 = vst.msk [vmem:[%s3244 + $0x10] sm:$0xff] %vm985, %v2574
  %3248 = vst.msk [vmem:[%s3244 + $0x18] sm:$0xff] %vm985, %v2576
  %3249 = vst.msk [vmem:[%s3244 + $0x20] sm:$0xff] %vm985, %v2578
  %3250 = vst.msk [vmem:[%s3244 + $0x28] sm:$0xff] %vm985, %v2580
  %3251 = vst.msk [vmem:[%s3244 + $0x30] sm:$0xff] %vm985, %v2582
  %3252 = vst.msk [vmem:[%s3244 + $0x38] sm:$0xff] %vm985, %v2584
  %3253 = vst.msk [vmem:[%s3244 + $0x40] sm:$0xff] %vm985, %v2586
  %v3254 = vadd.f32 %v302, %v3235
  %v3255 = vadd.f32 %v305, %v3236
  %v3256 = vadd.f32 %v310, %v3237
  %v3257 = vadd.f32 %v313, %v3238
  %v3258 = vadd.f32 %v318, %v3239
  %v3259 = vadd.f32 %v321, %v3240
  %v3260 = vadd.f32 %v326, %v3241
  %v3261 = vadd.f32 %v329, %v3242
  %v3262 = vadd.f32 %v334, %v3243
  %v3263 = vmul.f32 %v3254, 0.088388346
  %v3264 = vmul.f32 %v3255, 0.088388346
  %v3265 = vmul.f32 %v3256, 0.088388346
  %v3266 = vmul.f32 %v3257, 0.088388346
  %v3267 = vmul.f32 %v3258, 0.088388346
  %v3268 = vmul.f32 %v3259, 0.088388346
  %v3269 = vmul.f32 %v3260, 0.088388346
  %v3270 = vmul.f32 %v3261, 0.088388346
  %v3271 = vmul.f32 %v3262, 0.088388346
  %v3272 = vpack.c.bf16 %v3264, %v3263
  %v3273 = vpack.c.bf16 %v3266, %v3265
  %v3274 = vpack.c.bf16 %v3268, %v3267
  %v3275 = vpack.c.bf16 %v3270, %v3269
  %v3276 = vpack.c.bf16 %v3271, %v3271
  %3277 = vmatprep.subr.bf16.mxu0 0
  %3278 = vmatpush1.bf16.xpose.msra.mxu0 0
  %3279 = vmatprep.subr.bf16.mxu0 0
  %3280 = vmatpush1.bf16.xpose.msra.mxu0 0
  %3281 = vmatprep.subr.bf16.mxu0 0
  %3282 = vmatpush1.bf16.xpose.msra.mxu0 0
  %3283 = vmatprep.subr.bf16.mxu0 0
  %3284 = vmatpush1.bf16.xpose.msra.mxu0 0
  %3285 = vmatprep.subr.bf16.mxu0 0
  %3286 = vmatpush1.bf16.xpose.msra.mxu0 0
  %3287 = vmatprep.subr.bf16.mxu0 0
  %3288 = vmatpush1.bf16.xpose.msra.mxu0 0
  %3289 = vmatprep.subr.bf16.mxu0 0
  %3290 = vmatpush1.bf16.xpose.msra.mxu0 0
  %3291 = vmatprep.subr.bf16.mxu0 0
  %3292 = vmatpush1.bf16.xpose.msra.mxu0 %v1466
  %3293 = vmatprep.subr.bf16.mxu0 0
  %3294 = vmatpush2.bf16.xpose.msra.mxu0 0
  %3295 = vmatprep.subr.bf16.mxu0 0
  %3296 = vmatpush2.bf16.xpose.msra.mxu0 0
  %3297 = vmatprep.subr.bf16.mxu0 0
  %3298 = vmatpush2.bf16.xpose.msra.mxu0 0
  %3299 = vmatprep.subr.bf16.mxu0 0
  %3300 = vmatpush2.bf16.xpose.msra.mxu0 0
  %3301 = vmatprep.subr.bf16.mxu0 0
  %3302 = vmatpush2.bf16.xpose.msra.mxu0 0
  %3303 = vmatprep.subr.bf16.mxu0 0
  %3304 = vmatpush2.bf16.xpose.msra.mxu0 0
  %3305 = vmatprep.subr.bf16.mxu0 0
  %3306 = vmatpush2.bf16.xpose.msra.mxu0 0
  %3307 = vmatprep.subr.bf16.mxu0 0
  %3308 = vmatpush2.bf16.xpose.msra.mxu0 0
  %3309 = vmatprep.mubr.bf16.mxu0 0
  %3310 = vmatmul.mubr.bf16.gmra.mxu0 %v3272
  %v3311 = vpop.f32.mrf.mxu0
  %v3312 = vadd.f32 0.0, %v3311
  %v3313 = vpop.f32.mrf.mxu0
  %v3314 = vpop.f32.mrf.mxu0
  %v3315 = vadd.f32 0.0, %v3314
  %v3316 = vpop.f32.mrf.mxu0
  %3317 = vmatprep.mubr.bf16.mxu0 0
  %3318 = vmatmul.mubr.bf16.gmra.mxu0 %v3273
  %v3319 = vpop.f32.mrf.mxu0
  %v3320 = vadd.f32 0.0, %v3319
  %v3321 = vpop.f32.mrf.mxu0
  %v3322 = vpop.f32.mrf.mxu0
  %v3323 = vadd.f32 0.0, %v3322
  %v3324 = vpop.f32.mrf.mxu0
  %3325 = vmatprep.mubr.bf16.mxu0 0
  %3326 = vmatmul.mubr.bf16.gmra.mxu0 %v3274
  %v3327 = vpop.f32.mrf.mxu0
  %v3328 = vadd.f32 0.0, %v3327
  %v3329 = vpop.f32.mrf.mxu0
  %v3330 = vpop.f32.mrf.mxu0
  %v3331 = vadd.f32 0.0, %v3330
  %v3332 = vpop.f32.mrf.mxu0
  %3333 = vmatprep.mubr.bf16.mxu0 0
  %3334 = vmatmul.mubr.bf16.gmra.mxu0 %v3275
  %v3335 = vpop.f32.mrf.mxu0
  %v3336 = vadd.f32 0.0, %v3335
  %v3337 = vpop.f32.mrf.mxu0
  %v3338 = vpop.f32.mrf.mxu0
  %v3339 = vadd.f32 0.0, %v3338
  %v3340 = vpop.f32.mrf.mxu0
  %3341 = vmatprep.mubr.bf16.mxu0 0
  %3342 = vmatmul.mubr.bf16.gmra.mxu0 %v3276
  %v3343 = vpop.f32.mrf.mxu0
  %v3344 = vadd.f32 0.0, %v3343
  %v3345 = vpop.f32.mrf.mxu0
  %v3346 = vpop.f32.mrf.mxu0
  %v3347 = vpop.f32.mrf.mxu0
  %3348 = vdwg.mxu0
  %v3349 = vsel %vm929, %v3312, -1e+30
  %v3350 = vsel %vm930, %v3315, -1e+30
  %v3351 = vsel %vm931, %v3320, -1e+30
  %v3352 = vsel %vm932, %v3323, -1e+30
  %v3353 = vsel %vm933, %v3328, -1e+30
  %v3354 = vsel %vm934, %v3331, -1e+30
  %v3355 = vsel %vm935, %v3336, -1e+30
  %v3356 = vsel %vm936, %v3339, -1e+30
  %v3357 = vsel %vm937, %v3344, -1e+30
  %v3358 = vsel %vm985, %v3349, -inf
  %3359 = vmax.xlane.f32.xlu0 %v3358
  %v3360 = vpop.xlane.xlu0 %3359
  %v3361 = vsel %vm985, %v3350, -inf
  %3362 = vmax.xlane.f32.xlu0 %v3361
  %v3363 = vpop.xlane.xlu0 %3362
  %v3364 = vsel %vm985, %v3351, -inf
  %3365 = vmax.xlane.f32.xlu0 %v3364
  %v3366 = vpop.xlane.xlu0 %3365
  %v3367 = vsel %vm985, %v3352, -inf
  %3368 = vmax.xlane.f32.xlu0 %v3367
  %v3369 = vpop.xlane.xlu0 %3368
  %v3370 = vsel %vm985, %v3353, -inf
  %3371 = vmax.xlane.f32.xlu0 %v3370
  %v3372 = vpop.xlane.xlu0 %3371
  %v3373 = vsel %vm985, %v3354, -inf
  %3374 = vmax.xlane.f32.xlu0 %v3373
  %v3375 = vpop.xlane.xlu0 %3374
  %v3376 = vsel %vm985, %v3355, -inf
  %3377 = vmax.xlane.f32.xlu0 %v3376
  %v3378 = vpop.xlane.xlu0 %3377
  %v3379 = vsel %vm985, %v3356, -inf
  %3380 = vmax.xlane.f32.xlu0 %v3379
  %v3381 = vpop.xlane.xlu0 %3380
  %v3382 = vsel %vm985, %v3357, -inf
  %3383 = vmax.xlane.f32.xlu0 %v3382
  %v3384 = vpop.xlane.xlu0 %3383
  %v3385 = vsub.f32 %v3349, %v3360
  %v3386 = vsub.f32 %v3350, %v3363
  %v3387 = vsub.f32 %v3351, %v3366
  %v3388 = vsub.f32 %v3352, %v3369
  %v3389 = vsub.f32 %v3353, %v3372
  %v3390 = vsub.f32 %v3354, %v3375
  %v3391 = vsub.f32 %v3355, %v3378
  %v3392 = vsub.f32 %v3356, %v3381
  %v3393 = vsub.f32 %v3357, %v3384
  %v3394 = vmul.f32 %v3385, 1.442695
  %v3395 = vpow.pop %v3394
  %v3396 = vmul.f32 %v3386, 1.442695
  %v3397 = vpow.pop %v3396
  %v3398 = vmul.f32 %v3387, 1.442695
  %v3399 = vpow.pop %v3398
  %v3400 = vmul.f32 %v3388, 1.442695
  %v3401 = vpow.pop %v3400
  %v3402 = vmul.f32 %v3389, 1.442695
  %v3403 = vpow.pop %v3402
  %v3404 = vmul.f32 %v3390, 1.442695
  %v3405 = vpow.pop %v3404
  %v3406 = vmul.f32 %v3391, 1.442695
  %v3407 = vpow.pop %v3406
  %v3408 = vmul.f32 %v3392, 1.442695
  %v3409 = vpow.pop %v3408
  %v3410 = vmul.f32 %v3393, 1.442695
  %v3411 = vpow.pop %v3410
  %v3412 = vsel %vm985, %v3395, 0.0
  %3413 = vadd.xlane.f32.xlu0 %v3412
  %v3414 = vpop.xlane.xlu0 %3413
  %v3415 = vsel %vm985, %v3397, 0.0
  %3416 = vadd.xlane.f32.xlu0 %v3415
  %v3417 = vpop.xlane.xlu0 %3416
  %v3418 = vsel %vm985, %v3399, 0.0
  %3419 = vadd.xlane.f32.xlu0 %v3418
  %v3420 = vpop.xlane.xlu0 %3419
  %v3421 = vsel %vm985, %v3401, 0.0
  %3422 = vadd.xlane.f32.xlu0 %v3421
  %v3423 = vpop.xlane.xlu0 %3422
  %v3424 = vsel %vm985, %v3403, 0.0
  %3425 = vadd.xlane.f32.xlu0 %v3424
  %v3426 = vpop.xlane.xlu0 %3425
  %v3427 = vsel %vm985, %v3405, 0.0
  %3428 = vadd.xlane.f32.xlu0 %v3427
  %v3429 = vpop.xlane.xlu0 %3428
  %v3430 = vsel %vm985, %v3407, 0.0
  %3431 = vadd.xlane.f32.xlu0 %v3430
  %v3432 = vpop.xlane.xlu0 %3431
  %v3433 = vsel %vm985, %v3409, 0.0
  %3434 = vadd.xlane.f32.xlu0 %v3433
  %v3435 = vpop.xlane.xlu0 %3434
  %v3436 = vsel %vm985, %v3411, 0.0
  %3437 = vadd.xlane.f32.xlu0 %v3436
  %v3438 = vpop.xlane.xlu0 %3437
  %v3439 = vrcp.pop %v3414
  %v3440 = vmul.f32 %v3395, %v3439
  %v3441 = vrcp.pop %v3417
  %v3442 = vmul.f32 %v3397, %v3441
  %v3443 = vrcp.pop %v3420
  %v3444 = vmul.f32 %v3399, %v3443
  %v3445 = vrcp.pop %v3423
  %v3446 = vmul.f32 %v3401, %v3445
  %v3447 = vrcp.pop %v3426
  %v3448 = vmul.f32 %v3403, %v3447
  %v3449 = vrcp.pop %v3429
  %v3450 = vmul.f32 %v3405, %v3449
  %v3451 = vrcp.pop %v3432
  %v3452 = vmul.f32 %v3407, %v3451
  %v3453 = vrcp.pop %v3435
  %v3454 = vmul.f32 %v3409, %v3453
  %v3455 = vrcp.pop %v3438
  %v3456 = vmul.f32 %v3411, %v3455
  %3458 = vset.pattern.permute.xlu0 0
  %3459 = vperm.xlu0 %3458, %v3440
  %v3460 = vpop.permute.xlu0 %3459
  %3463 = vset.pattern.permute.xlu0 0
  %3464 = vperm.xlu0 %3463, %v3442
  %v3465 = vpop.permute.xlu0 %3464
  %3468 = vset.pattern.permute.xlu0 0
  %3469 = vperm.xlu0 %3468, %v3444
  %v3470 = vpop.permute.xlu0 %3469
  %3473 = vset.pattern.permute.xlu0 0
  %3474 = vperm.xlu0 %3473, %v3446
  %v3475 = vpop.permute.xlu0 %3474
  %3478 = vset.pattern.permute.xlu0 0
  %3479 = vperm.xlu0 %3478, %v3448
  %v3480 = vpop.permute.xlu0 %3479
  %3483 = vset.pattern.permute.xlu0 0
  %3484 = vperm.xlu0 %3483, %v3450
  %v3485 = vpop.permute.xlu0 %3484
  %3488 = vset.pattern.permute.xlu0 0
  %3489 = vperm.xlu0 %3488, %v3452
  %v3490 = vpop.permute.xlu0 %3489
  %3493 = vset.pattern.permute.xlu0 0
  %3494 = vperm.xlu0 %3493, %v3454
  %v3495 = vpop.permute.xlu0 %3494
  %3498 = vset.pattern.permute.xlu0 0
  %3499 = vperm.xlu0 %3498, %v3456
  %v3500 = vpop.permute.xlu0 %3499
  %v3502 = vmul.f32 %v3460, %v1718
  %v3503 = vmul.f32 %v3465, %v1718
  %v3504 = vmul.f32 %v3470, %v1718
  %v3505 = vmul.f32 %v3475, %v1718
  %v3506 = vmul.f32 %v3480, %v1718
  %v3507 = vmul.f32 %v3485, %v1718
  %v3508 = vmul.f32 %v3490, %v1718
  %v3509 = vmul.f32 %v3495, %v1718
  %v3510 = vmul.f32 %v3500, %v1718
  %3511 = vset.pattern.permute.xlu0 1
  %3512 = vperm.xlu0 %3511, %v3440
  %v3513 = vpop.permute.xlu0 %3512
  %3515 = vset.pattern.permute.xlu0 1
  %3516 = vperm.xlu0 %3515, %v3442
  %v3517 = vpop.permute.xlu0 %3516
  %3519 = vset.pattern.permute.xlu0 1
  %3520 = vperm.xlu0 %3519, %v3444
  %v3521 = vpop.permute.xlu0 %3520
  %3523 = vset.pattern.permute.xlu0 1
  %3524 = vperm.xlu0 %3523, %v3446
  %v3525 = vpop.permute.xlu0 %3524
  %3527 = vset.pattern.permute.xlu0 1
  %3528 = vperm.xlu0 %3527, %v3448
  %v3529 = vpop.permute.xlu0 %3528
  %3531 = vset.pattern.permute.xlu0 1
  %3532 = vperm.xlu0 %3531, %v3450
  %v3533 = vpop.permute.xlu0 %3532
  %3535 = vset.pattern.permute.xlu0 1
  %3536 = vperm.xlu0 %3535, %v3452
  %v3537 = vpop.permute.xlu0 %3536
  %3539 = vset.pattern.permute.xlu0 1
  %3540 = vperm.xlu0 %3539, %v3454
  %v3541 = vpop.permute.xlu0 %3540
  %3543 = vset.pattern.permute.xlu0 1
  %3544 = vperm.xlu0 %3543, %v3456
  %v3545 = vpop.permute.xlu0 %3544
  %v3547 = vmul.f32 %v3513, %v1767
  %v3548 = vmul.f32 %v3517, %v1767
  %v3549 = vmul.f32 %v3521, %v1767
  %v3550 = vmul.f32 %v3525, %v1767
  %v3551 = vmul.f32 %v3529, %v1767
  %v3552 = vmul.f32 %v3533, %v1767
  %v3553 = vmul.f32 %v3537, %v1767
  %v3554 = vmul.f32 %v3541, %v1767
  %v3555 = vmul.f32 %v3545, %v1767
  %v3556 = vadd.f32 %v3502, %v3547
  %v3557 = vadd.f32 %v3503, %v3548
  %v3558 = vadd.f32 %v3504, %v3549
  %v3559 = vadd.f32 %v3505, %v3550
  %v3560 = vadd.f32 %v3506, %v3551
  %v3561 = vadd.f32 %v3507, %v3552
  %v3562 = vadd.f32 %v3508, %v3553
  %v3563 = vadd.f32 %v3509, %v3554
  %v3564 = vadd.f32 %v3510, %v3555
  %3565 = vset.pattern.permute.xlu0 2
  %3566 = vperm.xlu0 %3565, %v3440
  %v3567 = vpop.permute.xlu0 %3566
  %3569 = vset.pattern.permute.xlu0 2
  %3570 = vperm.xlu0 %3569, %v3442
  %v3571 = vpop.permute.xlu0 %3570
  %3573 = vset.pattern.permute.xlu0 2
  %3574 = vperm.xlu0 %3573, %v3444
  %v3575 = vpop.permute.xlu0 %3574
  %3577 = vset.pattern.permute.xlu0 2
  %3578 = vperm.xlu0 %3577, %v3446
  %v3579 = vpop.permute.xlu0 %3578
  %3581 = vset.pattern.permute.xlu0 2
  %3582 = vperm.xlu0 %3581, %v3448
  %v3583 = vpop.permute.xlu0 %3582
  %3585 = vset.pattern.permute.xlu0 2
  %3586 = vperm.xlu0 %3585, %v3450
  %v3587 = vpop.permute.xlu0 %3586
  %3589 = vset.pattern.permute.xlu0 2
  %3590 = vperm.xlu0 %3589, %v3452
  %v3591 = vpop.permute.xlu0 %3590
  %3593 = vset.pattern.permute.xlu0 2
  %3594 = vperm.xlu0 %3593, %v3454
  %v3595 = vpop.permute.xlu0 %3594
  %3597 = vset.pattern.permute.xlu0 2
  %3598 = vperm.xlu0 %3597, %v3456
  %v3599 = vpop.permute.xlu0 %3598
  %v3601 = vmul.f32 %v3567, %v1825
  %v3602 = vmul.f32 %v3571, %v1825
  %v3603 = vmul.f32 %v3575, %v1825
  %v3604 = vmul.f32 %v3579, %v1825
  %v3605 = vmul.f32 %v3583, %v1825
  %v3606 = vmul.f32 %v3587, %v1825
  %v3607 = vmul.f32 %v3591, %v1825
  %v3608 = vmul.f32 %v3595, %v1825
  %v3609 = vmul.f32 %v3599, %v1825
  %v3610 = vadd.f32 %v3556, %v3601
  %v3611 = vadd.f32 %v3557, %v3602
  %v3612 = vadd.f32 %v3558, %v3603
  %v3613 = vadd.f32 %v3559, %v3604
  %v3614 = vadd.f32 %v3560, %v3605
  %v3615 = vadd.f32 %v3561, %v3606
  %v3616 = vadd.f32 %v3562, %v3607
  %v3617 = vadd.f32 %v3563, %v3608
  %v3618 = vadd.f32 %v3564, %v3609
  %3619 = vset.pattern.permute.xlu0 3
  %3620 = vperm.xlu0 %3619, %v3440
  %v3621 = vpop.permute.xlu0 %3620
  %3623 = vset.pattern.permute.xlu0 3
  %3624 = vperm.xlu0 %3623, %v3442
  %v3625 = vpop.permute.xlu0 %3624
  %3627 = vset.pattern.permute.xlu0 3
  %3628 = vperm.xlu0 %3627, %v3444
  %v3629 = vpop.permute.xlu0 %3628
  %3631 = vset.pattern.permute.xlu0 3
  %3632 = vperm.xlu0 %3631, %v3446
  %v3633 = vpop.permute.xlu0 %3632
  %3635 = vset.pattern.permute.xlu0 3
  %3636 = vperm.xlu0 %3635, %v3448
  %v3637 = vpop.permute.xlu0 %3636
  %3639 = vset.pattern.permute.xlu0 3
  %3640 = vperm.xlu0 %3639, %v3450
  %v3641 = vpop.permute.xlu0 %3640
  %3643 = vset.pattern.permute.xlu0 3
  %3644 = vperm.xlu0 %3643, %v3452
  %v3645 = vpop.permute.xlu0 %3644
  %3647 = vset.pattern.permute.xlu0 3
  %3648 = vperm.xlu0 %3647, %v3454
  %v3649 = vpop.permute.xlu0 %3648
  %3651 = vset.pattern.permute.xlu0 3
  %3652 = vperm.xlu0 %3651, %v3456
  %v3653 = vpop.permute.xlu0 %3652
  %v3655 = vmul.f32 %v3621, %v1883
  %v3656 = vmul.f32 %v3625, %v1883
  %v3657 = vmul.f32 %v3629, %v1883
  %v3658 = vmul.f32 %v3633, %v1883
  %v3659 = vmul.f32 %v3637, %v1883
  %v3660 = vmul.f32 %v3641, %v1883
  %v3661 = vmul.f32 %v3645, %v1883
  %v3662 = vmul.f32 %v3649, %v1883
  %v3663 = vmul.f32 %v3653, %v1883
  %v3664 = vadd.f32 %v3610, %v3655
  %v3665 = vadd.f32 %v3611, %v3656
  %v3666 = vadd.f32 %v3612, %v3657
  %v3667 = vadd.f32 %v3613, %v3658
  %v3668 = vadd.f32 %v3614, %v3659
  %v3669 = vadd.f32 %v3615, %v3660
  %v3670 = vadd.f32 %v3616, %v3661
  %v3671 = vadd.f32 %v3617, %v3662
  %v3672 = vadd.f32 %v3618, %v3663
  %3673 = vset.pattern.permute.xlu0 4
  %3674 = vperm.xlu0 %3673, %v3440
  %v3675 = vpop.permute.xlu0 %3674
  %3677 = vset.pattern.permute.xlu0 4
  %3678 = vperm.xlu0 %3677, %v3442
  %v3679 = vpop.permute.xlu0 %3678
  %3681 = vset.pattern.permute.xlu0 4
  %3682 = vperm.xlu0 %3681, %v3444
  %v3683 = vpop.permute.xlu0 %3682
  %3685 = vset.pattern.permute.xlu0 4
  %3686 = vperm.xlu0 %3685, %v3446
  %v3687 = vpop.permute.xlu0 %3686
  %3689 = vset.pattern.permute.xlu0 4
  %3690 = vperm.xlu0 %3689, %v3448
  %v3691 = vpop.permute.xlu0 %3690
  %3693 = vset.pattern.permute.xlu0 4
  %3694 = vperm.xlu0 %3693, %v3450
  %v3695 = vpop.permute.xlu0 %3694
  %3697 = vset.pattern.permute.xlu0 4
  %3698 = vperm.xlu0 %3697, %v3452
  %v3699 = vpop.permute.xlu0 %3698
  %3701 = vset.pattern.permute.xlu0 4
  %3702 = vperm.xlu0 %3701, %v3454
  %v3703 = vpop.permute.xlu0 %3702
  %3705 = vset.pattern.permute.xlu0 4
  %3706 = vperm.xlu0 %3705, %v3456
  %v3707 = vpop.permute.xlu0 %3706
  %v3709 = vmul.f32 %v3675, %v1941
  %v3710 = vmul.f32 %v3679, %v1941
  %v3711 = vmul.f32 %v3683, %v1941
  %v3712 = vmul.f32 %v3687, %v1941
  %v3713 = vmul.f32 %v3691, %v1941
  %v3714 = vmul.f32 %v3695, %v1941
  %v3715 = vmul.f32 %v3699, %v1941
  %v3716 = vmul.f32 %v3703, %v1941
  %v3717 = vmul.f32 %v3707, %v1941
  %v3718 = vadd.f32 %v3664, %v3709
  %v3719 = vadd.f32 %v3665, %v3710
  %v3720 = vadd.f32 %v3666, %v3711
  %v3721 = vadd.f32 %v3667, %v3712
  %v3722 = vadd.f32 %v3668, %v3713
  %v3723 = vadd.f32 %v3669, %v3714
  %v3724 = vadd.f32 %v3670, %v3715
  %v3725 = vadd.f32 %v3671, %v3716
  %v3726 = vadd.f32 %v3672, %v3717
  %3727 = vset.pattern.permute.xlu0 5
  %3728 = vperm.xlu0 %3727, %v3440
  %v3729 = vpop.permute.xlu0 %3728
  %3731 = vset.pattern.permute.xlu0 5
  %3732 = vperm.xlu0 %3731, %v3442
  %v3733 = vpop.permute.xlu0 %3732
  %3735 = vset.pattern.permute.xlu0 5
  %3736 = vperm.xlu0 %3735, %v3444
  %v3737 = vpop.permute.xlu0 %3736
  %3739 = vset.pattern.permute.xlu0 5
  %3740 = vperm.xlu0 %3739, %v3446
  %v3741 = vpop.permute.xlu0 %3740
  %3743 = vset.pattern.permute.xlu0 5
  %3744 = vperm.xlu0 %3743, %v3448
  %v3745 = vpop.permute.xlu0 %3744
  %3747 = vset.pattern.permute.xlu0 5
  %3748 = vperm.xlu0 %3747, %v3450
  %v3749 = vpop.permute.xlu0 %3748
  %3751 = vset.pattern.permute.xlu0 5
  %3752 = vperm.xlu0 %3751, %v3452
  %v3753 = vpop.permute.xlu0 %3752
  %3755 = vset.pattern.permute.xlu0 5
  %3756 = vperm.xlu0 %3755, %v3454
  %v3757 = vpop.permute.xlu0 %3756
  %3759 = vset.pattern.permute.xlu0 5
  %3760 = vperm.xlu0 %3759, %v3456
  %v3761 = vpop.permute.xlu0 %3760
  %v3763 = vmul.f32 %v3729, %v1999
  %v3764 = vmul.f32 %v3733, %v1999
  %v3765 = vmul.f32 %v3737, %v1999
  %v3766 = vmul.f32 %v3741, %v1999
  %v3767 = vmul.f32 %v3745, %v1999
  %v3768 = vmul.f32 %v3749, %v1999
  %v3769 = vmul.f32 %v3753, %v1999
  %v3770 = vmul.f32 %v3757, %v1999
  %v3771 = vmul.f32 %v3761, %v1999
  %v3772 = vadd.f32 %v3718, %v3763
  %v3773 = vadd.f32 %v3719, %v3764
  %v3774 = vadd.f32 %v3720, %v3765
  %v3775 = vadd.f32 %v3721, %v3766
  %v3776 = vadd.f32 %v3722, %v3767
  %v3777 = vadd.f32 %v3723, %v3768
  %v3778 = vadd.f32 %v3724, %v3769
  %v3779 = vadd.f32 %v3725, %v3770
  %v3780 = vadd.f32 %v3726, %v3771
  %3781 = vset.pattern.permute.xlu0 6
  %3782 = vperm.xlu0 %3781, %v3440
  %v3783 = vpop.permute.xlu0 %3782
  %3785 = vset.pattern.permute.xlu0 6
  %3786 = vperm.xlu0 %3785, %v3442
  %v3787 = vpop.permute.xlu0 %3786
  %3789 = vset.pattern.permute.xlu0 6
  %3790 = vperm.xlu0 %3789, %v3444
  %v3791 = vpop.permute.xlu0 %3790
  %3793 = vset.pattern.permute.xlu0 6
  %3794 = vperm.xlu0 %3793, %v3446
  %v3795 = vpop.permute.xlu0 %3794
  %3797 = vset.pattern.permute.xlu0 6
  %3798 = vperm.xlu0 %3797, %v3448
  %v3799 = vpop.permute.xlu0 %3798
  %3801 = vset.pattern.permute.xlu0 6
  %3802 = vperm.xlu0 %3801, %v3450
  %v3803 = vpop.permute.xlu0 %3802
  %3805 = vset.pattern.permute.xlu0 6
  %3806 = vperm.xlu0 %3805, %v3452
  %v3807 = vpop.permute.xlu0 %3806
  %3809 = vset.pattern.permute.xlu0 6
  %3810 = vperm.xlu0 %3809, %v3454
  %v3811 = vpop.permute.xlu0 %3810
  %3813 = vset.pattern.permute.xlu0 6
  %3814 = vperm.xlu0 %3813, %v3456
  %v3815 = vpop.permute.xlu0 %3814
  %v3817 = vmul.f32 %v3783, %v2057
  %v3818 = vmul.f32 %v3787, %v2057
  %v3819 = vmul.f32 %v3791, %v2057
  %v3820 = vmul.f32 %v3795, %v2057
  %v3821 = vmul.f32 %v3799, %v2057
  %v3822 = vmul.f32 %v3803, %v2057
  %v3823 = vmul.f32 %v3807, %v2057
  %v3824 = vmul.f32 %v3811, %v2057
  %v3825 = vmul.f32 %v3815, %v2057
  %v3826 = vadd.f32 %v3772, %v3817
  %v3827 = vadd.f32 %v3773, %v3818
  %v3828 = vadd.f32 %v3774, %v3819
  %v3829 = vadd.f32 %v3775, %v3820
  %v3830 = vadd.f32 %v3776, %v3821
  %v3831 = vadd.f32 %v3777, %v3822
  %v3832 = vadd.f32 %v3778, %v3823
  %v3833 = vadd.f32 %v3779, %v3824
  %v3834 = vadd.f32 %v3780, %v3825
  %3835 = vset.pattern.permute.xlu0 7
  %3836 = vperm.xlu0 %3835, %v3440
  %v3837 = vpop.permute.xlu0 %3836
  %3839 = vset.pattern.permute.xlu0 7
  %3840 = vperm.xlu0 %3839, %v3442
  %v3841 = vpop.permute.xlu0 %3840
  %3843 = vset.pattern.permute.xlu0 7
  %3844 = vperm.xlu0 %3843, %v3444
  %v3845 = vpop.permute.xlu0 %3844
  %3847 = vset.pattern.permute.xlu0 7
  %3848 = vperm.xlu0 %3847, %v3446
  %v3849 = vpop.permute.xlu0 %3848
  %3851 = vset.pattern.permute.xlu0 7
  %3852 = vperm.xlu0 %3851, %v3448
  %v3853 = vpop.permute.xlu0 %3852
  %3855 = vset.pattern.permute.xlu0 7
  %3856 = vperm.xlu0 %3855, %v3450
  %v3857 = vpop.permute.xlu0 %3856
  %3859 = vset.pattern.permute.xlu0 7
  %3860 = vperm.xlu0 %3859, %v3452
  %v3861 = vpop.permute.xlu0 %3860
  %3863 = vset.pattern.permute.xlu0 7
  %3864 = vperm.xlu0 %3863, %v3454
  %v3865 = vpop.permute.xlu0 %3864
  %3867 = vset.pattern.permute.xlu0 7
  %3868 = vperm.xlu0 %3867, %v3456
  %v3869 = vpop.permute.xlu0 %3868
  %v3871 = vmul.f32 %v3837, %v2115
  %v3872 = vmul.f32 %v3841, %v2115
  %v3873 = vmul.f32 %v3845, %v2115
  %v3874 = vmul.f32 %v3849, %v2115
  %v3875 = vmul.f32 %v3853, %v2115
  %v3876 = vmul.f32 %v3857, %v2115
  %v3877 = vmul.f32 %v3861, %v2115
  %v3878 = vmul.f32 %v3865, %v2115
  %v3879 = vmul.f32 %v3869, %v2115
  %v3880 = vadd.f32 %v3826, %v3871
  %v3881 = vadd.f32 %v3827, %v3872
  %v3882 = vadd.f32 %v3828, %v3873
  %v3883 = vadd.f32 %v3829, %v3874
  %v3884 = vadd.f32 %v3830, %v3875
  %v3885 = vadd.f32 %v3831, %v3876
  %v3886 = vadd.f32 %v3832, %v3877
  %v3887 = vadd.f32 %v3833, %v3878
  %v3888 = vadd.f32 %v3834, %v3879
  %3889 = vset.pattern.permute.xlu0 8
  %3890 = vperm.xlu0 %3889, %v3440
  %v3891 = vpop.permute.xlu0 %3890
  %3893 = vset.pattern.permute.xlu0 8
  %3894 = vperm.xlu0 %3893, %v3442
  %v3895 = vpop.permute.xlu0 %3894
  %3897 = vset.pattern.permute.xlu0 8
  %3898 = vperm.xlu0 %3897, %v3444
  %v3899 = vpop.permute.xlu0 %3898
  %3901 = vset.pattern.permute.xlu0 8
  %3902 = vperm.xlu0 %3901, %v3446
  %v3903 = vpop.permute.xlu0 %3902
  %3905 = vset.pattern.permute.xlu0 8
  %3906 = vperm.xlu0 %3905, %v3448
  %v3907 = vpop.permute.xlu0 %3906
  %3909 = vset.pattern.permute.xlu0 8
  %3910 = vperm.xlu0 %3909, %v3450
  %v3911 = vpop.permute.xlu0 %3910
  %3913 = vset.pattern.permute.xlu0 8
  %3914 = vperm.xlu0 %3913, %v3452
  %v3915 = vpop.permute.xlu0 %3914
  %3917 = vset.pattern.permute.xlu0 8
  %3918 = vperm.xlu0 %3917, %v3454
  %v3919 = vpop.permute.xlu0 %3918
  %3921 = vset.pattern.permute.xlu0 8
  %3922 = vperm.xlu0 %3921, %v3456
  %v3923 = vpop.permute.xlu0 %3922
  %v3925 = vmul.f32 %v3891, %v2173
  %v3926 = vmul.f32 %v3895, %v2173
  %v3927 = vmul.f32 %v3899, %v2173
  %v3928 = vmul.f32 %v3903, %v2173
  %v3929 = vmul.f32 %v3907, %v2173
  %v3930 = vmul.f32 %v3911, %v2173
  %v3931 = vmul.f32 %v3915, %v2173
  %v3932 = vmul.f32 %v3919, %v2173
  %v3933 = vmul.f32 %v3923, %v2173
  %v3934 = vadd.f32 %v3880, %v3925
  %v3935 = vadd.f32 %v3881, %v3926
  %v3936 = vadd.f32 %v3882, %v3927
  %v3937 = vadd.f32 %v3883, %v3928
  %v3938 = vadd.f32 %v3884, %v3929
  %v3939 = vadd.f32 %v3885, %v3930
  %v3940 = vadd.f32 %v3886, %v3931
  %v3941 = vadd.f32 %v3887, %v3932
  %v3942 = vadd.f32 %v3888, %v3933
  %3943 = vset.pattern.permute.xlu0 9
  %3944 = vperm.xlu0 %3943, %v3440
  %v3945 = vpop.permute.xlu0 %3944
  %3947 = vset.pattern.permute.xlu0 9
  %3948 = vperm.xlu0 %3947, %v3442
  %v3949 = vpop.permute.xlu0 %3948
  %3951 = vset.pattern.permute.xlu0 9
  %3952 = vperm.xlu0 %3951, %v3444
  %v3953 = vpop.permute.xlu0 %3952
  %3955 = vset.pattern.permute.xlu0 9
  %3956 = vperm.xlu0 %3955, %v3446
  %v3957 = vpop.permute.xlu0 %3956
  %3959 = vset.pattern.permute.xlu0 9
  %3960 = vperm.xlu0 %3959, %v3448
  %v3961 = vpop.permute.xlu0 %3960
  %3963 = vset.pattern.permute.xlu0 9
  %3964 = vperm.xlu0 %3963, %v3450
  %v3965 = vpop.permute.xlu0 %3964
  %3967 = vset.pattern.permute.xlu0 9
  %3968 = vperm.xlu0 %3967, %v3452
  %v3969 = vpop.permute.xlu0 %3968
  %3971 = vset.pattern.permute.xlu0 9
  %3972 = vperm.xlu0 %3971, %v3454
  %v3973 = vpop.permute.xlu0 %3972
  %3975 = vset.pattern.permute.xlu0 9
  %3976 = vperm.xlu0 %3975, %v3456
  %v3977 = vpop.permute.xlu0 %3976
  %v3979 = vmul.f32 %v3945, %v2231
  %v3980 = vmul.f32 %v3949, %v2231
  %v3981 = vmul.f32 %v3953, %v2231
  %v3982 = vmul.f32 %v3957, %v2231
  %v3983 = vmul.f32 %v3961, %v2231
  %v3984 = vmul.f32 %v3965, %v2231
  %v3985 = vmul.f32 %v3969, %v2231
  %v3986 = vmul.f32 %v3973, %v2231
  %v3987 = vmul.f32 %v3977, %v2231
  %v3988 = vadd.f32 %v3934, %v3979
  %v3989 = vadd.f32 %v3935, %v3980
  %v3990 = vadd.f32 %v3936, %v3981
  %v3991 = vadd.f32 %v3937, %v3982
  %v3992 = vadd.f32 %v3938, %v3983
  %v3993 = vadd.f32 %v3939, %v3984
  %v3994 = vadd.f32 %v3940, %v3985
  %v3995 = vadd.f32 %v3941, %v3986
  %v3996 = vadd.f32 %v3942, %v3987
  %3997 = vset.pattern.permute.xlu0 10
  %3998 = vperm.xlu0 %3997, %v3440
  %v3999 = vpop.permute.xlu0 %3998
  %4001 = vset.pattern.permute.xlu0 10
  %4002 = vperm.xlu0 %4001, %v3442
  %v4003 = vpop.permute.xlu0 %4002
  %4005 = vset.pattern.permute.xlu0 10
  %4006 = vperm.xlu0 %4005, %v3444
  %v4007 = vpop.permute.xlu0 %4006
  %4009 = vset.pattern.permute.xlu0 10
  %4010 = vperm.xlu0 %4009, %v3446
  %v4011 = vpop.permute.xlu0 %4010
  %4013 = vset.pattern.permute.xlu0 10
  %4014 = vperm.xlu0 %4013, %v3448
  %v4015 = vpop.permute.xlu0 %4014
  %4017 = vset.pattern.permute.xlu0 10
  %4018 = vperm.xlu0 %4017, %v3450
  %v4019 = vpop.permute.xlu0 %4018
  %4021 = vset.pattern.permute.xlu0 10
  %4022 = vperm.xlu0 %4021, %v3452
  %v4023 = vpop.permute.xlu0 %4022
  %4025 = vset.pattern.permute.xlu0 10
  %4026 = vperm.xlu0 %4025, %v3454
  %v4027 = vpop.permute.xlu0 %4026
  %4029 = vset.pattern.permute.xlu0 10
  %4030 = vperm.xlu0 %4029, %v3456
  %v4031 = vpop.permute.xlu0 %4030
  %v4033 = vmul.f32 %v3999, %v2289
  %v4034 = vmul.f32 %v4003, %v2289
  %v4035 = vmul.f32 %v4007, %v2289
  %v4036 = vmul.f32 %v4011, %v2289
  %v4037 = vmul.f32 %v4015, %v2289
  %v4038 = vmul.f32 %v4019, %v2289
  %v4039 = vmul.f32 %v4023, %v2289
  %v4040 = vmul.f32 %v4027, %v2289
  %v4041 = vmul.f32 %v4031, %v2289
  %v4042 = vadd.f32 %v3988, %v4033
  %v4043 = vadd.f32 %v3989, %v4034
  %v4044 = vadd.f32 %v3990, %v4035
  %v4045 = vadd.f32 %v3991, %v4036
  %v4046 = vadd.f32 %v3992, %v4037
  %v4047 = vadd.f32 %v3993, %v4038
  %v4048 = vadd.f32 %v3994, %v4039
  %v4049 = vadd.f32 %v3995, %v4040
  %v4050 = vadd.f32 %v3996, %v4041
  %4051 = vset.pattern.permute.xlu0 11
  %4052 = vperm.xlu0 %4051, %v3440
  %v4053 = vpop.permute.xlu0 %4052
  %4055 = vset.pattern.permute.xlu0 11
  %4056 = vperm.xlu0 %4055, %v3442
  %v4057 = vpop.permute.xlu0 %4056
  %4059 = vset.pattern.permute.xlu0 11
  %4060 = vperm.xlu0 %4059, %v3444
  %v4061 = vpop.permute.xlu0 %4060
  %4063 = vset.pattern.permute.xlu0 11
  %4064 = vperm.xlu0 %4063, %v3446
  %v4065 = vpop.permute.xlu0 %4064
  %4067 = vset.pattern.permute.xlu0 11
  %4068 = vperm.xlu0 %4067, %v3448
  %v4069 = vpop.permute.xlu0 %4068
  %4071 = vset.pattern.permute.xlu0 11
  %4072 = vperm.xlu0 %4071, %v3450
  %v4073 = vpop.permute.xlu0 %4072
  %4075 = vset.pattern.permute.xlu0 11
  %4076 = vperm.xlu0 %4075, %v3452
  %v4077 = vpop.permute.xlu0 %4076
  %4079 = vset.pattern.permute.xlu0 11
  %4080 = vperm.xlu0 %4079, %v3454
  %v4081 = vpop.permute.xlu0 %4080
  %4083 = vset.pattern.permute.xlu0 11
  %4084 = vperm.xlu0 %4083, %v3456
  %v4085 = vpop.permute.xlu0 %4084
  %v4087 = vmul.f32 %v4053, %v2347
  %v4088 = vmul.f32 %v4057, %v2347
  %v4089 = vmul.f32 %v4061, %v2347
  %v4090 = vmul.f32 %v4065, %v2347
  %v4091 = vmul.f32 %v4069, %v2347
  %v4092 = vmul.f32 %v4073, %v2347
  %v4093 = vmul.f32 %v4077, %v2347
  %v4094 = vmul.f32 %v4081, %v2347
  %v4095 = vmul.f32 %v4085, %v2347
  %v4096 = vadd.f32 %v4042, %v4087
  %v4097 = vadd.f32 %v4043, %v4088
  %v4098 = vadd.f32 %v4044, %v4089
  %v4099 = vadd.f32 %v4045, %v4090
  %v4100 = vadd.f32 %v4046, %v4091
  %v4101 = vadd.f32 %v4047, %v4092
  %v4102 = vadd.f32 %v4048, %v4093
  %v4103 = vadd.f32 %v4049, %v4094
  %v4104 = vadd.f32 %v4050, %v4095
  %v4105 = vadd.f32 %v3235, %v4096
  %v4106 = vadd.f32 %v3236, %v4097
  %v4107 = vadd.f32 %v3237, %v4098
  %v4108 = vadd.f32 %v3238, %v4099
  %v4109 = vadd.f32 %v3239, %v4100
  %v4110 = vadd.f32 %v3240, %v4101
  %v4111 = vadd.f32 %v3241, %v4102
  %v4112 = vadd.f32 %v3242, %v4103
  %v4113 = vadd.f32 %v3243, %v4104
  %s4114 = scalar_lea.vmem %s11, 144
  %4115 = vst.msk [vmem:[%s4114] sm:$0xff] %vm985, %v3440
  %4116 = vst.msk [vmem:[%s4114 + $0x8] sm:$0xff] %vm985, %v3442
  %4117 = vst.msk [vmem:[%s4114 + $0x10] sm:$0xff] %vm985, %v3444
  %4118 = vst.msk [vmem:[%s4114 + $0x18] sm:$0xff] %vm985, %v3446
  %4119 = vst.msk [vmem:[%s4114 + $0x20] sm:$0xff] %vm985, %v3448
  %4120 = vst.msk [vmem:[%s4114 + $0x28] sm:$0xff] %vm985, %v3450
  %4121 = vst.msk [vmem:[%s4114 + $0x30] sm:$0xff] %vm985, %v3452
  %4122 = vst.msk [vmem:[%s4114 + $0x38] sm:$0xff] %vm985, %v3454
  %4123 = vst.msk [vmem:[%s4114 + $0x40] sm:$0xff] %vm985, %v3456
  %v4124 = vadd.f32 %v4105, %v4106
  %v4125 = vadd.f32 %v4124, %v4107
  %v4126 = vadd.f32 %v4125, %v4108
  %v4127 = vadd.f32 %v4126, %v4109
  %v4128 = vadd.f32 %v4127, %v4110
  %v4129 = vadd.f32 %v4128, %v4111
  %v4130 = vadd.f32 %v4129, %v4112
  %v4131 = vadd.f32 %v4130, %v4113
  %v4132 = vrot.slane %v4131, 4
  %v4133 = vadd.f32 %v4131, %v4132
  %v4134 = vrot.slane %v4133, 2
  %v4135 = vadd.f32 %v4133, %v4134
  %v4136 = vrot.slane %v4135, 1
  %v4137 = vadd.f32 %v4135, %v4136
  %4138 = vst [vmem:[%s9] sm:$0x1] %v4137
  %v4139 = vadd.f32 %v801, %v802
  %v4140 = vrot.slane %v4139, 4
  %v4141 = vadd.f32 %v4139, %v4140
  %v4142 = vrot.slane %v4141, 2
  %v4143 = vadd.f32 %v4141, %v4142
  %v4144 = vrot.slane %v4143, 1
  %v4145 = vadd.f32 %v4143, %v4144
  %4146 = vst [vmem:[%s10] sm:$0x1] %v4145
  // Predicated region
  $region38: #{euler_forward.1} parent=0 // pred_check
    _
  $region39: #{euler_forward.1} parent=0 // pred_check_branch
    %4148 = sbr.rel (0) target = $region41
  $region40: #{euler_forward.1} parent=0 // pred_region
    _
  $region41: #{euler_forward.1} parent=0 // pred_fallthru
    _
  // Predicated region
  $region42: #{euler_forward.1} parent=0 // pred_check
    _
  $region43: #{euler_forward.1} parent=0 // pred_check_branch
    %4150 = sbr.rel (0) target = $region45
  $region44: #{euler_forward.1} parent=0 // pred_region
    _
  $region45: #{euler_forward.1} parent=0 // pred_fallthru
    _
  // Predicated region
  $region46: #{euler_forward.1} parent=0 // pred_check
    _
  $region47: #{euler_forward.1} parent=0 // pred_check_branch
    %4152 = sbr.rel (0) target = $region49
  $region48: #{euler_forward.1} parent=0 // pred_region
    _
  $region49: #{euler_forward.1} parent=0 // pred_fallthru
    _
  // Predicated region
  $region50: #{euler_forward.1} parent=0 // pred_check
    _
  $region51: #{euler_forward.1} parent=0 // pred_check_branch
    %4154 = sbr.rel (0) target = $region53
  $region52: #{euler_forward.1} parent=0 // pred_region
    _
  $region53: #{euler_forward.1} parent=0 // pred_fallthru
    _
  // Predicated region
  $region54: #{euler_forward.1} parent=0 // pred_check
    _
  $region55: #{euler_forward.1} parent=0 // pred_check_branch
    %4156 = sbr.rel (0) target = $region57
  $region56: #{euler_forward.1} parent=0 // pred_region
    _
  $region57: #{euler_forward.1} parent=0 // pred_fallthru
    _
  // Predicated region
  $region58: #{euler_forward.1} parent=0 // pred_check
    _
  $region59: #{euler_forward.1} parent=0 // pred_check_branch
    %4158 = sbr.rel (0) target = $region61
  $region60: #{euler_forward.1} parent=0 // pred_region
    _
  $region61: #{euler_forward.1} parent=0 // pred_fallthru
    _

</llo_original>
